<compile_context>
chip_gen: v6e
topology: v6e:2x2x1
jax: 0.10.0
libtpu: 0.0.40
codegen_flags: <defaults>
</compile_context>

<pallas_src>
import math
import functools

import jax
import jax.numpy as jnp
from jax import lax
from jax.experimental import pallas as pl
from jax.experimental.pallas import tpu as pltpu


def _residual_mha_kernel(alpha_ref, x_ref,
                         wq_ref, wk_ref, wv_ref,
                         bq_ref, bk_ref, bv_ref,
                         w_out_ref, b_out_ref, o_ref, *, num_heads):
    # alpha_ref: (1,) f32 in SMEM
    # x_ref / o_ref: (B, E, S)   (NCHW with H*W flattened to S; E == C)
    # wq/wk/wv/w_out: (E, E)   bq/bk/bv/b_out: (1, E)
    B, E, S = x_ref.shape
    BS = B * S
    hd = E // num_heads

    # Input path in bf16 (no f32 copy of x kept live through the hot region).
    x_seq = jnp.transpose(x_ref[...].astype(jnp.bfloat16), (0, 2, 1))   # (B,S,E)
    x_flat = x_seq.reshape(BS, E)                                        # (BS,E)

    wq = wq_ref[...].astype(jnp.bfloat16)
    wk = wk_ref[...].astype(jnp.bfloat16)
    wv = wv_ref[...].astype(jnp.bfloat16)
    w_out = w_out_ref[...].astype(jnp.bfloat16)

    nt = (((1,), (1,)), ((), ()))            # x @ W^T : contract last dims

    # Separate projections (scale already folded into wq/bq by the wrapper).
    q = lax.dot_general(x_flat, wq, nt,
                        preferred_element_type=jnp.float32) + bq_ref[...]
    k = lax.dot_general(x_flat, wk, nt,
                        preferred_element_type=jnp.float32) + bk_ref[...]
    v = lax.dot_general(x_flat, wv, nt,
                        preferred_element_type=jnp.float32) + bv_ref[...]

    # True batch dims for attention: scores are (B,S,S), not a masked (BS,BS).
    q = q.reshape(B, S, E).astype(jnp.bfloat16)
    k = k.reshape(B, S, E).astype(jnp.bfloat16)
    v = v.reshape(B, S, E).astype(jnp.bfloat16)

    batched_nt = (((2,), (2,)), ((0,), (0,)))     # q @ k^T  per batch element
    batched_nn = (((2,), (1,)), ((0,), (0,)))     # p @ v    per batch element

    out_seq = jnp.zeros((B, S, E), jnp.float32)
    for h in range(num_heads):                    # static loop, heads are few
        lo = h * hd
        qh = q[..., lo:lo + hd]                   # (B, S, hd)
        kh = k[..., lo:lo + hd]
        vh = v[..., lo:lo + hd]
        s = lax.dot_general(qh, kh, batched_nt,
                            preferred_element_type=jnp.float32)        # (B,S,S)
        s = s - jnp.max(s, axis=-1, keepdims=True)
        p = jnp.exp(s)                                                 # f32 EUP
        denom = jnp.sum(p, axis=-1, keepdims=True)                     # (B,S,1)
        # Un-normalized p (<= 1, safe in bf16) into the p@v matmul; normalize
        # the small (B,S,hd) result instead of the (B,S,S) probabilities.
        pv = lax.dot_general(p.astype(jnp.bfloat16), vh, batched_nn,
                             preferred_element_type=jnp.float32)       # (B,S,hd)
        pv = pv * pl.reciprocal(denom, approx=True)
        # Accumulate the per-head slice of the output projection in f32.
        out_seq = out_seq + lax.dot_general(
            pv.astype(jnp.bfloat16), w_out[:, lo:lo + hd],
            (((2,), (1,)), ((), ())), preferred_element_type=jnp.float32)

    out_seq = out_seq + b_out_ref[...]                                 # (B,S,E)

    # Back to NCHW and fuse the ResidualBlock: y = x + alpha * block(x).
    out_chw = jnp.transpose(out_seq, (0, 2, 1))                        # (B,E,S)
    alpha = alpha_ref[0]
    o_ref[...] = (x_ref[...] + alpha * out_chw).astype(o_ref.dtype)


def residual_attention_block(x, params, num_heads, alpha):
    """ResidualBlock(MultiHeadSelfAttention): x (B, C, H, W) -> (B, C, H, W)."""
    w_in, b_in, w_out, b_out = params
    B, C, H, W = x.shape
    S, E = H * W, C
    hd = E // num_heads
    scale = 1.0 / math.sqrt(hd)

    # One-time, XLA-side parameter prep (fused / constant-folded under jit):
    #  * split in_proj into q/k/v,
    #  * fold 1/sqrt(hd) into BOTH the q weight and q bias (torch scales q
    #    after the bias add).
    w_q = w_in[:E] * scale
    w_k = w_in[E:2 * E]
    w_v = w_in[2 * E:]
    b_q = (b_in[:E] * scale).reshape(1, E)
    b_k = b_in[E:2 * E].reshape(1, E)
    b_v = b_in[2 * E:].reshape(1, E)
    b_o = b_out.reshape(1, E)

    x_r = x.reshape(B, C, S)                       # free, contiguous reshape
    alpha_arr = jnp.asarray(alpha, dtype=jnp.float32).reshape(1)

    kernel = functools.partial(_residual_mha_kernel, num_heads=num_heads)
    out = pl.pallas_call(
        kernel,
        out_shape=jax.ShapeDtypeStruct((B, C, S), x.dtype),
        grid_spec=pltpu.PrefetchScalarGridSpec(
            num_scalar_prefetch=0,
            # One grid step: the whole problem fits in VMEM; folding the batch
            # gives a single (B*S, E) projection per q/k/v and avoids per-step
            # pipeline overhead (~0.35 us/step).
            grid=(1,),
            in_specs=[
                pl.BlockSpec(memory_space=pltpu.MemorySpace.SMEM),   # alpha
                pl.BlockSpec((B, C, S), lambda i: (0, 0, 0)),        # x (NCHW)
                pl.BlockSpec((E, E), lambda i: (0, 0)),              # w_q (scaled)
                pl.BlockSpec((E, E), lambda i: (0, 0)),              # w_k
                pl.BlockSpec((E, E), lambda i: (0, 0)),              # w_v
                pl.BlockSpec((1, E), lambda i: (0, 0)),              # b_q (scaled)
                pl.BlockSpec((1, E), lambda i: (0, 0)),              # b_k
                pl.BlockSpec((1, E), lambda i: (0, 0)),              # b_v
                pl.BlockSpec((E, E), lambda i: (0, 0)),              # out_proj.weight
                pl.BlockSpec((1, E), lambda i: (0, 0)),              # out_proj.bias
            ],
            out_specs=pl.BlockSpec((B, C, S), lambda i: (0, 0, 0)),
        ),
        compiler_params=pltpu.CompilerParams(
            dimension_semantics=("arbitrary",)),
    )(alpha_arr, x_r, w_q, w_k, w_v, b_q, b_k, b_v, w_out, b_o)
    return out.reshape(B, C, H, W)


def _reference_residual_block(x, params, num_heads, alpha):
    """Pure-JAX f32 reference: x + alpha * torch.nn.MultiheadAttention(x)."""
    w_in, b_in, w_out, b_out = params
    B, C, H, W = x.shape
    S, E = H * W, C
    hd = E // num_heads
    x_flat = jnp.transpose(x.reshape(B, C, S), (0, 2, 1))              # (B,S,E)
    qkv = jnp.einsum('bse,fe->bsf', x_flat, w_in) + b_in
    q, k, v = qkv[..., :E], qkv[..., E:2 * E], qkv[..., 2 * E:]

    def split(a):
        return jnp.transpose(a.reshape(B, S, num_heads, hd), (0, 2, 1, 3))

    q, k, v = split(q), split(k), split(v)
    scores = jnp.einsum('bhqd,bhkd->bhqk', q, k) / math.sqrt(hd)
    probs = jax.nn.softmax(scores, axis=-1)
    o = jnp.einsum('bhqk,bhkd->bhqd', probs, v)
    o = jnp.transpose(o, (0, 2, 1, 3)).reshape(B, S, E)
    attn = jnp.einsum('bse,fe->bsf', o, w_out) + b_out                 # (B,S,E)
    attn_nchw = jnp.transpose(attn, (0, 2, 1)).reshape(B, C, H, W)
    return x + alpha * attn_nchw, attn_nchw


if __name__ == "__main__":
    B, C, H, W = 2, 32, 8, 8          # embed_dim = C = 32, S = 64
    num_heads = 4

    key = jax.random.PRNGKey(0)
    k_x, k_win, k_bin, k_wout, k_bout = jax.random.split(key, 5)
    x = jax.random.normal(k_x, (B, C, H, W), dtype=jnp.float32)

    # Parameter shapes follow nn.MultiheadAttention + ResidualBlock.alpha.
    wscale = 1.0 / math.sqrt(C)
    w_in = jax.random.normal(k_win, (3 * C, C), dtype=jnp.float32) * wscale
    b_in = jax.random.normal(k_bin, (3 * C,), dtype=jnp.float32) * 0.01
    w_out = jax.random.normal(k_wout, (C, C), dtype=jnp.float32) * wscale
    b_out = jax.random.normal(k_bout, (C,), dtype=jnp.float32) * 0.01
    params = (w_in, b_in, w_out, b_out)
    alpha = 0.01                       # nn.Parameter(torch.tensor(0.01)) init

    out = residual_attention_block(x, params, num_heads, alpha)
    out = jax.block_until_ready(out)
    assert out.shape == (B, C, H, W)

    ref_out, ref_attn = _reference_residual_block(x, params, num_heads, alpha)
    # Full ResidualBlock output (bf16 MXU operands + approx reciprocal inside).
    assert jnp.allclose(out, ref_out, atol=1e-3, rtol=1e-3)
    # Attention branch itself (undo the alpha damping) at bf16-level tolerance.
    attn_kernel = (out - x) / alpha
    assert jnp.allclose(attn_kernel, ref_attn, atol=5e-2, rtol=5e-2)

    print("KERNEL_OK")
</pallas_src>

<mosaic_0001>
module attributes {stable_mosaic.version = 11 : i64} {
  func.func @_residual_mha_kernel(%arg0: i32, %arg1: memref<1xf32, #tpu.memory_space<smem>>, %arg2: memref<2x32x64xf32, #tpu.memory_space<vmem>>, %arg3: memref<32x32xf32, #tpu.memory_space<vmem>>, %arg4: memref<32x32xf32, #tpu.memory_space<vmem>>, %arg5: memref<32x32xf32, #tpu.memory_space<vmem>>, %arg6: memref<1x32xf32, #tpu.memory_space<vmem>>, %arg7: memref<1x32xf32, #tpu.memory_space<vmem>>, %arg8: memref<1x32xf32, #tpu.memory_space<vmem>>, %arg9: memref<32x32xf32, #tpu.memory_space<vmem>>, %arg10: memref<1x32xf32, #tpu.memory_space<vmem>>, %arg11: memref<2x32x64xf32, #tpu.memory_space<vmem>>) attributes {dimension_semantics = [#tpu.dimension_semantics<arbitrary>], iteration_bounds = array<i64: 1>, scalar_prefetch = 0 : i64, scratch_operands = 0 : i64, tpu.core_type = #tpu.core_type<tc>, window_params = [{transform_indices = @transform_0, window_bounds = array<i64: 1>}, {pipeline_mode = #tpu.pipeline_mode<synchronous>, transform_indices = @transform_1, window_bounds = array<i64: 2, 32, 64>}, {pipeline_mode = #tpu.pipeline_mode<synchronous>, transform_indices = @transform_2, window_bounds = array<i64: 32, 32>}, {pipeline_mode = #tpu.pipeline_mode<synchronous>, transform_indices = @transform_3, window_bounds = array<i64: 32, 32>}, {pipeline_mode = #tpu.pipeline_mode<synchronous>, transform_indices = @transform_4, window_bounds = array<i64: 32, 32>}, {pipeline_mode = #tpu.pipeline_mode<synchronous>, transform_indices = @transform_5, window_bounds = array<i64: 1, 32>}, {pipeline_mode = #tpu.pipeline_mode<synchronous>, transform_indices = @transform_6, window_bounds = array<i64: 1, 32>}, {pipeline_mode = #tpu.pipeline_mode<synchronous>, transform_indices = @transform_7, window_bounds = array<i64: 1, 32>}, {pipeline_mode = #tpu.pipeline_mode<synchronous>, transform_indices = @transform_8, window_bounds = array<i64: 32, 32>}, {pipeline_mode = #tpu.pipeline_mode<synchronous>, transform_indices = @transform_9, window_bounds = array<i64: 1, 32>}, {pipeline_mode = #tpu.pipeline_mode<synchronous>, transform_indices = @transform_10, window_bounds = array<i64: 2, 32, 64>}]} {
    %c0 = arith.constant 0 : index
    %c0_0 = arith.constant 0 : index
    %c0_1 = arith.constant 0 : index
    %0 = vector.load %arg2[%c0, %c0_0, %c0_1] : memref<2x32x64xf32, #tpu.memory_space<vmem>>, vector<2x32x64xf32>
    %1 = arith.truncf %0 : vector<2x32x64xf32> to vector<2x32x64xbf16>
    %2 = tpu.transpose %1, [0, 2, 1] : vector<2x32x64xbf16> -> vector<2x64x32xbf16>
    %3 = vector.shape_cast %2 : vector<2x64x32xbf16> to vector<128x32xbf16>
    %c0_2 = arith.constant 0 : index
    %c0_3 = arith.constant 0 : index
    %4 = vector.load %arg3[%c0_2, %c0_3] : memref<32x32xf32, #tpu.memory_space<vmem>>, vector<32x32xf32>
    %5 = arith.truncf %4 : vector<32x32xf32> to vector<32x32xbf16>
    %c0_4 = arith.constant 0 : index
    %c0_5 = arith.constant 0 : index
    %6 = vector.load %arg4[%c0_4, %c0_5] : memref<32x32xf32, #tpu.memory_space<vmem>>, vector<32x32xf32>
    %7 = arith.truncf %6 : vector<32x32xf32> to vector<32x32xbf16>
    %c0_6 = arith.constant 0 : index
    %c0_7 = arith.constant 0 : index
    %8 = vector.load %arg5[%c0_6, %c0_7] : memref<32x32xf32, #tpu.memory_space<vmem>>, vector<32x32xf32>
    %9 = arith.truncf %8 : vector<32x32xf32> to vector<32x32xbf16>
    %c0_8 = arith.constant 0 : index
    %c0_9 = arith.constant 0 : index
    %10 = vector.load %arg9[%c0_8, %c0_9] : memref<32x32xf32, #tpu.memory_space<vmem>>, vector<32x32xf32>
    %11 = arith.truncf %10 : vector<32x32xf32> to vector<32x32xbf16>
    %cst = arith.constant dense<0.000000e+00> : vector<128x32xf32>
    %12 = tpu.matmul %3, %5, %cst {dimension_numbers = #tpu.dot_dimension_numbers<[1], [1], [0], [0], [0, 0, 1, 0], [], []>} : vector<128x32xbf16>, vector<32x32xbf16>, vector<128x32xf32> -> vector<128x32xf32>
    %c0_10 = arith.constant 0 : index
    %c0_11 = arith.constant 0 : index
    %13 = vector.load %arg6[%c0_10, %c0_11] : memref<1x32xf32, #tpu.memory_space<vmem>>, vector<1x32xf32>
    %14 = vector.broadcast %13 : vector<1x32xf32> to vector<128x32xf32>
    %15 = arith.addf %12, %14 : vector<128x32xf32>
    %cst_12 = arith.constant dense<0.000000e+00> : vector<128x32xf32>
    %16 = tpu.matmul %3, %7, %cst_12 {dimension_numbers = #tpu.dot_dimension_numbers<[1], [1], [0], [0], [0, 0, 1, 0], [], []>} : vector<128x32xbf16>, vector<32x32xbf16>, vector<128x32xf32> -> vector<128x32xf32>
    %c0_13 = arith.constant 0 : index
    %c0_14 = arith.constant 0 : index
    %17 = vector.load %arg7[%c0_13, %c0_14] : memref<1x32xf32, #tpu.memory_space<vmem>>, vector<1x32xf32>
    %18 = vector.broadcast %17 : vector<1x32xf32> to vector<128x32xf32>
    %19 = arith.addf %16, %18 : vector<128x32xf32>
    %cst_15 = arith.constant dense<0.000000e+00> : vector<128x32xf32>
    %20 = tpu.matmul %3, %9, %cst_15 {dimension_numbers = #tpu.dot_dimension_numbers<[1], [1], [0], [0], [0, 0, 1, 0], [], []>} : vector<128x32xbf16>, vector<32x32xbf16>, vector<128x32xf32> -> vector<128x32xf32>
    %c0_16 = arith.constant 0 : index
    %c0_17 = arith.constant 0 : index
    %21 = vector.load %arg8[%c0_16, %c0_17] : memref<1x32xf32, #tpu.memory_space<vmem>>, vector<1x32xf32>
    %22 = vector.broadcast %21 : vector<1x32xf32> to vector<128x32xf32>
    %23 = arith.addf %20, %22 : vector<128x32xf32>
    %24 = vector.shape_cast %15 : vector<128x32xf32> to vector<2x64x32xf32>
    %25 = arith.truncf %24 : vector<2x64x32xf32> to vector<2x64x32xbf16>
    %26 = vector.shape_cast %19 : vector<128x32xf32> to vector<2x64x32xf32>
    %27 = arith.truncf %26 : vector<2x64x32xf32> to vector<2x64x32xbf16>
    %28 = vector.shape_cast %23 : vector<128x32xf32> to vector<2x64x32xf32>
    %29 = arith.truncf %28 : vector<2x64x32xf32> to vector<2x64x32xbf16>
    %cst_18 = arith.constant 0.000000e+00 : f32
    %30 = vector.broadcast %cst_18 : f32 to vector<2x64x32xf32>
    %31 = vector.extract_strided_slice %25 {offsets = [0, 0, 0], sizes = [2, 64, 8], strides = [1, 1, 1]} : vector<2x64x32xbf16> to vector<2x64x8xbf16>
    %32 = vector.extract_strided_slice %27 {offsets = [0, 0, 0], sizes = [2, 64, 8], strides = [1, 1, 1]} : vector<2x64x32xbf16> to vector<2x64x8xbf16>
    %33 = vector.extract_strided_slice %29 {offsets = [0, 0, 0], sizes = [2, 64, 8], strides = [1, 1, 1]} : vector<2x64x32xbf16> to vector<2x64x8xbf16>
    %cst_19 = arith.constant dense<0.000000e+00> : vector<2x64x64xf32>
    %34 = tpu.matmul %31, %32, %cst_19 {dimension_numbers = #tpu.dot_dimension_numbers<[2], [2], [1], [1], [0, 0, 0, 1, 1, 1], [0], [0]>} : vector<2x64x8xbf16>, vector<2x64x8xbf16>, vector<2x64x64xf32> -> vector<2x64x64xf32>
    %cst_20 = arith.constant dense<0xFF800000> : vector<2x64xf32>
    %35 = vector.multi_reduction <maximumf>, %34, %cst_20 [2] : vector<2x64x64xf32> to vector<2x64xf32>
    %36 = vector.shape_cast %35 : vector<2x64xf32> to vector<2x64x1xf32>
    %37 = vector.broadcast %36 : vector<2x64x1xf32> to vector<2x64x64xf32>
    %38 = arith.subf %34, %37 : vector<2x64x64xf32>
    %39 = math.exp %38 : vector<2x64x64xf32>
    %cst_21 = arith.constant dense<0.000000e+00> : vector<2x64xf32>
    %40 = vector.multi_reduction <add>, %39, %cst_21 [2] : vector<2x64x64xf32> to vector<2x64xf32>
    %41 = vector.shape_cast %40 : vector<2x64xf32> to vector<2x64x1xf32>
    %42 = arith.truncf %39 : vector<2x64x64xf32> to vector<2x64x64xbf16>
    %cst_22 = arith.constant dense<0.000000e+00> : vector<2x64x8xf32>
    %43 = tpu.matmul %42, %33, %cst_22 {dimension_numbers = #tpu.dot_dimension_numbers<[2], [1], [1], [2], [0, 0, 0, 1, 1, 2], [0], [0]>} : vector<2x64x64xbf16>, vector<2x64x8xbf16>, vector<2x64x8xf32> -> vector<2x64x8xf32>
    %44 = tpu.reciprocal %41 {approx = true} : vector<2x64x1xf32> -> vector<2x64x1xf32>
    %45 = vector.broadcast %44 : vector<2x64x1xf32> to vector<2x64x8xf32>
    %46 = arith.mulf %43, %45 : vector<2x64x8xf32>
    %47 = arith.truncf %46 : vector<2x64x8xf32> to vector<2x64x8xbf16>
    %48 = vector.extract_strided_slice %11 {offsets = [0, 0], sizes = [32, 8], strides = [1, 1]} : vector<32x32xbf16> to vector<32x8xbf16>
    %cst_23 = arith.constant dense<0.000000e+00> : vector<2x64x32xf32>
    %49 = tpu.matmul %47, %48, %cst_23 {dimension_numbers = #tpu.dot_dimension_numbers<[2], [1], [0, 1], [0], [0, 0, 0, 1, 1, 0], [], []>} : vector<2x64x8xbf16>, vector<32x8xbf16>, vector<2x64x32xf32> -> vector<2x64x32xf32>
    %50 = arith.addf %30, %49 : vector<2x64x32xf32>
    %51 = vector.extract_strided_slice %25 {offsets = [0, 0, 8], sizes = [2, 64, 8], strides = [1, 1, 1]} : vector<2x64x32xbf16> to vector<2x64x8xbf16>
    %52 = vector.extract_strided_slice %27 {offsets = [0, 0, 8], sizes = [2, 64, 8], strides = [1, 1, 1]} : vector<2x64x32xbf16> to vector<2x64x8xbf16>
    %53 = vector.extract_strided_slice %29 {offsets = [0, 0, 8], sizes = [2, 64, 8], strides = [1, 1, 1]} : vector<2x64x32xbf16> to vector<2x64x8xbf16>
    %cst_24 = arith.constant dense<0.000000e+00> : vector<2x64x64xf32>
    %54 = tpu.matmul %51, %52, %cst_24 {dimension_numbers = #tpu.dot_dimension_numbers<[2], [2], [1], [1], [0, 0, 0, 1, 1, 1], [0], [0]>} : vector<2x64x8xbf16>, vector<2x64x8xbf16>, vector<2x64x64xf32> -> vector<2x64x64xf32>
    %cst_25 = arith.constant dense<0xFF800000> : vector<2x64xf32>
    %55 = vector.multi_reduction <maximumf>, %54, %cst_25 [2] : vector<2x64x64xf32> to vector<2x64xf32>
    %56 = vector.shape_cast %55 : vector<2x64xf32> to vector<2x64x1xf32>
    %57 = vector.broadcast %56 : vector<2x64x1xf32> to vector<2x64x64xf32>
    %58 = arith.subf %54, %57 : vector<2x64x64xf32>
    %59 = math.exp %58 : vector<2x64x64xf32>
    %cst_26 = arith.constant dense<0.000000e+00> : vector<2x64xf32>
    %60 = vector.multi_reduction <add>, %59, %cst_26 [2] : vector<2x64x64xf32> to vector<2x64xf32>
    %61 = vector.shape_cast %60 : vector<2x64xf32> to vector<2x64x1xf32>
    %62 = arith.truncf %59 : vector<2x64x64xf32> to vector<2x64x64xbf16>
    %cst_27 = arith.constant dense<0.000000e+00> : vector<2x64x8xf32>
    %63 = tpu.matmul %62, %53, %cst_27 {dimension_numbers = #tpu.dot_dimension_numbers<[2], [1], [1], [2], [0, 0, 0, 1, 1, 2], [0], [0]>} : vector<2x64x64xbf16>, vector<2x64x8xbf16>, vector<2x64x8xf32> -> vector<2x64x8xf32>
    %64 = tpu.reciprocal %61 {approx = true} : vector<2x64x1xf32> -> vector<2x64x1xf32>
    %65 = vector.broadcast %64 : vector<2x64x1xf32> to vector<2x64x8xf32>
    %66 = arith.mulf %63, %65 : vector<2x64x8xf32>
    %67 = arith.truncf %66 : vector<2x64x8xf32> to vector<2x64x8xbf16>
    %68 = vector.extract_strided_slice %11 {offsets = [0, 8], sizes = [32, 8], strides = [1, 1]} : vector<32x32xbf16> to vector<32x8xbf16>
    %cst_28 = arith.constant dense<0.000000e+00> : vector<2x64x32xf32>
    %69 = tpu.matmul %67, %68, %cst_28 {dimension_numbers = #tpu.dot_dimension_numbers<[2], [1], [0, 1], [0], [0, 0, 0, 1, 1, 0], [], []>} : vector<2x64x8xbf16>, vector<32x8xbf16>, vector<2x64x32xf32> -> vector<2x64x32xf32>
    %70 = arith.addf %50, %69 : vector<2x64x32xf32>
    %71 = vector.extract_strided_slice %25 {offsets = [0, 0, 16], sizes = [2, 64, 8], strides = [1, 1, 1]} : vector<2x64x32xbf16> to vector<2x64x8xbf16>
    %72 = vector.extract_strided_slice %27 {offsets = [0, 0, 16], sizes = [2, 64, 8], strides = [1, 1, 1]} : vector<2x64x32xbf16> to vector<2x64x8xbf16>
    %73 = vector.extract_strided_slice %29 {offsets = [0, 0, 16], sizes = [2, 64, 8], strides = [1, 1, 1]} : vector<2x64x32xbf16> to vector<2x64x8xbf16>
    %cst_29 = arith.constant dense<0.000000e+00> : vector<2x64x64xf32>
    %74 = tpu.matmul %71, %72, %cst_29 {dimension_numbers = #tpu.dot_dimension_numbers<[2], [2], [1], [1], [0, 0, 0, 1, 1, 1], [0], [0]>} : vector<2x64x8xbf16>, vector<2x64x8xbf16>, vector<2x64x64xf32> -> vector<2x64x64xf32>
    %cst_30 = arith.constant dense<0xFF800000> : vector<2x64xf32>
    %75 = vector.multi_reduction <maximumf>, %74, %cst_30 [2] : vector<2x64x64xf32> to vector<2x64xf32>
    %76 = vector.shape_cast %75 : vector<2x64xf32> to vector<2x64x1xf32>
    %77 = vector.broadcast %76 : vector<2x64x1xf32> to vector<2x64x64xf32>
    %78 = arith.subf %74, %77 : vector<2x64x64xf32>
    %79 = math.exp %78 : vector<2x64x64xf32>
    %cst_31 = arith.constant dense<0.000000e+00> : vector<2x64xf32>
    %80 = vector.multi_reduction <add>, %79, %cst_31 [2] : vector<2x64x64xf32> to vector<2x64xf32>
    %81 = vector.shape_cast %80 : vector<2x64xf32> to vector<2x64x1xf32>
    %82 = arith.truncf %79 : vector<2x64x64xf32> to vector<2x64x64xbf16>
    %cst_32 = arith.constant dense<0.000000e+00> : vector<2x64x8xf32>
    %83 = tpu.matmul %82, %73, %cst_32 {dimension_numbers = #tpu.dot_dimension_numbers<[2], [1], [1], [2], [0, 0, 0, 1, 1, 2], [0], [0]>} : vector<2x64x64xbf16>, vector<2x64x8xbf16>, vector<2x64x8xf32> -> vector<2x64x8xf32>
    %84 = tpu.reciprocal %81 {approx = true} : vector<2x64x1xf32> -> vector<2x64x1xf32>
    %85 = vector.broadcast %84 : vector<2x64x1xf32> to vector<2x64x8xf32>
    %86 = arith.mulf %83, %85 : vector<2x64x8xf32>
    %87 = arith.truncf %86 : vector<2x64x8xf32> to vector<2x64x8xbf16>
    %88 = vector.extract_strided_slice %11 {offsets = [0, 16], sizes = [32, 8], strides = [1, 1]} : vector<32x32xbf16> to vector<32x8xbf16>
    %cst_33 = arith.constant dense<0.000000e+00> : vector<2x64x32xf32>
    %89 = tpu.matmul %87, %88, %cst_33 {dimension_numbers = #tpu.dot_dimension_numbers<[2], [1], [0, 1], [0], [0, 0, 0, 1, 1, 0], [], []>} : vector<2x64x8xbf16>, vector<32x8xbf16>, vector<2x64x32xf32> -> vector<2x64x32xf32>
    %90 = arith.addf %70, %89 : vector<2x64x32xf32>
    %91 = vector.extract_strided_slice %25 {offsets = [0, 0, 24], sizes = [2, 64, 8], strides = [1, 1, 1]} : vector<2x64x32xbf16> to vector<2x64x8xbf16>
    %92 = vector.extract_strided_slice %27 {offsets = [0, 0, 24], sizes = [2, 64, 8], strides = [1, 1, 1]} : vector<2x64x32xbf16> to vector<2x64x8xbf16>
    %93 = vector.extract_strided_slice %29 {offsets = [0, 0, 24], sizes = [2, 64, 8], strides = [1, 1, 1]} : vector<2x64x32xbf16> to vector<2x64x8xbf16>
    %cst_34 = arith.constant dense<0.000000e+00> : vector<2x64x64xf32>
    %94 = tpu.matmul %91, %92, %cst_34 {dimension_numbers = #tpu.dot_dimension_numbers<[2], [2], [1], [1], [0, 0, 0, 1, 1, 1], [0], [0]>} : vector<2x64x8xbf16>, vector<2x64x8xbf16>, vector<2x64x64xf32> -> vector<2x64x64xf32>
    %cst_35 = arith.constant dense<0xFF800000> : vector<2x64xf32>
    %95 = vector.multi_reduction <maximumf>, %94, %cst_35 [2] : vector<2x64x64xf32> to vector<2x64xf32>
    %96 = vector.shape_cast %95 : vector<2x64xf32> to vector<2x64x1xf32>
    %97 = vector.broadcast %96 : vector<2x64x1xf32> to vector<2x64x64xf32>
    %98 = arith.subf %94, %97 : vector<2x64x64xf32>
    %99 = math.exp %98 : vector<2x64x64xf32>
    %cst_36 = arith.constant dense<0.000000e+00> : vector<2x64xf32>
    %100 = vector.multi_reduction <add>, %99, %cst_36 [2] : vector<2x64x64xf32> to vector<2x64xf32>
    %101 = vector.shape_cast %100 : vector<2x64xf32> to vector<2x64x1xf32>
    %102 = arith.truncf %99 : vector<2x64x64xf32> to vector<2x64x64xbf16>
    %cst_37 = arith.constant dense<0.000000e+00> : vector<2x64x8xf32>
    %103 = tpu.matmul %102, %93, %cst_37 {dimension_numbers = #tpu.dot_dimension_numbers<[2], [1], [1], [2], [0, 0, 0, 1, 1, 2], [0], [0]>} : vector<2x64x64xbf16>, vector<2x64x8xbf16>, vector<2x64x8xf32> -> vector<2x64x8xf32>
    %104 = tpu.reciprocal %101 {approx = true} : vector<2x64x1xf32> -> vector<2x64x1xf32>
    %105 = vector.broadcast %104 : vector<2x64x1xf32> to vector<2x64x8xf32>
    %106 = arith.mulf %103, %105 : vector<2x64x8xf32>
    %107 = arith.truncf %106 : vector<2x64x8xf32> to vector<2x64x8xbf16>
    %108 = vector.extract_strided_slice %11 {offsets = [0, 24], sizes = [32, 8], strides = [1, 1]} : vector<32x32xbf16> to vector<32x8xbf16>
    %cst_38 = arith.constant dense<0.000000e+00> : vector<2x64x32xf32>
    %109 = tpu.matmul %107, %108, %cst_38 {dimension_numbers = #tpu.dot_dimension_numbers<[2], [1], [0, 1], [0], [0, 0, 0, 1, 1, 0], [], []>} : vector<2x64x8xbf16>, vector<32x8xbf16>, vector<2x64x32xf32> -> vector<2x64x32xf32>
    %110 = arith.addf %90, %109 : vector<2x64x32xf32>
    %c0_39 = arith.constant 0 : index
    %c0_40 = arith.constant 0 : index
    %111 = vector.load %arg10[%c0_39, %c0_40] : memref<1x32xf32, #tpu.memory_space<vmem>>, vector<1x32xf32>
    %112 = vector.shape_cast %111 : vector<1x32xf32> to vector<1x1x32xf32>
    %113 = vector.broadcast %112 : vector<1x1x32xf32> to vector<2x64x32xf32>
    %114 = arith.addf %110, %113 : vector<2x64x32xf32>
    %115 = tpu.transpose %114, [0, 2, 1] : vector<2x64x32xf32> -> vector<2x32x64xf32>
    %c0_41 = arith.constant 0 : index
    %116 = memref.load %arg1[%c0_41] : memref<1xf32, #tpu.memory_space<smem>>
    %c0_42 = arith.constant 0 : index
    %c0_43 = arith.constant 0 : index
    %c0_44 = arith.constant 0 : index
    %117 = vector.load %arg2[%c0_42, %c0_43, %c0_44] : memref<2x32x64xf32, #tpu.memory_space<vmem>>, vector<2x32x64xf32>
    %118 = vector.broadcast %116 : f32 to vector<2x32x64xf32>
    %119 = arith.mulf %118, %115 : vector<2x32x64xf32>
    %120 = arith.addf %117, %119 : vector<2x32x64xf32>
    %c0_45 = arith.constant 0 : index
    %c0_46 = arith.constant 0 : index
    %c0_47 = arith.constant 0 : index
    %121 = vector.load %arg11[%c0_45, %c0_46, %c0_47] : memref<2x32x64xf32, #tpu.memory_space<vmem>>, vector<2x32x64xf32>
    tpu.vector_store %arg11[%c0_45, %c0_46, %c0_47], %120 {strides = array<i32>} : memref<2x32x64xf32, #tpu.memory_space<vmem>>, vector<2x32x64xf32>,
    return
  }
  func.func @transform_0(%arg0: i32) -> i32 {
    %c0_i32 = arith.constant 0 : i32
    %c0_i32_0 = arith.constant 0 : i32
    return %c0_i32 : i32
  }
  func.func @transform_1(%arg0: i32) -> (i32, i32, i32) {
    %c0_i32 = arith.constant 0 : i32
    %c0_i32_0 = arith.constant 0 : i32
    %c0_i32_1 = arith.constant 0 : i32
    %c0_i32_2 = arith.constant 0 : i32
    return %c0_i32, %c0_i32_0, %c0_i32_1 : i32, i32, i32
  }
  func.func @transform_2(%arg0: i32) -> (i32, i32) {
    %c0_i32 = arith.constant 0 : i32
    %c0_i32_0 = arith.constant 0 : i32
    %c0_i32_1 = arith.constant 0 : i32
    return %c0_i32, %c0_i32_0 : i32, i32
  }
  func.func @transform_3(%arg0: i32) -> (i32, i32) {
    %c0_i32 = arith.constant 0 : i32
    %c0_i32_0 = arith.constant 0 : i32
    %c0_i32_1 = arith.constant 0 : i32
    return %c0_i32, %c0_i32_0 : i32, i32
  }
  func.func @transform_4(%arg0: i32) -> (i32, i32) {
    %c0_i32 = arith.constant 0 : i32
    %c0_i32_0 = arith.constant 0 : i32
    %c0_i32_1 = arith.constant 0 : i32
    return %c0_i32, %c0_i32_0 : i32, i32
  }
  func.func @transform_5(%arg0: i32) -> (i32, i32) {
    %c0_i32 = arith.constant 0 : i32
    %c0_i32_0 = arith.constant 0 : i32
    %c0_i32_1 = arith.constant 0 : i32
    return %c0_i32, %c0_i32_0 : i32, i32
  }
  func.func @transform_6(%arg0: i32) -> (i32, i32) {
    %c0_i32 = arith.constant 0 : i32
    %c0_i32_0 = arith.constant 0 : i32
    %c0_i32_1 = arith.constant 0 : i32
    return %c0_i32, %c0_i32_0 : i32, i32
  }
  func.func @transform_7(%arg0: i32) -> (i32, i32) {
    %c0_i32 = arith.constant 0 : i32
    %c0_i32_0 = arith.constant 0 : i32
    %c0_i32_1 = arith.constant 0 : i32
    return %c0_i32, %c0_i32_0 : i32, i32
  }
  func.func @transform_8(%arg0: i32) -> (i32, i32) {
    %c0_i32 = arith.constant 0 : i32
    %c0_i32_0 = arith.constant 0 : i32
    %c0_i32_1 = arith.constant 0 : i32
    return %c0_i32, %c0_i32_0 : i32, i32
  }
  func.func @transform_9(%arg0: i32) -> (i32, i32) {
    %c0_i32 = arith.constant 0 : i32
    %c0_i32_0 = arith.constant 0 : i32
    %c0_i32_1 = arith.constant 0 : i32
    return %c0_i32, %c0_i32_0 : i32, i32
  }
  func.func @transform_10(%arg0: i32) -> (i32, i32, i32) {
    %c0_i32 = arith.constant 0 : i32
    %c0_i32_0 = arith.constant 0 : i32
    %c0_i32_1 = arith.constant 0 : i32
    %c0_i32_2 = arith.constant 0 : i32
    return %c0_i32, %c0_i32_0, %c0_i32_1 : i32, i32, i32
  }
}

</mosaic_0001>

<llo_original>
// kernel: tpu_custom_call.1
$region0: #{tpu_custom_call.1}
  #allocation0 [shape = 'u32[]', space=smem, size = 0x4, offset = 0x4, fixed_abs, tag = 'smem constant byte address 0x4 - core index']
  #allocation1 [shape = 'u32[144,128]{1,0:T(1,128)}', space=vmem, size = 0x12000, scoped, tag = 'internal scratch']
  #allocation2 [shape = 'f32[1]{0:T(128)S(6)}', space=smem, size = 0x200, scoped, tag = 'scoped memory for tpu_custom_call.1']
  %s0 = inlined_call_operand.<no memory space> [shape: f32[1], index: 0, kind: input, shape index: {}]
  %s1 = inlined_call_operand.hbm [shape: f32[2,32,64], index: 1, kind: input, shape index: {}]
  %s2 = inlined_call_operand.hbm [shape: f32[32,32], index: 2, kind: input, shape index: {}]
  %s3 = inlined_call_operand.hbm [shape: f32[32,32], index: 3, kind: input, shape index: {}]
  %s4 = inlined_call_operand.hbm [shape: f32[32,32], index: 4, kind: input, shape index: {}]
  %s5 = inlined_call_operand.vmem [shape: f32[1,32], index: 5, kind: input, shape index: {}]
  %s6 = inlined_call_operand.vmem [shape: f32[1,32], index: 6, kind: input, shape index: {}]
  %s7 = inlined_call_operand.vmem [shape: f32[1,32], index: 7, kind: input, shape index: {}]
  %s8 = inlined_call_operand.hbm [shape: f32[32,32], index: 8, kind: input, shape index: {}]
  %s9 = inlined_call_operand.vmem [shape: f32[1,32], index: 9, kind: input, shape index: {}]
  %s10 = inlined_call_operand.hbm [shape: f32[2,32,64], index: 10, kind: output, shape index: {}]
  %s11 = sld [smem:[#allocation0]]
  $region70: #{tpu_custom_call.1} parent=0
    _
  %s13 = ssub.s32 1, %s11
  %s14 = scalar_select 0, %s13, %s11
  %15 = sst [smem:[#allocation2]] %s0
  $region1: #{tpu_custom_call.1} parent=0
    #allocation3 [shape = 'u8[32768]{0}', space=vmem, size = 0x8000, scoped, tag = 'input window, operand 1, single buffered']
    #allocation4 [shape = 's32[1]{0}', space=sflag, size = 0x4, scoped, tag = 'scoped memory for tpu_custom_call.1']
    #allocation5 [shape = 's32[1]{0}', space=sflag, size = 0x4, scoped, tag = 'scoped memory for tpu_custom_call.1']
    #allocation6 [shape = 'u8[16384]{0}', space=vmem, size = 0x4000, scoped, tag = 'input window, operand 2, single buffered']
    #allocation7 [shape = 's32[1]{0}', space=sflag, size = 0x4, scoped, tag = 'scoped memory for tpu_custom_call.1']
    #allocation8 [shape = 'u8[16384]{0}', space=vmem, size = 0x4000, scoped, tag = 'input window, operand 3, single buffered']
    #allocation9 [shape = 'u8[16384]{0}', space=vmem, size = 0x4000, scoped, tag = 'input window, operand 4, single buffered']
    #allocation10 [shape = 's32[1]{0}', space=sflag, size = 0x4, scoped, tag = 'scoped memory for tpu_custom_call.1']
    #allocation11 [shape = 'u8[16384]{0}', space=vmem, size = 0x4000, scoped, tag = 'input window, operand 8, single buffered']
    #allocation12 [shape = 'u8[32768]{0}', space=vmem, size = 0x8000, scoped, tag = 'output window, operand 0, single buffered']
    %16 = vsyncpa [#allocation4], 0
    %17 = vsyncpa [#allocation7], 0
    %18 = vsyncpa [#allocation10], 0
    %19 = vsyncpa [#allocation5], 0
    // Predicated region
    $region2: #{tpu_custom_call.1} parent=1 // pred_check
      _
    $region3: #{tpu_custom_call.1} parent=1 // pred_check_branch
      %21 = sbr.rel (0) target = $region5
    $region4: #{tpu_custom_call.1} parent=1 // pred_region
      _
    $region5: #{tpu_custom_call.1} parent=1 // pred_fallthru
      _
    // Predicated region
    $region6: #{tpu_custom_call.1} parent=1 // pred_check
      _
    $region7: #{tpu_custom_call.1} parent=1 // pred_check_branch
      %23 = sbr.rel (0) target = $region9
    $region8: #{tpu_custom_call.1} parent=1 // pred_region
      %s25 = ssub.s32 1024, 1024
      %26 = vsyncadd [#allocation4], %s25
      %s27 = sshll.u32 [#allocation3], 4
      %s28 = int_to_ptr.vmem [resolvable:$true] %s27
      %33 = dma.hbm_to_vmem [thread:$0]  %s1, 1024, %s28, [#allocation4], 128, 128, 8
    $region9: #{tpu_custom_call.1} parent=1 // pred_fallthru
      _
    // Predicated region
    $region10: #{tpu_custom_call.1} parent=1 // pred_check
      _
    $region11: #{tpu_custom_call.1} parent=1 // pred_check_branch
      %35 = sbr.rel (0) target = $region13
    $region12: #{tpu_custom_call.1} parent=1 // pred_region
      %s37 = ssub.s32 512, 512
      %38 = vsyncadd [#allocation7], %s37
      %s39 = sshll.u32 [#allocation6], 4
      %s40 = int_to_ptr.vmem [resolvable:$true] %s39
      %45 = dma.hbm_to_vmem [thread:$0]  %s2, 512, %s40, [#allocation7], 128, 128, 8
    $region13: #{tpu_custom_call.1} parent=1 // pred_fallthru
      _
    // Predicated region
    $region14: #{tpu_custom_call.1} parent=1 // pred_check
      _
    $region15: #{tpu_custom_call.1} parent=1 // pred_check_branch
      %47 = sbr.rel (0) target = $region17
    $region16: #{tpu_custom_call.1} parent=1 // pred_region
      %s49 = ssub.s32 512, 512
      %50 = vsyncadd [#allocation7], %s49
      %s51 = sshll.u32 [#allocation8], 4
      %s52 = int_to_ptr.vmem [resolvable:$true] %s51
      %57 = dma.hbm_to_vmem [thread:$0]  %s3, 512, %s52, [#allocation7], 128, 128, 8
    $region17: #{tpu_custom_call.1} parent=1 // pred_fallthru
      _
    // Predicated region
    $region18: #{tpu_custom_call.1} parent=1 // pred_check
      _
    $region19: #{tpu_custom_call.1} parent=1 // pred_check_branch
      %59 = sbr.rel (0) target = $region21
    $region20: #{tpu_custom_call.1} parent=1 // pred_region
      %s61 = ssub.s32 512, 512
      %62 = vsyncadd [#allocation10], %s61
      %s63 = sshll.u32 [#allocation9], 4
      %s64 = int_to_ptr.vmem [resolvable:$true] %s63
      %69 = dma.hbm_to_vmem [thread:$0]  %s4, 512, %s64, [#allocation10], 128, 128, 8
    $region21: #{tpu_custom_call.1} parent=1 // pred_fallthru
      _
    // Predicated region
    $region22: #{tpu_custom_call.1} parent=1 // pred_check
      _
    $region23: #{tpu_custom_call.1} parent=1 // pred_check_branch
      %71 = sbr.rel (0) target = $region25
    $region24: #{tpu_custom_call.1} parent=1 // pred_region
      _
    $region25: #{tpu_custom_call.1} parent=1 // pred_fallthru
      _
    // Predicated region
    $region26: #{tpu_custom_call.1} parent=1 // pred_check
      _
    $region27: #{tpu_custom_call.1} parent=1 // pred_check_branch
      %73 = sbr.rel (0) target = $region29
    $region28: #{tpu_custom_call.1} parent=1 // pred_region
      _
    $region29: #{tpu_custom_call.1} parent=1 // pred_fallthru
      _
    // Predicated region
    $region30: #{tpu_custom_call.1} parent=1 // pred_check
      _
    $region31: #{tpu_custom_call.1} parent=1 // pred_check_branch
      %75 = sbr.rel (0) target = $region33
    $region32: #{tpu_custom_call.1} parent=1 // pred_region
      _
    $region33: #{tpu_custom_call.1} parent=1 // pred_fallthru
      _
    // Predicated region
    $region34: #{tpu_custom_call.1} parent=1 // pred_check
      _
    $region35: #{tpu_custom_call.1} parent=1 // pred_check_branch
      %77 = sbr.rel (0) target = $region37
    $region36: #{tpu_custom_call.1} parent=1 // pred_region
      %s79 = ssub.s32 512, 512
      %80 = vsyncadd [#allocation10], %s79
      %s81 = sshll.u32 [#allocation11], 4
      %s82 = int_to_ptr.vmem [resolvable:$true] %s81
      %87 = dma.hbm_to_vmem [thread:$0]  %s8, 512, %s82, [#allocation10], 128, 128, 8
    $region37: #{tpu_custom_call.1} parent=1 // pred_fallthru
      _
    // Predicated region
    $region38: #{tpu_custom_call.1} parent=1 // pred_check
      _
    $region39: #{tpu_custom_call.1} parent=1 // pred_check_branch
      %89 = sbr.rel (0) target = $region41
    $region40: #{tpu_custom_call.1} parent=1 // pred_region
      _
    $region41: #{tpu_custom_call.1} parent=1 // pred_fallthru
      _
    // Predicated region
    $region42: #{tpu_custom_call.1} parent=1 // pred_check
      _
    $region43: #{tpu_custom_call.1} parent=1 // pred_check_branch
      %91 = sbr.rel (0) target = $region45
    $region44: #{tpu_custom_call.1} parent=1 // pred_region
      %92 = dma.done [#allocation4], 1024
    $region45: #{tpu_custom_call.1} parent=1 // pred_fallthru
      _
    // Predicated region
    $region46: #{tpu_custom_call.1} parent=1 // pred_check
      _
    $region47: #{tpu_custom_call.1} parent=1 // pred_check_branch
      %94 = sbr.rel (0) target = $region49
    $region48: #{tpu_custom_call.1} parent=1 // pred_region
      %95 = dma.done [#allocation7], 512
    $region49: #{tpu_custom_call.1} parent=1 // pred_fallthru
      _
    // Predicated region
    $region50: #{tpu_custom_call.1} parent=1 // pred_check
      _
    $region51: #{tpu_custom_call.1} parent=1 // pred_check_branch
      %97 = sbr.rel (0) target = $region53
    $region52: #{tpu_custom_call.1} parent=1 // pred_region
      %98 = dma.done [#allocation7], 512
    $region53: #{tpu_custom_call.1} parent=1 // pred_fallthru
      _
    // Predicated region
    $region54: #{tpu_custom_call.1} parent=1 // pred_check
      _
    $region55: #{tpu_custom_call.1} parent=1 // pred_check_branch
      %100 = sbr.rel (0) target = $region57
    $region56: #{tpu_custom_call.1} parent=1 // pred_region
      %101 = dma.done [#allocation10], 512
    $region57: #{tpu_custom_call.1} parent=1 // pred_fallthru
      _
    // Predicated region
    $region58: #{tpu_custom_call.1} parent=1 // pred_check
      _
    $region59: #{tpu_custom_call.1} parent=1 // pred_check_branch
      %103 = sbr.rel (0) target = $region61
    $region60: #{tpu_custom_call.1} parent=1 // pred_region
      %104 = dma.done [#allocation10], 512
    $region61: #{tpu_custom_call.1} parent=1 // pred_fallthru
      _
    %v106 = vld [vmem:[#allocation3] sm:$0xff]
    %v107 = vld [vmem:[#allocation3 + $0x8] sm:$0xff]
    %v108 = vld [vmem:[#allocation3 + $0x10] sm:$0xff]
    %v109 = vld [vmem:[#allocation3 + $0x18] sm:$0xff]
    %v110 = vld [vmem:[#allocation3 + $0x20] sm:$0xff]
    %v111 = vld [vmem:[#allocation3 + $0x28] sm:$0xff]
    %v112 = vld [vmem:[#allocation3 + $0x30] sm:$0xff]
    %v113 = vld [vmem:[#allocation3 + $0x38] sm:$0xff]
    %v114 = vpack.c.bf16 %v107, %v106
    %v115 = vpack.c.bf16 %v109, %v108
    %v116 = vpack.c.bf16 %v111, %v110
    %v117 = vpack.c.bf16 %v113, %v112
    %118 = vxpose.xlu0.c.b16.start [1/8] %v114, 128
    %119 = vxpose.xlu0.c.b16.cont [2/8] %v115, 128
    %120 = vxpose.xlu0.c.b16.cont [3/8] 0, 128
    %121 = vxpose.xlu0.c.b16.cont [4/8] 0, 128
    %122 = vxpose.xlu0.c.b16.cont [5/8] 0, 128
    %123 = vxpose.xlu0.c.b16.cont [6/8] 0, 128
    %124 = vxpose.xlu0.c.b16.cont [7/8] 0, 128
    %125 = vxpose.xlu0.c.b16.end [8/8] 0, 128
    %v126 = vpop.trf.xlu0
    %v127 = vpop.trf.xlu0
    %v128 = vpop.trf.xlu0
    %v129 = vpop.trf.xlu0
    %v130 = vpop.trf.xlu0
    %v131 = vpop.trf.xlu0
    %v132 = vpop.trf.xlu0
    %v133 = vpop.trf.xlu0
    %134 = vxpose.xlu0.c.b16.start [1/8] %v116, 128
    %135 = vxpose.xlu0.c.b16.cont [2/8] %v117, 128
    %136 = vxpose.xlu0.c.b16.cont [3/8] 0, 128
    %137 = vxpose.xlu0.c.b16.cont [4/8] 0, 128
    %138 = vxpose.xlu0.c.b16.cont [5/8] 0, 128
    %139 = vxpose.xlu0.c.b16.cont [6/8] 0, 128
    %140 = vxpose.xlu0.c.b16.cont [7/8] 0, 128
    %141 = vxpose.xlu0.c.b16.end [8/8] 0, 128
    %v142 = vpop.trf.xlu0
    %v143 = vpop.trf.xlu0
    %v144 = vpop.trf.xlu0
    %v145 = vpop.trf.xlu0
    %v146 = vpop.trf.xlu0
    %v147 = vpop.trf.xlu0
    %v148 = vpop.trf.xlu0
    %v149 = vpop.trf.xlu0
    %v150 = vld [vmem:[#allocation6] sm:$0xff]
    %v151 = vld [vmem:[#allocation6 + $0x8] sm:$0xff]
    %v152 = vld [vmem:[#allocation6 + $0x10] sm:$0xff]
    %v153 = vld [vmem:[#allocation6 + $0x18] sm:$0xff]
    %v154 = vpack.c.bf16 %v151, %v150
    %v155 = vpack.c.bf16 %v153, %v152
    %v156 = vld [vmem:[#allocation8] sm:$0xff]
    %v157 = vld [vmem:[#allocation8 + $0x8] sm:$0xff]
    %v158 = vld [vmem:[#allocation8 + $0x10] sm:$0xff]
    %v159 = vld [vmem:[#allocation8 + $0x18] sm:$0xff]
    %v160 = vpack.c.bf16 %v157, %v156
    %v161 = vpack.c.bf16 %v159, %v158
    %v162 = vld [vmem:[#allocation9] sm:$0xff]
    %v163 = vld [vmem:[#allocation9 + $0x8] sm:$0xff]
    %v164 = vld [vmem:[#allocation9 + $0x10] sm:$0xff]
    %v165 = vld [vmem:[#allocation9 + $0x18] sm:$0xff]
    %v166 = vpack.c.bf16 %v163, %v162
    %v167 = vpack.c.bf16 %v165, %v164
    %v168 = vld [vmem:[#allocation11] sm:$0xff]
    %v169 = vld [vmem:[#allocation11 + $0x8] sm:$0xff]
    %v170 = vld [vmem:[#allocation11 + $0x10] sm:$0xff]
    %v171 = vld [vmem:[#allocation11 + $0x18] sm:$0xff]
    %v172 = vpack.c.bf16 %v169, %v168
    %v173 = vpack.c.bf16 %v171, %v170
    %v174 = vld [vmem:[%s5] sm:$0x1]
    %v176 = vlaneseq
    %v177 = vshrl.u32 %v176, 7
    %v178 = vsub.s32 0, %v177
    %v179 = vrot.slane %v174, %v178
    %vm181 = vcmask 261120
    %v183 = vsel %vm181, %v126, 0
    %v186 = vsel %vm181, %v127, 0
    %v189 = vsel %vm181, %v128, 0
    %v192 = vsel %vm181, %v129, 0
    %v195 = vsel %vm181, %v142, 0
    %v198 = vsel %vm181, %v143, 0
    %v201 = vsel %vm181, %v144, 0
    %v204 = vsel %vm181, %v145, 0
    %v207 = vsel %vm181, %v154, 0
    %v210 = vsel %vm181, %v155, 0
    %212 = vmatprep.subr.bf16.mxu0 0
    %213 = vmatpush1.bf16.xpose.msra.mxu0 0
    %214 = vmatprep.subr.bf16.mxu0 0
    %215 = vmatpush1.bf16.xpose.msra.mxu0 0
    %216 = vmatprep.subr.bf16.mxu0 0
    %217 = vmatpush1.bf16.xpose.msra.mxu0 0
    %218 = vmatprep.subr.bf16.mxu0 0
    %219 = vmatpush1.bf16.xpose.msra.mxu0 0
    %220 = vmatprep.subr.bf16.mxu0 0
    %221 = vmatpush1.bf16.xpose.msra.mxu0 0
    %222 = vmatprep.subr.bf16.mxu0 0
    %223 = vmatpush1.bf16.xpose.msra.mxu0 0
    %224 = vmatprep.subr.bf16.mxu0 0
    %225 = vmatpush1.bf16.xpose.msra.mxu0 %v210
    %226 = vmatprep.subr.bf16.mxu0 0
    %227 = vmatpush1.bf16.xpose.msra.mxu0 %v207
    %228 = vmatprep.subr.bf16.mxu0 0
    %229 = vmatpush2.bf16.xpose.msra.mxu0 0
    %230 = vmatprep.subr.bf16.mxu0 0
    %231 = vmatpush2.bf16.xpose.msra.mxu0 0
    %232 = vmatprep.subr.bf16.mxu0 0
    %233 = vmatpush2.bf16.xpose.msra.mxu0 0
    %234 = vmatprep.subr.bf16.mxu0 0
    %235 = vmatpush2.bf16.xpose.msra.mxu0 0
    %236 = vmatprep.subr.bf16.mxu0 0
    %237 = vmatpush2.bf16.xpose.msra.mxu0 0
    %238 = vmatprep.subr.bf16.mxu0 0
    %239 = vmatpush2.bf16.xpose.msra.mxu0 0
    %240 = vmatprep.subr.bf16.mxu0 0
    %241 = vmatpush2.bf16.xpose.msra.mxu0 0
    %242 = vmatprep.subr.bf16.mxu0 0
    %243 = vmatpush2.bf16.xpose.msra.mxu0 0
    %244 = vmatprep.mubr.bf16.mxu0 0
    %245 = vmatmul.mubr.bf16.gmra.mxu0 %v183
    %v246 = vpop.f32.mrf.mxu0
    %v247 = vadd.f32 %v179, %v246
    %v248 = vpop.f32.mrf.mxu0
    %v249 = vpop.f32.mrf.mxu0
    %v250 = vadd.f32 %v179, %v249
    %v251 = vpop.f32.mrf.mxu0
    %252 = vmatprep.mubr.bf16.mxu0 0
    %253 = vmatmul.mubr.bf16.gmra.mxu0 %v186
    %v254 = vpop.f32.mrf.mxu0
    %v255 = vadd.f32 %v179, %v254
    %v256 = vpop.f32.mrf.mxu0
    %v257 = vpop.f32.mrf.mxu0
    %v258 = vadd.f32 %v179, %v257
    %v259 = vpop.f32.mrf.mxu0
    %260 = vmatprep.mubr.bf16.mxu0 0
    %261 = vmatmul.mubr.bf16.gmra.mxu0 %v189
    %v262 = vpop.f32.mrf.mxu0
    %v263 = vadd.f32 %v179, %v262
    %v264 = vpop.f32.mrf.mxu0
    %v265 = vpop.f32.mrf.mxu0
    %v266 = vadd.f32 %v179, %v265
    %v267 = vpop.f32.mrf.mxu0
    %268 = vmatprep.mubr.bf16.mxu0 0
    %269 = vmatmul.mubr.bf16.gmra.mxu0 %v192
    %v270 = vpop.f32.mrf.mxu0
    %v271 = vadd.f32 %v179, %v270
    %v272 = vpop.f32.mrf.mxu0
    %v273 = vpop.f32.mrf.mxu0
    %v274 = vadd.f32 %v179, %v273
    %v275 = vpop.f32.mrf.mxu0
    %276 = vmatprep.mubr.bf16.mxu0 0
    %277 = vmatmul.mubr.bf16.gmra.mxu0 %v195
    %v278 = vpop.f32.mrf.mxu0
    %v279 = vadd.f32 %v179, %v278
    %v280 = vpop.f32.mrf.mxu0
    %v281 = vpop.f32.mrf.mxu0
    %v282 = vadd.f32 %v179, %v281
    %v283 = vpop.f32.mrf.mxu0
    %284 = vmatprep.mubr.bf16.mxu0 0
    %285 = vmatmul.mubr.bf16.gmra.mxu0 %v198
    %v286 = vpop.f32.mrf.mxu0
    %v287 = vadd.f32 %v179, %v286
    %v288 = vpop.f32.mrf.mxu0
    %v289 = vpop.f32.mrf.mxu0
    %v290 = vadd.f32 %v179, %v289
    %v291 = vpop.f32.mrf.mxu0
    %292 = vmatprep.mubr.bf16.mxu0 0
    %293 = vmatmul.mubr.bf16.gmra.mxu0 %v201
    %v294 = vpop.f32.mrf.mxu0
    %v295 = vadd.f32 %v179, %v294
    %v296 = vpop.f32.mrf.mxu0
    %v297 = vpop.f32.mrf.mxu0
    %v298 = vadd.f32 %v179, %v297
    %v299 = vpop.f32.mrf.mxu0
    %300 = vmatprep.mubr.bf16.mxu0 0
    %301 = vmatmul.mubr.bf16.gmra.mxu0 %v204
    %v302 = vpop.f32.mrf.mxu0
    %v303 = vadd.f32 %v179, %v302
    %v304 = vpop.f32.mrf.mxu0
    %v305 = vpop.f32.mrf.mxu0
    %v306 = vadd.f32 %v179, %v305
    %v307 = vpop.f32.mrf.mxu0
    %308 = vdwg.mxu0
    %v309 = vld [vmem:[%s6] sm:$0x1]
    %v311 = vlaneseq
    %v312 = vshrl.u32 %v311, 7
    %v313 = vsub.s32 0, %v312
    %v314 = vrot.slane %v309, %v313
    %v317 = vsel %vm181, %v160, 0
    %v320 = vsel %vm181, %v161, 0
    %322 = vmatprep.subr.bf16.mxu0 0
    %323 = vmatpush1.bf16.xpose.msra.mxu0 0
    %324 = vmatprep.subr.bf16.mxu0 0
    %325 = vmatpush1.bf16.xpose.msra.mxu0 0
    %326 = vmatprep.subr.bf16.mxu0 0
    %327 = vmatpush1.bf16.xpose.msra.mxu0 0
    %328 = vmatprep.subr.bf16.mxu0 0
    %329 = vmatpush1.bf16.xpose.msra.mxu0 0
    %330 = vmatprep.subr.bf16.mxu0 0
    %331 = vmatpush1.bf16.xpose.msra.mxu0 0
    %332 = vmatprep.subr.bf16.mxu0 0
    %333 = vmatpush1.bf16.xpose.msra.mxu0 0
    %334 = vmatprep.subr.bf16.mxu0 0
    %335 = vmatpush1.bf16.xpose.msra.mxu0 %v320
    %336 = vmatprep.subr.bf16.mxu0 0
    %337 = vmatpush1.bf16.xpose.msra.mxu0 %v317
    %338 = vmatprep.subr.bf16.mxu0 0
    %339 = vmatpush2.bf16.xpose.msra.mxu0 0
    %340 = vmatprep.subr.bf16.mxu0 0
    %341 = vmatpush2.bf16.xpose.msra.mxu0 0
    %342 = vmatprep.subr.bf16.mxu0 0
    %343 = vmatpush2.bf16.xpose.msra.mxu0 0
    %344 = vmatprep.subr.bf16.mxu0 0
    %345 = vmatpush2.bf16.xpose.msra.mxu0 0
    %346 = vmatprep.subr.bf16.mxu0 0
    %347 = vmatpush2.bf16.xpose.msra.mxu0 0
    %348 = vmatprep.subr.bf16.mxu0 0
    %349 = vmatpush2.bf16.xpose.msra.mxu0 0
    %350 = vmatprep.subr.bf16.mxu0 0
    %351 = vmatpush2.bf16.xpose.msra.mxu0 0
    %352 = vmatprep.subr.bf16.mxu0 0
    %353 = vmatpush2.bf16.xpose.msra.mxu0 0
    %354 = vmatprep.mubr.bf16.mxu0 0
    %355 = vmatmul.mubr.bf16.gmra.mxu0 %v183
    %v356 = vpop.f32.mrf.mxu0
    %v357 = vadd.f32 %v314, %v356
    %v358 = vpop.f32.mrf.mxu0
    %v359 = vpop.f32.mrf.mxu0
    %v360 = vadd.f32 %v314, %v359
    %v361 = vpop.f32.mrf.mxu0
    %362 = vmatprep.mubr.bf16.mxu0 0
    %363 = vmatmul.mubr.bf16.gmra.mxu0 %v186
    %v364 = vpop.f32.mrf.mxu0
    %v365 = vadd.f32 %v314, %v364
    %v366 = vpop.f32.mrf.mxu0
    %v367 = vpop.f32.mrf.mxu0
    %v368 = vadd.f32 %v314, %v367
    %v369 = vpop.f32.mrf.mxu0
    %370 = vmatprep.mubr.bf16.mxu0 0
    %371 = vmatmul.mubr.bf16.gmra.mxu0 %v189
    %v372 = vpop.f32.mrf.mxu0
    %v373 = vadd.f32 %v314, %v372
    %v374 = vpop.f32.mrf.mxu0
    %v375 = vpop.f32.mrf.mxu0
    %v376 = vadd.f32 %v314, %v375
    %v377 = vpop.f32.mrf.mxu0
    %378 = vmatprep.mubr.bf16.mxu0 0
    %379 = vmatmul.mubr.bf16.gmra.mxu0 %v192
    %v380 = vpop.f32.mrf.mxu0
    %v381 = vadd.f32 %v314, %v380
    %v382 = vpop.f32.mrf.mxu0
    %v383 = vpop.f32.mrf.mxu0
    %v384 = vadd.f32 %v314, %v383
    %v385 = vpop.f32.mrf.mxu0
    %386 = vmatprep.mubr.bf16.mxu0 0
    %387 = vmatmul.mubr.bf16.gmra.mxu0 %v195
    %v388 = vpop.f32.mrf.mxu0
    %v389 = vadd.f32 %v314, %v388
    %v390 = vpop.f32.mrf.mxu0
    %v391 = vpop.f32.mrf.mxu0
    %v392 = vadd.f32 %v314, %v391
    %v393 = vpop.f32.mrf.mxu0
    %394 = vmatprep.mubr.bf16.mxu0 0
    %395 = vmatmul.mubr.bf16.gmra.mxu0 %v198
    %v396 = vpop.f32.mrf.mxu0
    %v397 = vadd.f32 %v314, %v396
    %v398 = vpop.f32.mrf.mxu0
    %v399 = vpop.f32.mrf.mxu0
    %v400 = vadd.f32 %v314, %v399
    %v401 = vpop.f32.mrf.mxu0
    %402 = vmatprep.mubr.bf16.mxu0 0
    %403 = vmatmul.mubr.bf16.gmra.mxu0 %v201
    %v404 = vpop.f32.mrf.mxu0
    %v405 = vadd.f32 %v314, %v404
    %v406 = vpop.f32.mrf.mxu0
    %v407 = vpop.f32.mrf.mxu0
    %v408 = vadd.f32 %v314, %v407
    %v409 = vpop.f32.mrf.mxu0
    %410 = vmatprep.mubr.bf16.mxu0 0
    %411 = vmatmul.mubr.bf16.gmra.mxu0 %v204
    %v412 = vpop.f32.mrf.mxu0
    %v413 = vadd.f32 %v314, %v412
    %v414 = vpop.f32.mrf.mxu0
    %v415 = vpop.f32.mrf.mxu0
    %v416 = vadd.f32 %v314, %v415
    %v417 = vpop.f32.mrf.mxu0
    %418 = vdwg.mxu0
    %v419 = vld [vmem:[%s7] sm:$0x1]
    %v421 = vlaneseq
    %v422 = vshrl.u32 %v421, 7
    %v423 = vsub.s32 0, %v422
    %v424 = vrot.slane %v419, %v423
    %v427 = vsel %vm181, %v166, 0
    %v430 = vsel %vm181, %v167, 0
    %432 = vmatprep.subr.bf16.mxu0 0
    %433 = vmatpush1.bf16.xpose.msra.mxu0 0
    %434 = vmatprep.subr.bf16.mxu0 0
    %435 = vmatpush1.bf16.xpose.msra.mxu0 0
    %436 = vmatprep.subr.bf16.mxu0 0
    %437 = vmatpush1.bf16.xpose.msra.mxu0 0
    %438 = vmatprep.subr.bf16.mxu0 0
    %439 = vmatpush1.bf16.xpose.msra.mxu0 0
    %440 = vmatprep.subr.bf16.mxu0 0
    %441 = vmatpush1.bf16.xpose.msra.mxu0 0
    %442 = vmatprep.subr.bf16.mxu0 0
    %443 = vmatpush1.bf16.xpose.msra.mxu0 0
    %444 = vmatprep.subr.bf16.mxu0 0
    %445 = vmatpush1.bf16.xpose.msra.mxu0 %v430
    %446 = vmatprep.subr.bf16.mxu0 0
    %447 = vmatpush1.bf16.xpose.msra.mxu0 %v427
    %448 = vmatprep.subr.bf16.mxu0 0
    %449 = vmatpush2.bf16.xpose.msra.mxu0 0
    %450 = vmatprep.subr.bf16.mxu0 0
    %451 = vmatpush2.bf16.xpose.msra.mxu0 0
    %452 = vmatprep.subr.bf16.mxu0 0
    %453 = vmatpush2.bf16.xpose.msra.mxu0 0
    %454 = vmatprep.subr.bf16.mxu0 0
    %455 = vmatpush2.bf16.xpose.msra.mxu0 0
    %456 = vmatprep.subr.bf16.mxu0 0
    %457 = vmatpush2.bf16.xpose.msra.mxu0 0
    %458 = vmatprep.subr.bf16.mxu0 0
    %459 = vmatpush2.bf16.xpose.msra.mxu0 0
    %460 = vmatprep.subr.bf16.mxu0 0
    %461 = vmatpush2.bf16.xpose.msra.mxu0 0
    %462 = vmatprep.subr.bf16.mxu0 0
    %463 = vmatpush2.bf16.xpose.msra.mxu0 0
    %464 = vmatprep.mubr.bf16.mxu0 0
    %465 = vmatmul.mubr.bf16.gmra.mxu0 %v183
    %v466 = vpop.f32.mrf.mxu0
    %v467 = vadd.f32 %v424, %v466
    %v468 = vpop.f32.mrf.mxu0
    %v469 = vpop.f32.mrf.mxu0
    %v470 = vadd.f32 %v424, %v469
    %v471 = vpop.f32.mrf.mxu0
    %472 = vmatprep.mubr.bf16.mxu0 0
    %473 = vmatmul.mubr.bf16.gmra.mxu0 %v186
    %v474 = vpop.f32.mrf.mxu0
    %v475 = vadd.f32 %v424, %v474
    %v476 = vpop.f32.mrf.mxu0
    %v477 = vpop.f32.mrf.mxu0
    %v478 = vadd.f32 %v424, %v477
    %v479 = vpop.f32.mrf.mxu0
    %480 = vmatprep.mubr.bf16.mxu0 0
    %481 = vmatmul.mubr.bf16.gmra.mxu0 %v189
    %v482 = vpop.f32.mrf.mxu0
    %v483 = vadd.f32 %v424, %v482
    %v484 = vpop.f32.mrf.mxu0
    %v485 = vpop.f32.mrf.mxu0
    %v486 = vadd.f32 %v424, %v485
    %v487 = vpop.f32.mrf.mxu0
    %488 = vmatprep.mubr.bf16.mxu0 0
    %489 = vmatmul.mubr.bf16.gmra.mxu0 %v192
    %v490 = vpop.f32.mrf.mxu0
    %v491 = vadd.f32 %v424, %v490
    %v492 = vpop.f32.mrf.mxu0
    %v493 = vpop.f32.mrf.mxu0
    %v494 = vadd.f32 %v424, %v493
    %v495 = vpop.f32.mrf.mxu0
    %496 = vmatprep.mubr.bf16.mxu0 0
    %497 = vmatmul.mubr.bf16.gmra.mxu0 %v195
    %v498 = vpop.f32.mrf.mxu0
    %v499 = vadd.f32 %v424, %v498
    %v500 = vpop.f32.mrf.mxu0
    %v501 = vpop.f32.mrf.mxu0
    %v502 = vadd.f32 %v424, %v501
    %v503 = vpop.f32.mrf.mxu0
    %504 = vmatprep.mubr.bf16.mxu0 0
    %505 = vmatmul.mubr.bf16.gmra.mxu0 %v198
    %v506 = vpop.f32.mrf.mxu0
    %v507 = vadd.f32 %v424, %v506
    %v508 = vpop.f32.mrf.mxu0
    %v509 = vpop.f32.mrf.mxu0
    %v510 = vadd.f32 %v424, %v509
    %v511 = vpop.f32.mrf.mxu0
    %512 = vmatprep.mubr.bf16.mxu0 0
    %513 = vmatmul.mubr.bf16.gmra.mxu0 %v201
    %v514 = vpop.f32.mrf.mxu0
    %v515 = vadd.f32 %v424, %v514
    %v516 = vpop.f32.mrf.mxu0
    %v517 = vpop.f32.mrf.mxu0
    %v518 = vadd.f32 %v424, %v517
    %v519 = vpop.f32.mrf.mxu0
    %520 = vmatprep.mubr.bf16.mxu0 0
    %521 = vmatmul.mubr.bf16.gmra.mxu0 %v204
    %v522 = vpop.f32.mrf.mxu0
    %v523 = vadd.f32 %v424, %v522
    %v524 = vpop.f32.mrf.mxu0
    %v525 = vpop.f32.mrf.mxu0
    %v526 = vadd.f32 %v424, %v525
    %v527 = vpop.f32.mrf.mxu0
    %528 = vdwg.mxu0
    %v529 = vpack.c.bf16 %v250, %v247
    %v530 = vpack.c.bf16 %v258, %v255
    %v531 = vpack.c.bf16 %v266, %v263
    %v532 = vpack.c.bf16 %v274, %v271
    %v533 = vpack.c.bf16 %v282, %v279
    %v534 = vpack.c.bf16 %v290, %v287
    %v535 = vpack.c.bf16 %v298, %v295
    %v536 = vpack.c.bf16 %v306, %v303
    %v537 = vpack.c.bf16 %v360, %v357
    %v538 = vpack.c.bf16 %v368, %v365
    %v539 = vpack.c.bf16 %v376, %v373
    %v540 = vpack.c.bf16 %v384, %v381
    %v541 = vpack.c.bf16 %v392, %v389
    %v542 = vpack.c.bf16 %v400, %v397
    %v543 = vpack.c.bf16 %v408, %v405
    %v544 = vpack.c.bf16 %v416, %v413
    %v545 = vpack.c.bf16 %v470, %v467
    %v546 = vpack.c.bf16 %v478, %v475
    %v547 = vpack.c.bf16 %v486, %v483
    %v548 = vpack.c.bf16 %v494, %v491
    %v549 = vpack.c.bf16 %v502, %v499
    %v550 = vpack.c.bf16 %v510, %v507
    %v551 = vpack.c.bf16 %v518, %v515
    %v552 = vpack.c.bf16 %v526, %v523
    %vm553 = vcmask 64512
    %v555 = vsel %vm553, %v529, 0
    %v558 = vsel %vm553, %v530, 0
    %v561 = vsel %vm553, %v531, 0
    %v564 = vsel %vm553, %v532, 0
    %v567 = vsel %vm553, %v537, 0
    %v570 = vsel %vm553, %v538, 0
    %v573 = vsel %vm553, %v539, 0
    %v576 = vsel %vm553, %v540, 0
    %578 = vmatprep.subr.bf16.mxu0 0
    %579 = vmatpush1.bf16.xpose.msra.mxu0 0
    %580 = vmatprep.subr.bf16.mxu0 0
    %581 = vmatpush1.bf16.xpose.msra.mxu0 0
    %582 = vmatprep.subr.bf16.mxu0 0
    %583 = vmatpush1.bf16.xpose.msra.mxu0 0
    %584 = vmatprep.subr.bf16.mxu0 0
    %585 = vmatpush1.bf16.xpose.msra.mxu0 0
    %586 = vmatprep.subr.bf16.mxu0 0
    %587 = vmatpush1.bf16.xpose.msra.mxu0 %v576
    %588 = vmatprep.subr.bf16.mxu0 0
    %589 = vmatpush1.bf16.xpose.msra.mxu0 %v573
    %590 = vmatprep.subr.bf16.mxu0 0
    %591 = vmatpush1.bf16.xpose.msra.mxu0 %v570
    %592 = vmatprep.subr.bf16.mxu0 0
    %593 = vmatpush1.bf16.xpose.msra.mxu0 %v567
    %594 = vmatprep.subr.bf16.mxu0 0
    %595 = vmatpush2.bf16.xpose.msra.mxu0 0
    %596 = vmatprep.subr.bf16.mxu0 0
    %597 = vmatpush2.bf16.xpose.msra.mxu0 0
    %598 = vmatprep.subr.bf16.mxu0 0
    %599 = vmatpush2.bf16.xpose.msra.mxu0 0
    %600 = vmatprep.subr.bf16.mxu0 0
    %601 = vmatpush2.bf16.xpose.msra.mxu0 0
    %602 = vmatprep.subr.bf16.mxu0 0
    %603 = vmatpush2.bf16.xpose.msra.mxu0 0
    %604 = vmatprep.subr.bf16.mxu0 0
    %605 = vmatpush2.bf16.xpose.msra.mxu0 0
    %606 = vmatprep.subr.bf16.mxu0 0
    %607 = vmatpush2.bf16.xpose.msra.mxu0 0
    %608 = vmatprep.subr.bf16.mxu0 0
    %609 = vmatpush2.bf16.xpose.msra.mxu0 0
    %610 = vmatprep.mubr.bf16.mxu0 0
    %611 = vmatmul.mubr.bf16.gmra.mxu0 %v555
    %v612 = vpop.f32.mrf.mxu0
    %v613 = vadd.f32 0.0, %v612
    %v614 = vpop.f32.mrf.mxu0
    %v615 = vpop.f32.mrf.mxu0
    %v616 = vadd.f32 0.0, %v615
    %v617 = vpop.f32.mrf.mxu0
    %618 = vmatprep.mubr.bf16.mxu0 0
    %619 = vmatmul.mubr.bf16.gmra.mxu0 %v558
    %v620 = vpop.f32.mrf.mxu0
    %v621 = vadd.f32 0.0, %v620
    %v622 = vpop.f32.mrf.mxu0
    %v623 = vpop.f32.mrf.mxu0
    %v624 = vadd.f32 0.0, %v623
    %v625 = vpop.f32.mrf.mxu0
    %626 = vmatprep.mubr.bf16.mxu0 0
    %627 = vmatmul.mubr.bf16.gmra.mxu0 %v561
    %v628 = vpop.f32.mrf.mxu0
    %v629 = vadd.f32 0.0, %v628
    %v630 = vpop.f32.mrf.mxu0
    %v631 = vpop.f32.mrf.mxu0
    %v632 = vadd.f32 0.0, %v631
    %v633 = vpop.f32.mrf.mxu0
    %634 = vmatprep.mubr.bf16.mxu0 0
    %635 = vmatmul.mubr.bf16.gmra.mxu0 %v564
    %v636 = vpop.f32.mrf.mxu0
    %v637 = vadd.f32 0.0, %v636
    %v638 = vpop.f32.mrf.mxu0
    %v639 = vpop.f32.mrf.mxu0
    %v640 = vadd.f32 0.0, %v639
    %v641 = vpop.f32.mrf.mxu0
    %642 = vdwg.mxu0
    %v644 = vsel %vm553, %v533, 0
    %v647 = vsel %vm553, %v534, 0
    %v650 = vsel %vm553, %v535, 0
    %v653 = vsel %vm553, %v536, 0
    %v656 = vsel %vm553, %v541, 0
    %v659 = vsel %vm553, %v542, 0
    %v662 = vsel %vm553, %v543, 0
    %v665 = vsel %vm553, %v544, 0
    %667 = vmatprep.subr.bf16.mxu0 0
    %668 = vmatpush1.bf16.xpose.msra.mxu0 0
    %669 = vmatprep.subr.bf16.mxu0 0
    %670 = vmatpush1.bf16.xpose.msra.mxu0 0
    %671 = vmatprep.subr.bf16.mxu0 0
    %672 = vmatpush1.bf16.xpose.msra.mxu0 0
    %673 = vmatprep.subr.bf16.mxu0 0
    %674 = vmatpush1.bf16.xpose.msra.mxu0 0
    %675 = vmatprep.subr.bf16.mxu0 0
    %676 = vmatpush1.bf16.xpose.msra.mxu0 %v665
    %677 = vmatprep.subr.bf16.mxu0 0
    %678 = vmatpush1.bf16.xpose.msra.mxu0 %v662
    %679 = vmatprep.subr.bf16.mxu0 0
    %680 = vmatpush1.bf16.xpose.msra.mxu0 %v659
    %681 = vmatprep.subr.bf16.mxu0 0
    %682 = vmatpush1.bf16.xpose.msra.mxu0 %v656
    %683 = vmatprep.subr.bf16.mxu0 0
    %684 = vmatpush2.bf16.xpose.msra.mxu0 0
    %685 = vmatprep.subr.bf16.mxu0 0
    %686 = vmatpush2.bf16.xpose.msra.mxu0 0
    %687 = vmatprep.subr.bf16.mxu0 0
    %688 = vmatpush2.bf16.xpose.msra.mxu0 0
    %689 = vmatprep.subr.bf16.mxu0 0
    %690 = vmatpush2.bf16.xpose.msra.mxu0 0
    %691 = vmatprep.subr.bf16.mxu0 0
    %692 = vmatpush2.bf16.xpose.msra.mxu0 0
    %693 = vmatprep.subr.bf16.mxu0 0
    %694 = vmatpush2.bf16.xpose.msra.mxu0 0
    %695 = vmatprep.subr.bf16.mxu0 0
    %696 = vmatpush2.bf16.xpose.msra.mxu0 0
    %697 = vmatprep.subr.bf16.mxu0 0
    %698 = vmatpush2.bf16.xpose.msra.mxu0 0
    %699 = vmatprep.mubr.bf16.mxu0 0
    %700 = vmatmul.mubr.bf16.gmra.mxu0 %v644
    %v701 = vpop.f32.mrf.mxu0
    %v702 = vadd.f32 0.0, %v701
    %v703 = vpop.f32.mrf.mxu0
    %v704 = vpop.f32.mrf.mxu0
    %v705 = vadd.f32 0.0, %v704
    %v706 = vpop.f32.mrf.mxu0
    %707 = vmatprep.mubr.bf16.mxu0 0
    %708 = vmatmul.mubr.bf16.gmra.mxu0 %v647
    %v709 = vpop.f32.mrf.mxu0
    %v710 = vadd.f32 0.0, %v709
    %v711 = vpop.f32.mrf.mxu0
    %v712 = vpop.f32.mrf.mxu0
    %v713 = vadd.f32 0.0, %v712
    %v714 = vpop.f32.mrf.mxu0
    %715 = vmatprep.mubr.bf16.mxu0 0
    %716 = vmatmul.mubr.bf16.gmra.mxu0 %v650
    %v717 = vpop.f32.mrf.mxu0
    %v718 = vadd.f32 0.0, %v717
    %v719 = vpop.f32.mrf.mxu0
    %v720 = vpop.f32.mrf.mxu0
    %v721 = vadd.f32 0.0, %v720
    %v722 = vpop.f32.mrf.mxu0
    %723 = vmatprep.mubr.bf16.mxu0 0
    %724 = vmatmul.mubr.bf16.gmra.mxu0 %v653
    %v725 = vpop.f32.mrf.mxu0
    %v726 = vadd.f32 0.0, %v725
    %v727 = vpop.f32.mrf.mxu0
    %v728 = vpop.f32.mrf.mxu0
    %v729 = vadd.f32 0.0, %v728
    %v730 = vpop.f32.mrf.mxu0
    %731 = vdwg.mxu0
    %vm732 = vcmask 523264
    %v733 = vsel %vm732, %v613, -inf
    %734 = vmax.xlane.f32.xlu0 %v733
    %v735 = vpop.xlane.xlu0 %734
    %v736 = vsel %vm732, %v616, -inf
    %737 = vmax.xlane.f32.xlu0 %v736
    %v738 = vpop.xlane.xlu0 %737
    %v739 = vsel %vm732, %v621, -inf
    %740 = vmax.xlane.f32.xlu0 %v739
    %v741 = vpop.xlane.xlu0 %740
    %v742 = vsel %vm732, %v624, -inf
    %743 = vmax.xlane.f32.xlu0 %v742
    %v744 = vpop.xlane.xlu0 %743
    %v745 = vsel %vm732, %v629, -inf
    %746 = vmax.xlane.f32.xlu0 %v745
    %v747 = vpop.xlane.xlu0 %746
    %v748 = vsel %vm732, %v632, -inf
    %749 = vmax.xlane.f32.xlu0 %v748
    %v750 = vpop.xlane.xlu0 %749
    %v751 = vsel %vm732, %v637, -inf
    %752 = vmax.xlane.f32.xlu0 %v751
    %v753 = vpop.xlane.xlu0 %752
    %v754 = vsel %vm732, %v640, -inf
    %755 = vmax.xlane.f32.xlu0 %v754
    %v756 = vpop.xlane.xlu0 %755
    %v757 = vsel %vm732, %v702, -inf
    %758 = vmax.xlane.f32.xlu0 %v757
    %v759 = vpop.xlane.xlu0 %758
    %v760 = vsel %vm732, %v705, -inf
    %761 = vmax.xlane.f32.xlu0 %v760
    %v762 = vpop.xlane.xlu0 %761
    %v763 = vsel %vm732, %v710, -inf
    %764 = vmax.xlane.f32.xlu0 %v763
    %v765 = vpop.xlane.xlu0 %764
    %v766 = vsel %vm732, %v713, -inf
    %767 = vmax.xlane.f32.xlu0 %v766
    %v768 = vpop.xlane.xlu0 %767
    %v769 = vsel %vm732, %v718, -inf
    %770 = vmax.xlane.f32.xlu0 %v769
    %v771 = vpop.xlane.xlu0 %770
    %v772 = vsel %vm732, %v721, -inf
    %773 = vmax.xlane.f32.xlu0 %v772
    %v774 = vpop.xlane.xlu0 %773
    %v775 = vsel %vm732, %v726, -inf
    %776 = vmax.xlane.f32.xlu0 %v775
    %v777 = vpop.xlane.xlu0 %776
    %v778 = vsel %vm732, %v729, -inf
    %779 = vmax.xlane.f32.xlu0 %v778
    %v780 = vpop.xlane.xlu0 %779
    %v781 = vsub.f32 %v613, %v735
    %v782 = vsub.f32 %v616, %v738
    %v783 = vsub.f32 %v621, %v741
    %v784 = vsub.f32 %v624, %v744
    %v785 = vsub.f32 %v629, %v747
    %v786 = vsub.f32 %v632, %v750
    %v787 = vsub.f32 %v637, %v753
    %v788 = vsub.f32 %v640, %v756
    %v789 = vsub.f32 %v702, %v759
    %v790 = vsub.f32 %v705, %v762
    %v791 = vsub.f32 %v710, %v765
    %v792 = vsub.f32 %v713, %v768
    %v793 = vsub.f32 %v718, %v771
    %v794 = vsub.f32 %v721, %v774
    %v795 = vsub.f32 %v726, %v777
    %v796 = vsub.f32 %v729, %v780
    %v797 = vmul.f32 %v781, 1.442695
    %v798 = vpow.pop %v797
    %v799 = vmul.f32 %v782, 1.442695
    %v800 = vpow.pop %v799
    %v801 = vmul.f32 %v783, 1.442695
    %v802 = vpow.pop %v801
    %v803 = vmul.f32 %v784, 1.442695
    %v804 = vpow.pop %v803
    %v805 = vmul.f32 %v785, 1.442695
    %v806 = vpow.pop %v805
    %v807 = vmul.f32 %v786, 1.442695
    %v808 = vpow.pop %v807
    %v809 = vmul.f32 %v787, 1.442695
    %v810 = vpow.pop %v809
    %v811 = vmul.f32 %v788, 1.442695
    %v812 = vpow.pop %v811
    %v813 = vmul.f32 %v789, 1.442695
    %v814 = vpow.pop %v813
    %v815 = vmul.f32 %v790, 1.442695
    %v816 = vpow.pop %v815
    %v817 = vmul.f32 %v791, 1.442695
    %v818 = vpow.pop %v817
    %v819 = vmul.f32 %v792, 1.442695
    %v820 = vpow.pop %v819
    %v821 = vmul.f32 %v793, 1.442695
    %v822 = vpow.pop %v821
    %v823 = vmul.f32 %v794, 1.442695
    %v824 = vpow.pop %v823
    %v825 = vmul.f32 %v795, 1.442695
    %v826 = vpow.pop %v825
    %v827 = vmul.f32 %v796, 1.442695
    %v828 = vpow.pop %v827
    %v829 = vsel %vm732, %v798, 0.0
    %830 = vadd.xlane.f32.xlu0 %v829
    %v831 = vpop.xlane.xlu0 %830
    %v832 = vsel %vm732, %v800, 0.0
    %833 = vadd.xlane.f32.xlu0 %v832
    %v834 = vpop.xlane.xlu0 %833
    %v835 = vsel %vm732, %v802, 0.0
    %836 = vadd.xlane.f32.xlu0 %v835
    %v837 = vpop.xlane.xlu0 %836
    %v838 = vsel %vm732, %v804, 0.0
    %839 = vadd.xlane.f32.xlu0 %v838
    %v840 = vpop.xlane.xlu0 %839
    %v841 = vsel %vm732, %v806, 0.0
    %842 = vadd.xlane.f32.xlu0 %v841
    %v843 = vpop.xlane.xlu0 %842
    %v844 = vsel %vm732, %v808, 0.0
    %845 = vadd.xlane.f32.xlu0 %v844
    %v846 = vpop.xlane.xlu0 %845
    %v847 = vsel %vm732, %v810, 0.0
    %848 = vadd.xlane.f32.xlu0 %v847
    %v849 = vpop.xlane.xlu0 %848
    %v850 = vsel %vm732, %v812, 0.0
    %851 = vadd.xlane.f32.xlu0 %v850
    %v852 = vpop.xlane.xlu0 %851
    %v853 = vsel %vm732, %v814, 0.0
    %854 = vadd.xlane.f32.xlu0 %v853
    %v855 = vpop.xlane.xlu0 %854
    %v856 = vsel %vm732, %v816, 0.0
    %857 = vadd.xlane.f32.xlu0 %v856
    %v858 = vpop.xlane.xlu0 %857
    %v859 = vsel %vm732, %v818, 0.0
    %860 = vadd.xlane.f32.xlu0 %v859
    %v861 = vpop.xlane.xlu0 %860
    %v862 = vsel %vm732, %v820, 0.0
    %863 = vadd.xlane.f32.xlu0 %v862
    %v864 = vpop.xlane.xlu0 %863
    %v865 = vsel %vm732, %v822, 0.0
    %866 = vadd.xlane.f32.xlu0 %v865
    %v867 = vpop.xlane.xlu0 %866
    %v868 = vsel %vm732, %v824, 0.0
    %869 = vadd.xlane.f32.xlu0 %v868
    %v870 = vpop.xlane.xlu0 %869
    %v871 = vsel %vm732, %v826, 0.0
    %872 = vadd.xlane.f32.xlu0 %v871
    %v873 = vpop.xlane.xlu0 %872
    %v874 = vsel %vm732, %v828, 0.0
    %875 = vadd.xlane.f32.xlu0 %v874
    %v876 = vpop.xlane.xlu0 %875
    %v877 = vpack.c.bf16 %v800, %v798
    %v878 = vpack.c.bf16 %v804, %v802
    %v879 = vpack.c.bf16 %v808, %v806
    %v880 = vpack.c.bf16 %v812, %v810
    %v881 = vpack.c.bf16 %v816, %v814
    %v882 = vpack.c.bf16 %v820, %v818
    %v883 = vpack.c.bf16 %v824, %v822
    %v884 = vpack.c.bf16 %v828, %v826
    %v886 = vsel %vm732, %v877, 0
    %v889 = vsel %vm732, %v878, 0
    %v892 = vsel %vm732, %v879, 0
    %v895 = vsel %vm732, %v880, 0
    %897 = vmatprep.subr.bf16.mxu0 0
    %898 = vmatpush1.bf16.msra.mxu0 0
    %899 = vmatprep.subr.bf16.mxu0 0
    %900 = vmatpush1.bf16.msra.mxu0 0
    %901 = vmatprep.subr.bf16.mxu0 0
    %902 = vmatpush1.bf16.msra.mxu0 0
    %903 = vmatprep.subr.bf16.mxu0 0
    %904 = vmatpush1.bf16.msra.mxu0 0
    %905 = vmatprep.subr.bf16.mxu0 0
    %906 = vmatpush1.bf16.msra.mxu0 %v548
    %907 = vmatprep.subr.bf16.mxu0 0
    %908 = vmatpush1.bf16.msra.mxu0 %v547
    %909 = vmatprep.subr.bf16.mxu0 0
    %910 = vmatpush1.bf16.msra.mxu0 %v546
    %911 = vmatprep.subr.bf16.mxu0 0
    %912 = vmatpush1.bf16.msra.mxu0 %v545
    %913 = vmatprep.subr.bf16.mxu0 0
    %914 = vmatpush2.bf16.msra.mxu0 0
    %915 = vmatprep.subr.bf16.mxu0 0
    %916 = vmatpush2.bf16.msra.mxu0 0
    %917 = vmatprep.subr.bf16.mxu0 0
    %918 = vmatpush2.bf16.msra.mxu0 0
    %919 = vmatprep.subr.bf16.mxu0 0
    %920 = vmatpush2.bf16.msra.mxu0 0
    %921 = vmatprep.subr.bf16.mxu0 0
    %922 = vmatpush2.bf16.msra.mxu0 0
    %923 = vmatprep.subr.bf16.mxu0 0
    %924 = vmatpush2.bf16.msra.mxu0 0
    %925 = vmatprep.subr.bf16.mxu0 0
    %926 = vmatpush2.bf16.msra.mxu0 0
    %927 = vmatprep.subr.bf16.mxu0 0
    %928 = vmatpush2.bf16.msra.mxu0 0
    %929 = vmatprep.mubr.bf16.mxu0 0
    %930 = vmatmul.mubr.bf16.gmra.mxu0 %v886
    %v931 = vpop.f32.mrf.mxu0
    %v932 = vadd.f32 0.0, %v931
    %v933 = vpop.f32.mrf.mxu0
    %v934 = vpop.f32.mrf.mxu0
    %v935 = vadd.f32 0.0, %v934
    %v936 = vpop.f32.mrf.mxu0
    %937 = vmatprep.mubr.bf16.mxu0 0
    %938 = vmatmul.mubr.bf16.gmra.mxu0 %v889
    %v939 = vpop.f32.mrf.mxu0
    %v940 = vadd.f32 0.0, %v939
    %v941 = vpop.f32.mrf.mxu0
    %v942 = vpop.f32.mrf.mxu0
    %v943 = vadd.f32 0.0, %v942
    %v944 = vpop.f32.mrf.mxu0
    %945 = vmatprep.mubr.bf16.mxu0 0
    %946 = vmatmul.mubr.bf16.gmra.mxu0 %v892
    %v947 = vpop.f32.mrf.mxu0
    %v948 = vadd.f32 0.0, %v947
    %v949 = vpop.f32.mrf.mxu0
    %v950 = vpop.f32.mrf.mxu0
    %v951 = vadd.f32 0.0, %v950
    %v952 = vpop.f32.mrf.mxu0
    %953 = vmatprep.mubr.bf16.mxu0 0
    %954 = vmatmul.mubr.bf16.gmra.mxu0 %v895
    %v955 = vpop.f32.mrf.mxu0
    %v956 = vadd.f32 0.0, %v955
    %v957 = vpop.f32.mrf.mxu0
    %v958 = vpop.f32.mrf.mxu0
    %v959 = vadd.f32 0.0, %v958
    %v960 = vpop.f32.mrf.mxu0
    %961 = vdwg.mxu0
    %v963 = vsel %vm732, %v881, 0
    %v966 = vsel %vm732, %v882, 0
    %v969 = vsel %vm732, %v883, 0
    %v972 = vsel %vm732, %v884, 0
    %974 = vmatprep.subr.bf16.mxu0 0
    %975 = vmatpush1.bf16.msra.mxu0 0
    %976 = vmatprep.subr.bf16.mxu0 0
    %977 = vmatpush1.bf16.msra.mxu0 0
    %978 = vmatprep.subr.bf16.mxu0 0
    %979 = vmatpush1.bf16.msra.mxu0 0
    %980 = vmatprep.subr.bf16.mxu0 0
    %981 = vmatpush1.bf16.msra.mxu0 0
    %982 = vmatprep.subr.bf16.mxu0 0
    %983 = vmatpush1.bf16.msra.mxu0 %v552
    %984 = vmatprep.subr.bf16.mxu0 0
    %985 = vmatpush1.bf16.msra.mxu0 %v551
    %986 = vmatprep.subr.bf16.mxu0 0
    %987 = vmatpush1.bf16.msra.mxu0 %v550
    %988 = vmatprep.subr.bf16.mxu0 0
    %989 = vmatpush1.bf16.msra.mxu0 %v549
    %990 = vmatprep.subr.bf16.mxu0 0
    %991 = vmatpush2.bf16.msra.mxu0 0
    %992 = vmatprep.subr.bf16.mxu0 0
    %993 = vmatpush2.bf16.msra.mxu0 0
    %994 = vmatprep.subr.bf16.mxu0 0
    %995 = vmatpush2.bf16.msra.mxu0 0
    %996 = vmatprep.subr.bf16.mxu0 0
    %997 = vmatpush2.bf16.msra.mxu0 0
    %998 = vmatprep.subr.bf16.mxu0 0
    %999 = vmatpush2.bf16.msra.mxu0 0
    %1000 = vmatprep.subr.bf16.mxu0 0
    %1001 = vmatpush2.bf16.msra.mxu0 0
    %1002 = vmatprep.subr.bf16.mxu0 0
    %1003 = vmatpush2.bf16.msra.mxu0 0
    %1004 = vmatprep.subr.bf16.mxu0 0
    %1005 = vmatpush2.bf16.msra.mxu0 0
    %1006 = vmatprep.mubr.bf16.mxu0 0
    %1007 = vmatmul.mubr.bf16.gmra.mxu0 %v963
    %v1008 = vpop.f32.mrf.mxu0
    %v1009 = vadd.f32 0.0, %v1008
    %v1010 = vpop.f32.mrf.mxu0
    %v1011 = vpop.f32.mrf.mxu0
    %v1012 = vadd.f32 0.0, %v1011
    %v1013 = vpop.f32.mrf.mxu0
    %1014 = vmatprep.mubr.bf16.mxu0 0
    %1015 = vmatmul.mubr.bf16.gmra.mxu0 %v966
    %v1016 = vpop.f32.mrf.mxu0
    %v1017 = vadd.f32 0.0, %v1016
    %v1018 = vpop.f32.mrf.mxu0
    %v1019 = vpop.f32.mrf.mxu0
    %v1020 = vadd.f32 0.0, %v1019
    %v1021 = vpop.f32.mrf.mxu0
    %1022 = vmatprep.mubr.bf16.mxu0 0
    %1023 = vmatmul.mubr.bf16.gmra.mxu0 %v969
    %v1024 = vpop.f32.mrf.mxu0
    %v1025 = vadd.f32 0.0, %v1024
    %v1026 = vpop.f32.mrf.mxu0
    %v1027 = vpop.f32.mrf.mxu0
    %v1028 = vadd.f32 0.0, %v1027
    %v1029 = vpop.f32.mrf.mxu0
    %1030 = vmatprep.mubr.bf16.mxu0 0
    %1031 = vmatmul.mubr.bf16.gmra.mxu0 %v972
    %v1032 = vpop.f32.mrf.mxu0
    %v1033 = vadd.f32 0.0, %v1032
    %v1034 = vpop.f32.mrf.mxu0
    %v1035 = vpop.f32.mrf.mxu0
    %v1036 = vadd.f32 0.0, %v1035
    %v1037 = vpop.f32.mrf.mxu0
    %1038 = vdwg.mxu0
    %v1039 = vrcp.pop %v831
    %v1040 = vrcp.pop %v834
    %v1041 = vrcp.pop %v837
    %v1042 = vrcp.pop %v840
    %v1043 = vrcp.pop %v843
    %v1044 = vrcp.pop %v846
    %v1045 = vrcp.pop %v849
    %v1046 = vrcp.pop %v852
    %v1047 = vrcp.pop %v855
    %v1048 = vrcp.pop %v858
    %v1049 = vrcp.pop %v861
    %v1050 = vrcp.pop %v864
    %v1051 = vrcp.pop %v867
    %v1052 = vrcp.pop %v870
    %v1053 = vrcp.pop %v873
    %v1054 = vrcp.pop %v876
    %v1055 = vmul.f32 %v932, %v1039
    %v1056 = vmul.f32 %v935, %v1040
    %v1057 = vmul.f32 %v940, %v1041
    %v1058 = vmul.f32 %v943, %v1042
    %v1059 = vmul.f32 %v948, %v1043
    %v1060 = vmul.f32 %v951, %v1044
    %v1061 = vmul.f32 %v956, %v1045
    %v1062 = vmul.f32 %v959, %v1046
    %v1063 = vmul.f32 %v1009, %v1047
    %v1064 = vmul.f32 %v1012, %v1048
    %v1065 = vmul.f32 %v1017, %v1049
    %v1066 = vmul.f32 %v1020, %v1050
    %v1067 = vmul.f32 %v1025, %v1051
    %v1068 = vmul.f32 %v1028, %v1052
    %v1069 = vmul.f32 %v1033, %v1053
    %v1070 = vmul.f32 %v1036, %v1054
    %v1071 = vpack.c.bf16 %v1056, %v1055
    %v1072 = vpack.c.bf16 %v1058, %v1057
    %v1073 = vpack.c.bf16 %v1060, %v1059
    %v1074 = vpack.c.bf16 %v1062, %v1061
    %v1075 = vpack.c.bf16 %v1064, %v1063
    %v1076 = vpack.c.bf16 %v1066, %v1065
    %v1077 = vpack.c.bf16 %v1068, %v1067
    %v1078 = vpack.c.bf16 %v1070, %v1069
    %1083 = vrot.lane.b32.xlu0 %v529, 120
    %v1084 = vpop.permute.xlu0 %1083
    %1085 = vrot.lane.b32.xlu0 %v530, 120
    %v1086 = vpop.permute.xlu0 %1085
    %1087 = vrot.lane.b32.xlu0 %v531, 120
    %v1088 = vpop.permute.xlu0 %1087
    %1089 = vrot.lane.b32.xlu0 %v532, 120
    %v1090 = vpop.permute.xlu0 %1089
    %1095 = vrot.lane.b32.xlu0 %v537, 120
    %v1096 = vpop.permute.xlu0 %1095
    %1097 = vrot.lane.b32.xlu0 %v538, 120
    %v1098 = vpop.permute.xlu0 %1097
    %1099 = vrot.lane.b32.xlu0 %v539, 120
    %v1100 = vpop.permute.xlu0 %1099
    %1101 = vrot.lane.b32.xlu0 %v540, 120
    %v1102 = vpop.permute.xlu0 %1101
    %v1104 = vsel %vm553, %v1084, 0
    %v1107 = vsel %vm553, %v1086, 0
    %v1110 = vsel %vm553, %v1088, 0
    %v1113 = vsel %vm553, %v1090, 0
    %v1116 = vsel %vm553, %v1096, 0
    %v1119 = vsel %vm553, %v1098, 0
    %v1122 = vsel %vm553, %v1100, 0
    %v1125 = vsel %vm553, %v1102, 0
    %1127 = vmatprep.subr.bf16.mxu0 0
    %1128 = vmatpush1.bf16.xpose.msra.mxu0 0
    %1129 = vmatprep.subr.bf16.mxu0 0
    %1130 = vmatpush1.bf16.xpose.msra.mxu0 0
    %1131 = vmatprep.subr.bf16.mxu0 0
    %1132 = vmatpush1.bf16.xpose.msra.mxu0 0
    %1133 = vmatprep.subr.bf16.mxu0 0
    %1134 = vmatpush1.bf16.xpose.msra.mxu0 0
    %1135 = vmatprep.subr.bf16.mxu0 0
    %1136 = vmatpush1.bf16.xpose.msra.mxu0 %v1125
    %1137 = vmatprep.subr.bf16.mxu0 0
    %1138 = vmatpush1.bf16.xpose.msra.mxu0 %v1122
    %1139 = vmatprep.subr.bf16.mxu0 0
    %1140 = vmatpush1.bf16.xpose.msra.mxu0 %v1119
    %1141 = vmatprep.subr.bf16.mxu0 0
    %1142 = vmatpush1.bf16.xpose.msra.mxu0 %v1116
    %1143 = vmatprep.subr.bf16.mxu0 0
    %1144 = vmatpush2.bf16.xpose.msra.mxu0 0
    %1145 = vmatprep.subr.bf16.mxu0 0
    %1146 = vmatpush2.bf16.xpose.msra.mxu0 0
    %1147 = vmatprep.subr.bf16.mxu0 0
    %1148 = vmatpush2.bf16.xpose.msra.mxu0 0
    %1149 = vmatprep.subr.bf16.mxu0 0
    %1150 = vmatpush2.bf16.xpose.msra.mxu0 0
    %1151 = vmatprep.subr.bf16.mxu0 0
    %1152 = vmatpush2.bf16.xpose.msra.mxu0 0
    %1153 = vmatprep.subr.bf16.mxu0 0
    %1154 = vmatpush2.bf16.xpose.msra.mxu0 0
    %1155 = vmatprep.subr.bf16.mxu0 0
    %1156 = vmatpush2.bf16.xpose.msra.mxu0 0
    %1157 = vmatprep.subr.bf16.mxu0 0
    %1158 = vmatpush2.bf16.xpose.msra.mxu0 0
    %1159 = vmatprep.mubr.bf16.mxu0 0
    %1160 = vmatmul.mubr.bf16.gmra.mxu0 %v1104
    %v1161 = vpop.f32.mrf.mxu0
    %v1162 = vadd.f32 0.0, %v1161
    %v1163 = vpop.f32.mrf.mxu0
    %v1164 = vpop.f32.mrf.mxu0
    %v1165 = vadd.f32 0.0, %v1164
    %v1166 = vpop.f32.mrf.mxu0
    %1167 = vmatprep.mubr.bf16.mxu0 0
    %1168 = vmatmul.mubr.bf16.gmra.mxu0 %v1107
    %v1169 = vpop.f32.mrf.mxu0
    %v1170 = vadd.f32 0.0, %v1169
    %v1171 = vpop.f32.mrf.mxu0
    %v1172 = vpop.f32.mrf.mxu0
    %v1173 = vadd.f32 0.0, %v1172
    %v1174 = vpop.f32.mrf.mxu0
    %1175 = vmatprep.mubr.bf16.mxu0 0
    %1176 = vmatmul.mubr.bf16.gmra.mxu0 %v1110
    %v1177 = vpop.f32.mrf.mxu0
    %v1178 = vadd.f32 0.0, %v1177
    %v1179 = vpop.f32.mrf.mxu0
    %v1180 = vpop.f32.mrf.mxu0
    %v1181 = vadd.f32 0.0, %v1180
    %v1182 = vpop.f32.mrf.mxu0
    %1183 = vmatprep.mubr.bf16.mxu0 0
    %1184 = vmatmul.mubr.bf16.gmra.mxu0 %v1113
    %v1185 = vpop.f32.mrf.mxu0
    %v1186 = vadd.f32 0.0, %v1185
    %v1187 = vpop.f32.mrf.mxu0
    %v1188 = vpop.f32.mrf.mxu0
    %v1189 = vadd.f32 0.0, %v1188
    %v1190 = vpop.f32.mrf.mxu0
    %1191 = vdwg.mxu0
    %1196 = vrot.lane.b32.xlu0 %v533, 120
    %v1197 = vpop.permute.xlu0 %1196
    %1198 = vrot.lane.b32.xlu0 %v534, 120
    %v1199 = vpop.permute.xlu0 %1198
    %1200 = vrot.lane.b32.xlu0 %v535, 120
    %v1201 = vpop.permute.xlu0 %1200
    %1202 = vrot.lane.b32.xlu0 %v536, 120
    %v1203 = vpop.permute.xlu0 %1202
    %1208 = vrot.lane.b32.xlu0 %v541, 120
    %v1209 = vpop.permute.xlu0 %1208
    %1210 = vrot.lane.b32.xlu0 %v542, 120
    %v1211 = vpop.permute.xlu0 %1210
    %1212 = vrot.lane.b32.xlu0 %v543, 120
    %v1213 = vpop.permute.xlu0 %1212
    %1214 = vrot.lane.b32.xlu0 %v544, 120
    %v1215 = vpop.permute.xlu0 %1214
    %v1217 = vsel %vm553, %v1197, 0
    %v1220 = vsel %vm553, %v1199, 0
    %v1223 = vsel %vm553, %v1201, 0
    %v1226 = vsel %vm553, %v1203, 0
    %v1229 = vsel %vm553, %v1209, 0
    %v1232 = vsel %vm553, %v1211, 0
    %v1235 = vsel %vm553, %v1213, 0
    %v1238 = vsel %vm553, %v1215, 0
    %1240 = vmatprep.subr.bf16.mxu0 0
    %1241 = vmatpush1.bf16.xpose.msra.mxu0 0
    %1242 = vmatprep.subr.bf16.mxu0 0
    %1243 = vmatpush1.bf16.xpose.msra.mxu0 0
    %1244 = vmatprep.subr.bf16.mxu0 0
    %1245 = vmatpush1.bf16.xpose.msra.mxu0 0
    %1246 = vmatprep.subr.bf16.mxu0 0
    %1247 = vmatpush1.bf16.xpose.msra.mxu0 0
    %1248 = vmatprep.subr.bf16.mxu0 0
    %1249 = vmatpush1.bf16.xpose.msra.mxu0 %v1238
    %1250 = vmatprep.subr.bf16.mxu0 0
    %1251 = vmatpush1.bf16.xpose.msra.mxu0 %v1235
    %1252 = vmatprep.subr.bf16.mxu0 0
    %1253 = vmatpush1.bf16.xpose.msra.mxu0 %v1232
    %1254 = vmatprep.subr.bf16.mxu0 0
    %1255 = vmatpush1.bf16.xpose.msra.mxu0 %v1229
    %1256 = vmatprep.subr.bf16.mxu0 0
    %1257 = vmatpush2.bf16.xpose.msra.mxu0 0
    %1258 = vmatprep.subr.bf16.mxu0 0
    %1259 = vmatpush2.bf16.xpose.msra.mxu0 0
    %1260 = vmatprep.subr.bf16.mxu0 0
    %1261 = vmatpush2.bf16.xpose.msra.mxu0 0
    %1262 = vmatprep.subr.bf16.mxu0 0
    %1263 = vmatpush2.bf16.xpose.msra.mxu0 0
    %1264 = vmatprep.subr.bf16.mxu0 0
    %1265 = vmatpush2.bf16.xpose.msra.mxu0 0
    %1266 = vmatprep.subr.bf16.mxu0 0
    %1267 = vmatpush2.bf16.xpose.msra.mxu0 0
    %1268 = vmatprep.subr.bf16.mxu0 0
    %1269 = vmatpush2.bf16.xpose.msra.mxu0 0
    %1270 = vmatprep.subr.bf16.mxu0 0
    %1271 = vmatpush2.bf16.xpose.msra.mxu0 0
    %1272 = vmatprep.mubr.bf16.mxu0 0
    %1273 = vmatmul.mubr.bf16.gmra.mxu0 %v1217
    %v1274 = vpop.f32.mrf.mxu0
    %v1275 = vadd.f32 0.0, %v1274
    %v1276 = vpop.f32.mrf.mxu0
    %v1277 = vpop.f32.mrf.mxu0
    %v1278 = vadd.f32 0.0, %v1277
    %v1279 = vpop.f32.mrf.mxu0
    %1280 = vmatprep.mubr.bf16.mxu0 0
    %1281 = vmatmul.mubr.bf16.gmra.mxu0 %v1220
    %v1282 = vpop.f32.mrf.mxu0
    %v1283 = vadd.f32 0.0, %v1282
    %v1284 = vpop.f32.mrf.mxu0
    %v1285 = vpop.f32.mrf.mxu0
    %v1286 = vadd.f32 0.0, %v1285
    %v1287 = vpop.f32.mrf.mxu0
    %1288 = vmatprep.mubr.bf16.mxu0 0
    %1289 = vmatmul.mubr.bf16.gmra.mxu0 %v1223
    %v1290 = vpop.f32.mrf.mxu0
    %v1291 = vadd.f32 0.0, %v1290
    %v1292 = vpop.f32.mrf.mxu0
    %v1293 = vpop.f32.mrf.mxu0
    %v1294 = vadd.f32 0.0, %v1293
    %v1295 = vpop.f32.mrf.mxu0
    %1296 = vmatprep.mubr.bf16.mxu0 0
    %1297 = vmatmul.mubr.bf16.gmra.mxu0 %v1226
    %v1298 = vpop.f32.mrf.mxu0
    %v1299 = vadd.f32 0.0, %v1298
    %v1300 = vpop.f32.mrf.mxu0
    %v1301 = vpop.f32.mrf.mxu0
    %v1302 = vadd.f32 0.0, %v1301
    %v1303 = vpop.f32.mrf.mxu0
    %1304 = vdwg.mxu0
    %v1305 = vsel %vm732, %v1162, -inf
    %1306 = vmax.xlane.f32.xlu0 %v1305
    %v1307 = vpop.xlane.xlu0 %1306
    %v1308 = vsel %vm732, %v1165, -inf
    %1309 = vmax.xlane.f32.xlu0 %v1308
    %v1310 = vpop.xlane.xlu0 %1309
    %v1311 = vsel %vm732, %v1170, -inf
    %1312 = vmax.xlane.f32.xlu0 %v1311
    %v1313 = vpop.xlane.xlu0 %1312
    %v1314 = vsel %vm732, %v1173, -inf
    %1315 = vmax.xlane.f32.xlu0 %v1314
    %v1316 = vpop.xlane.xlu0 %1315
    %v1317 = vsel %vm732, %v1178, -inf
    %1318 = vmax.xlane.f32.xlu0 %v1317
    %v1319 = vpop.xlane.xlu0 %1318
    %v1320 = vsel %vm732, %v1181, -inf
    %1321 = vmax.xlane.f32.xlu0 %v1320
    %v1322 = vpop.xlane.xlu0 %1321
    %v1323 = vsel %vm732, %v1186, -inf
    %1324 = vmax.xlane.f32.xlu0 %v1323
    %v1325 = vpop.xlane.xlu0 %1324
    %v1326 = vsel %vm732, %v1189, -inf
    %1327 = vmax.xlane.f32.xlu0 %v1326
    %v1328 = vpop.xlane.xlu0 %1327
    %v1329 = vsel %vm732, %v1275, -inf
    %1330 = vmax.xlane.f32.xlu0 %v1329
    %v1331 = vpop.xlane.xlu0 %1330
    %v1332 = vsel %vm732, %v1278, -inf
    %1333 = vmax.xlane.f32.xlu0 %v1332
    %v1334 = vpop.xlane.xlu0 %1333
    %v1335 = vsel %vm732, %v1283, -inf
    %1336 = vmax.xlane.f32.xlu0 %v1335
    %v1337 = vpop.xlane.xlu0 %1336
    %v1338 = vsel %vm732, %v1286, -inf
    %1339 = vmax.xlane.f32.xlu0 %v1338
    %v1340 = vpop.xlane.xlu0 %1339
    %v1341 = vsel %vm732, %v1291, -inf
    %1342 = vmax.xlane.f32.xlu0 %v1341
    %v1343 = vpop.xlane.xlu0 %1342
    %v1344 = vsel %vm732, %v1294, -inf
    %1345 = vmax.xlane.f32.xlu0 %v1344
    %v1346 = vpop.xlane.xlu0 %1345
    %v1347 = vsel %vm732, %v1299, -inf
    %1348 = vmax.xlane.f32.xlu0 %v1347
    %v1349 = vpop.xlane.xlu0 %1348
    %v1350 = vsel %vm732, %v1302, -inf
    %1351 = vmax.xlane.f32.xlu0 %v1350
    %v1352 = vpop.xlane.xlu0 %1351
    %v1353 = vsub.f32 %v1162, %v1307
    %v1354 = vsub.f32 %v1165, %v1310
    %v1355 = vsub.f32 %v1170, %v1313
    %v1356 = vsub.f32 %v1173, %v1316
    %v1357 = vsub.f32 %v1178, %v1319
    %v1358 = vsub.f32 %v1181, %v1322
    %v1359 = vsub.f32 %v1186, %v1325
    %v1360 = vsub.f32 %v1189, %v1328
    %v1361 = vsub.f32 %v1275, %v1331
    %v1362 = vsub.f32 %v1278, %v1334
    %v1363 = vsub.f32 %v1283, %v1337
    %v1364 = vsub.f32 %v1286, %v1340
    %v1365 = vsub.f32 %v1291, %v1343
    %v1366 = vsub.f32 %v1294, %v1346
    %v1367 = vsub.f32 %v1299, %v1349
    %v1368 = vsub.f32 %v1302, %v1352
    %v1369 = vmul.f32 %v1353, 1.442695
    %v1370 = vpow.pop %v1369
    %v1371 = vmul.f32 %v1354, 1.442695
    %v1372 = vpow.pop %v1371
    %v1373 = vmul.f32 %v1355, 1.442695
    %v1374 = vpow.pop %v1373
    %v1375 = vmul.f32 %v1356, 1.442695
    %v1376 = vpow.pop %v1375
    %v1377 = vmul.f32 %v1357, 1.442695
    %v1378 = vpow.pop %v1377
    %v1379 = vmul.f32 %v1358, 1.442695
    %v1380 = vpow.pop %v1379
    %v1381 = vmul.f32 %v1359, 1.442695
    %v1382 = vpow.pop %v1381
    %v1383 = vmul.f32 %v1360, 1.442695
    %v1384 = vpow.pop %v1383
    %v1385 = vmul.f32 %v1361, 1.442695
    %v1386 = vpow.pop %v1385
    %v1387 = vmul.f32 %v1362, 1.442695
    %v1388 = vpow.pop %v1387
    %v1389 = vmul.f32 %v1363, 1.442695
    %v1390 = vpow.pop %v1389
    %v1391 = vmul.f32 %v1364, 1.442695
    %v1392 = vpow.pop %v1391
    %v1393 = vmul.f32 %v1365, 1.442695
    %v1394 = vpow.pop %v1393
    %v1395 = vmul.f32 %v1366, 1.442695
    %v1396 = vpow.pop %v1395
    %v1397 = vmul.f32 %v1367, 1.442695
    %v1398 = vpow.pop %v1397
    %v1399 = vmul.f32 %v1368, 1.442695
    %v1400 = vpow.pop %v1399
    %v1401 = vsel %vm732, %v1370, 0.0
    %1402 = vadd.xlane.f32.xlu0 %v1401
    %v1403 = vpop.xlane.xlu0 %1402
    %v1404 = vsel %vm732, %v1372, 0.0
    %1405 = vadd.xlane.f32.xlu0 %v1404
    %v1406 = vpop.xlane.xlu0 %1405
    %v1407 = vsel %vm732, %v1374, 0.0
    %1408 = vadd.xlane.f32.xlu0 %v1407
    %v1409 = vpop.xlane.xlu0 %1408
    %v1410 = vsel %vm732, %v1376, 0.0
    %1411 = vadd.xlane.f32.xlu0 %v1410
    %v1412 = vpop.xlane.xlu0 %1411
    %v1413 = vsel %vm732, %v1378, 0.0
    %1414 = vadd.xlane.f32.xlu0 %v1413
    %v1415 = vpop.xlane.xlu0 %1414
    %v1416 = vsel %vm732, %v1380, 0.0
    %1417 = vadd.xlane.f32.xlu0 %v1416
    %v1418 = vpop.xlane.xlu0 %1417
    %v1419 = vsel %vm732, %v1382, 0.0
    %1420 = vadd.xlane.f32.xlu0 %v1419
    %v1421 = vpop.xlane.xlu0 %1420
    %v1422 = vsel %vm732, %v1384, 0.0
    %1423 = vadd.xlane.f32.xlu0 %v1422
    %v1424 = vpop.xlane.xlu0 %1423
    %v1425 = vsel %vm732, %v1386, 0.0
    %1426 = vadd.xlane.f32.xlu0 %v1425
    %v1427 = vpop.xlane.xlu0 %1426
    %v1428 = vsel %vm732, %v1388, 0.0
    %1429 = vadd.xlane.f32.xlu0 %v1428
    %v1430 = vpop.xlane.xlu0 %1429
    %v1431 = vsel %vm732, %v1390, 0.0
    %1432 = vadd.xlane.f32.xlu0 %v1431
    %v1433 = vpop.xlane.xlu0 %1432
    %v1434 = vsel %vm732, %v1392, 0.0
    %1435 = vadd.xlane.f32.xlu0 %v1434
    %v1436 = vpop.xlane.xlu0 %1435
    %v1437 = vsel %vm732, %v1394, 0.0
    %1438 = vadd.xlane.f32.xlu0 %v1437
    %v1439 = vpop.xlane.xlu0 %1438
    %v1440 = vsel %vm732, %v1396, 0.0
    %1441 = vadd.xlane.f32.xlu0 %v1440
    %v1442 = vpop.xlane.xlu0 %1441
    %v1443 = vsel %vm732, %v1398, 0.0
    %1444 = vadd.xlane.f32.xlu0 %v1443
    %v1445 = vpop.xlane.xlu0 %1444
    %v1446 = vsel %vm732, %v1400, 0.0
    %1447 = vadd.xlane.f32.xlu0 %v1446
    %v1448 = vpop.xlane.xlu0 %1447
    %v1449 = vpack.c.bf16 %v1372, %v1370
    %v1450 = vpack.c.bf16 %v1376, %v1374
    %v1451 = vpack.c.bf16 %v1380, %v1378
    %v1452 = vpack.c.bf16 %v1384, %v1382
    %v1453 = vpack.c.bf16 %v1388, %v1386
    %v1454 = vpack.c.bf16 %v1392, %v1390
    %v1455 = vpack.c.bf16 %v1396, %v1394
    %v1456 = vpack.c.bf16 %v1400, %v1398
    %1461 = vrot.lane.b32.xlu0 %v545, 120
    %v1462 = vpop.permute.xlu0 %1461
    %1463 = vrot.lane.b32.xlu0 %v546, 120
    %v1464 = vpop.permute.xlu0 %1463
    %1465 = vrot.lane.b32.xlu0 %v547, 120
    %v1466 = vpop.permute.xlu0 %1465
    %1467 = vrot.lane.b32.xlu0 %v548, 120
    %v1468 = vpop.permute.xlu0 %1467
    %v1474 = vsel %vm732, %v1449, 0
    %v1477 = vsel %vm732, %v1450, 0
    %v1480 = vsel %vm732, %v1451, 0
    %v1483 = vsel %vm732, %v1452, 0
    %1485 = vmatprep.subr.bf16.mxu0 0
    %1486 = vmatpush1.bf16.msra.mxu0 0
    %1487 = vmatprep.subr.bf16.mxu0 0
    %1488 = vmatpush1.bf16.msra.mxu0 0
    %1489 = vmatprep.subr.bf16.mxu0 0
    %1490 = vmatpush1.bf16.msra.mxu0 0
    %1491 = vmatprep.subr.bf16.mxu0 0
    %1492 = vmatpush1.bf16.msra.mxu0 0
    %1493 = vmatprep.subr.bf16.mxu0 0
    %1494 = vmatpush1.bf16.msra.mxu0 %v1468
    %1495 = vmatprep.subr.bf16.mxu0 0
    %1496 = vmatpush1.bf16.msra.mxu0 %v1466
    %1497 = vmatprep.subr.bf16.mxu0 0
    %1498 = vmatpush1.bf16.msra.mxu0 %v1464
    %1499 = vmatprep.subr.bf16.mxu0 0
    %1500 = vmatpush1.bf16.msra.mxu0 %v1462
    %1501 = vmatprep.subr.bf16.mxu0 0
    %1502 = vmatpush2.bf16.msra.mxu0 0
    %1503 = vmatprep.subr.bf16.mxu0 0
    %1504 = vmatpush2.bf16.msra.mxu0 0
    %1505 = vmatprep.subr.bf16.mxu0 0
    %1506 = vmatpush2.bf16.msra.mxu0 0
    %1507 = vmatprep.subr.bf16.mxu0 0
    %1508 = vmatpush2.bf16.msra.mxu0 0
    %1509 = vmatprep.subr.bf16.mxu0 0
    %1510 = vmatpush2.bf16.msra.mxu0 0
    %1511 = vmatprep.subr.bf16.mxu0 0
    %1512 = vmatpush2.bf16.msra.mxu0 0
    %1513 = vmatprep.subr.bf16.mxu0 0
    %1514 = vmatpush2.bf16.msra.mxu0 0
    %1515 = vmatprep.subr.bf16.mxu0 0
    %1516 = vmatpush2.bf16.msra.mxu0 0
    %1517 = vmatprep.mubr.bf16.mxu0 0
    %1518 = vmatmul.mubr.bf16.gmra.mxu0 %v1474
    %v1519 = vpop.f32.mrf.mxu0
    %v1520 = vadd.f32 0.0, %v1519
    %v1521 = vpop.f32.mrf.mxu0
    %v1522 = vpop.f32.mrf.mxu0
    %v1523 = vadd.f32 0.0, %v1522
    %v1524 = vpop.f32.mrf.mxu0
    %1525 = vmatprep.mubr.bf16.mxu0 0
    %1526 = vmatmul.mubr.bf16.gmra.mxu0 %v1477
    %v1527 = vpop.f32.mrf.mxu0
    %v1528 = vadd.f32 0.0, %v1527
    %v1529 = vpop.f32.mrf.mxu0
    %v1530 = vpop.f32.mrf.mxu0
    %v1531 = vadd.f32 0.0, %v1530
    %v1532 = vpop.f32.mrf.mxu0
    %1533 = vmatprep.mubr.bf16.mxu0 0
    %1534 = vmatmul.mubr.bf16.gmra.mxu0 %v1480
    %v1535 = vpop.f32.mrf.mxu0
    %v1536 = vadd.f32 0.0, %v1535
    %v1537 = vpop.f32.mrf.mxu0
    %v1538 = vpop.f32.mrf.mxu0
    %v1539 = vadd.f32 0.0, %v1538
    %v1540 = vpop.f32.mrf.mxu0
    %1541 = vmatprep.mubr.bf16.mxu0 0
    %1542 = vmatmul.mubr.bf16.gmra.mxu0 %v1483
    %v1543 = vpop.f32.mrf.mxu0
    %v1544 = vadd.f32 0.0, %v1543
    %v1545 = vpop.f32.mrf.mxu0
    %v1546 = vpop.f32.mrf.mxu0
    %v1547 = vadd.f32 0.0, %v1546
    %v1548 = vpop.f32.mrf.mxu0
    %1549 = vdwg.mxu0
    %1554 = vrot.lane.b32.xlu0 %v549, 120
    %v1555 = vpop.permute.xlu0 %1554
    %1556 = vrot.lane.b32.xlu0 %v550, 120
    %v1557 = vpop.permute.xlu0 %1556
    %1558 = vrot.lane.b32.xlu0 %v551, 120
    %v1559 = vpop.permute.xlu0 %1558
    %1560 = vrot.lane.b32.xlu0 %v552, 120
    %v1561 = vpop.permute.xlu0 %1560
    %v1567 = vsel %vm732, %v1453, 0
    %v1570 = vsel %vm732, %v1454, 0
    %v1573 = vsel %vm732, %v1455, 0
    %v1576 = vsel %vm732, %v1456, 0
    %1578 = vmatprep.subr.bf16.mxu0 0
    %1579 = vmatpush1.bf16.msra.mxu0 0
    %1580 = vmatprep.subr.bf16.mxu0 0
    %1581 = vmatpush1.bf16.msra.mxu0 0
    %1582 = vmatprep.subr.bf16.mxu0 0
    %1583 = vmatpush1.bf16.msra.mxu0 0
    %1584 = vmatprep.subr.bf16.mxu0 0
    %1585 = vmatpush1.bf16.msra.mxu0 0
    %1586 = vmatprep.subr.bf16.mxu0 0
    %1587 = vmatpush1.bf16.msra.mxu0 %v1561
    %1588 = vmatprep.subr.bf16.mxu0 0
    %1589 = vmatpush1.bf16.msra.mxu0 %v1559
    %1590 = vmatprep.subr.bf16.mxu0 0
    %1591 = vmatpush1.bf16.msra.mxu0 %v1557
    %1592 = vmatprep.subr.bf16.mxu0 0
    %1593 = vmatpush1.bf16.msra.mxu0 %v1555
    %1594 = vmatprep.subr.bf16.mxu0 0
    %1595 = vmatpush2.bf16.msra.mxu0 0
    %1596 = vmatprep.subr.bf16.mxu0 0
    %1597 = vmatpush2.bf16.msra.mxu0 0
    %1598 = vmatprep.subr.bf16.mxu0 0
    %1599 = vmatpush2.bf16.msra.mxu0 0
    %1600 = vmatprep.subr.bf16.mxu0 0
    %1601 = vmatpush2.bf16.msra.mxu0 0
    %1602 = vmatprep.subr.bf16.mxu0 0
    %1603 = vmatpush2.bf16.msra.mxu0 0
    %1604 = vmatprep.subr.bf16.mxu0 0
    %1605 = vmatpush2.bf16.msra.mxu0 0
    %1606 = vmatprep.subr.bf16.mxu0 0
    %1607 = vmatpush2.bf16.msra.mxu0 0
    %1608 = vmatprep.subr.bf16.mxu0 0
    %1609 = vmatpush2.bf16.msra.mxu0 0
    %1610 = vmatprep.mubr.bf16.mxu0 0
    %1611 = vmatmul.mubr.bf16.gmra.mxu0 %v1567
    %v1612 = vpop.f32.mrf.mxu0
    %v1613 = vadd.f32 0.0, %v1612
    %v1614 = vpop.f32.mrf.mxu0
    %v1615 = vpop.f32.mrf.mxu0
    %v1616 = vadd.f32 0.0, %v1615
    %v1617 = vpop.f32.mrf.mxu0
    %1618 = vmatprep.mubr.bf16.mxu0 0
    %1619 = vmatmul.mubr.bf16.gmra.mxu0 %v1570
    %v1620 = vpop.f32.mrf.mxu0
    %v1621 = vadd.f32 0.0, %v1620
    %v1622 = vpop.f32.mrf.mxu0
    %v1623 = vpop.f32.mrf.mxu0
    %v1624 = vadd.f32 0.0, %v1623
    %v1625 = vpop.f32.mrf.mxu0
    %1626 = vmatprep.mubr.bf16.mxu0 0
    %1627 = vmatmul.mubr.bf16.gmra.mxu0 %v1573
    %v1628 = vpop.f32.mrf.mxu0
    %v1629 = vadd.f32 0.0, %v1628
    %v1630 = vpop.f32.mrf.mxu0
    %v1631 = vpop.f32.mrf.mxu0
    %v1632 = vadd.f32 0.0, %v1631
    %v1633 = vpop.f32.mrf.mxu0
    %1634 = vmatprep.mubr.bf16.mxu0 0
    %1635 = vmatmul.mubr.bf16.gmra.mxu0 %v1576
    %v1636 = vpop.f32.mrf.mxu0
    %v1637 = vadd.f32 0.0, %v1636
    %v1638 = vpop.f32.mrf.mxu0
    %v1639 = vpop.f32.mrf.mxu0
    %v1640 = vadd.f32 0.0, %v1639
    %v1641 = vpop.f32.mrf.mxu0
    %1642 = vdwg.mxu0
    %v1643 = vrcp.pop %v1403
    %v1644 = vrcp.pop %v1406
    %v1645 = vrcp.pop %v1409
    %v1646 = vrcp.pop %v1412
    %v1647 = vrcp.pop %v1415
    %v1648 = vrcp.pop %v1418
    %v1649 = vrcp.pop %v1421
    %v1650 = vrcp.pop %v1424
    %v1651 = vrcp.pop %v1427
    %v1652 = vrcp.pop %v1430
    %v1653 = vrcp.pop %v1433
    %v1654 = vrcp.pop %v1436
    %v1655 = vrcp.pop %v1439
    %v1656 = vrcp.pop %v1442
    %v1657 = vrcp.pop %v1445
    %v1658 = vrcp.pop %v1448
    %v1659 = vmul.f32 %v1520, %v1643
    %v1660 = vmul.f32 %v1523, %v1644
    %v1661 = vmul.f32 %v1528, %v1645
    %v1662 = vmul.f32 %v1531, %v1646
    %v1663 = vmul.f32 %v1536, %v1647
    %v1664 = vmul.f32 %v1539, %v1648
    %v1665 = vmul.f32 %v1544, %v1649
    %v1666 = vmul.f32 %v1547, %v1650
    %v1667 = vmul.f32 %v1613, %v1651
    %v1668 = vmul.f32 %v1616, %v1652
    %v1669 = vmul.f32 %v1621, %v1653
    %v1670 = vmul.f32 %v1624, %v1654
    %v1671 = vmul.f32 %v1629, %v1655
    %v1672 = vmul.f32 %v1632, %v1656
    %v1673 = vmul.f32 %v1637, %v1657
    %v1674 = vmul.f32 %v1640, %v1658
    %v1675 = vpack.c.bf16 %v1660, %v1659
    %v1676 = vpack.c.bf16 %v1662, %v1661
    %v1677 = vpack.c.bf16 %v1664, %v1663
    %v1678 = vpack.c.bf16 %v1666, %v1665
    %v1679 = vpack.c.bf16 %v1668, %v1667
    %v1680 = vpack.c.bf16 %v1670, %v1669
    %v1681 = vpack.c.bf16 %v1672, %v1671
    %v1682 = vpack.c.bf16 %v1674, %v1673
    %1685 = vrot.lane.b32.xlu0 %v172, 120
    %v1686 = vpop.permute.xlu0 %1685
    %1687 = vrot.lane.b32.xlu0 %v173, 120
    %v1688 = vpop.permute.xlu0 %1687
    %v1690 = vsel %vm553, %v1675, 0
    %v1693 = vsel %vm553, %v1676, 0
    %v1696 = vsel %vm553, %v1677, 0
    %v1699 = vsel %vm553, %v1678, 0
    %v1702 = vsel %vm553, %v1679, 0
    %v1705 = vsel %vm553, %v1680, 0
    %v1708 = vsel %vm553, %v1681, 0
    %v1711 = vsel %vm553, %v1682, 0
    %v1714 = vsel %vm553, %v1686, 0
    %v1717 = vsel %vm553, %v1688, 0
    %1719 = vmatprep.subr.bf16.mxu0 0
    %1720 = vmatpush1.bf16.xpose.msra.mxu0 0
    %1721 = vmatprep.subr.bf16.mxu0 0
    %1722 = vmatpush1.bf16.xpose.msra.mxu0 0
    %1723 = vmatprep.subr.bf16.mxu0 0
    %1724 = vmatpush1.bf16.xpose.msra.mxu0 0
    %1725 = vmatprep.subr.bf16.mxu0 0
    %1726 = vmatpush1.bf16.xpose.msra.mxu0 0
    %1727 = vmatprep.subr.bf16.mxu0 0
    %1728 = vmatpush1.bf16.xpose.msra.mxu0 0
    %1729 = vmatprep.subr.bf16.mxu0 0
    %1730 = vmatpush1.bf16.xpose.msra.mxu0 0
    %1731 = vmatprep.subr.bf16.mxu0 0
    %1732 = vmatpush1.bf16.xpose.msra.mxu0 %v1717
    %1733 = vmatprep.subr.bf16.mxu0 0
    %1734 = vmatpush1.bf16.xpose.msra.mxu0 %v1714
    %1735 = vmatprep.subr.bf16.mxu0 0
    %1736 = vmatpush2.bf16.xpose.msra.mxu0 0
    %1737 = vmatprep.subr.bf16.mxu0 0
    %1738 = vmatpush2.bf16.xpose.msra.mxu0 0
    %1739 = vmatprep.subr.bf16.mxu0 0
    %1740 = vmatpush2.bf16.xpose.msra.mxu0 0
    %1741 = vmatprep.subr.bf16.mxu0 0
    %1742 = vmatpush2.bf16.xpose.msra.mxu0 0
    %1743 = vmatprep.subr.bf16.mxu0 0
    %1744 = vmatpush2.bf16.xpose.msra.mxu0 0
    %1745 = vmatprep.subr.bf16.mxu0 0
    %1746 = vmatpush2.bf16.xpose.msra.mxu0 0
    %1747 = vmatprep.subr.bf16.mxu0 0
    %1748 = vmatpush2.bf16.xpose.msra.mxu0 0
    %1749 = vmatprep.subr.bf16.mxu0 0
    %1750 = vmatpush2.bf16.xpose.msra.mxu0 0
    %1751 = vmatprep.mubr.bf16.mxu0 0
    %1752 = vmatmul.mubr.bf16.gmra.mxu0 %v1690
    %v1753 = vpop.f32.mrf.mxu0
    %v1754 = vadd.f32 0.0, %v1753
    %v1755 = vpop.f32.mrf.mxu0
    %v1756 = vpop.f32.mrf.mxu0
    %v1757 = vadd.f32 0.0, %v1756
    %v1758 = vpop.f32.mrf.mxu0
    %1759 = vmatprep.mubr.bf16.mxu0 0
    %1760 = vmatmul.mubr.bf16.gmra.mxu0 %v1693
    %v1761 = vpop.f32.mrf.mxu0
    %v1762 = vadd.f32 0.0, %v1761
    %v1763 = vpop.f32.mrf.mxu0
    %v1764 = vpop.f32.mrf.mxu0
    %v1765 = vadd.f32 0.0, %v1764
    %v1766 = vpop.f32.mrf.mxu0
    %1767 = vmatprep.mubr.bf16.mxu0 0
    %1768 = vmatmul.mubr.bf16.gmra.mxu0 %v1696
    %v1769 = vpop.f32.mrf.mxu0
    %v1770 = vadd.f32 0.0, %v1769
    %v1771 = vpop.f32.mrf.mxu0
    %v1772 = vpop.f32.mrf.mxu0
    %v1773 = vadd.f32 0.0, %v1772
    %v1774 = vpop.f32.mrf.mxu0
    %1775 = vmatprep.mubr.bf16.mxu0 0
    %1776 = vmatmul.mubr.bf16.gmra.mxu0 %v1699
    %v1777 = vpop.f32.mrf.mxu0
    %v1778 = vadd.f32 0.0, %v1777
    %v1779 = vpop.f32.mrf.mxu0
    %v1780 = vpop.f32.mrf.mxu0
    %v1781 = vadd.f32 0.0, %v1780
    %v1782 = vpop.f32.mrf.mxu0
    %1783 = vmatprep.mubr.bf16.mxu0 0
    %1784 = vmatmul.mubr.bf16.gmra.mxu0 %v1702
    %v1785 = vpop.f32.mrf.mxu0
    %v1786 = vadd.f32 0.0, %v1785
    %v1787 = vpop.f32.mrf.mxu0
    %v1788 = vpop.f32.mrf.mxu0
    %v1789 = vadd.f32 0.0, %v1788
    %v1790 = vpop.f32.mrf.mxu0
    %1791 = vmatprep.mubr.bf16.mxu0 0
    %1792 = vmatmul.mubr.bf16.gmra.mxu0 %v1705
    %v1793 = vpop.f32.mrf.mxu0
    %v1794 = vadd.f32 0.0, %v1793
    %v1795 = vpop.f32.mrf.mxu0
    %v1796 = vpop.f32.mrf.mxu0
    %v1797 = vadd.f32 0.0, %v1796
    %v1798 = vpop.f32.mrf.mxu0
    %1799 = vmatprep.mubr.bf16.mxu0 0
    %1800 = vmatmul.mubr.bf16.gmra.mxu0 %v1708
    %v1801 = vpop.f32.mrf.mxu0
    %v1802 = vadd.f32 0.0, %v1801
    %v1803 = vpop.f32.mrf.mxu0
    %v1804 = vpop.f32.mrf.mxu0
    %v1805 = vadd.f32 0.0, %v1804
    %v1806 = vpop.f32.mrf.mxu0
    %1807 = vmatprep.mubr.bf16.mxu0 0
    %1808 = vmatmul.mubr.bf16.gmra.mxu0 %v1711
    %v1809 = vpop.f32.mrf.mxu0
    %v1810 = vadd.f32 0.0, %v1809
    %v1811 = vpop.f32.mrf.mxu0
    %v1812 = vpop.f32.mrf.mxu0
    %v1813 = vadd.f32 0.0, %v1812
    %v1814 = vpop.f32.mrf.mxu0
    %1815 = vdwg.mxu0
    %v1817 = vsel %vm553, %v1071, 0
    %v1820 = vsel %vm553, %v1072, 0
    %v1823 = vsel %vm553, %v1073, 0
    %v1826 = vsel %vm553, %v1074, 0
    %v1829 = vsel %vm553, %v1075, 0
    %v1832 = vsel %vm553, %v1076, 0
    %v1835 = vsel %vm553, %v1077, 0
    %v1838 = vsel %vm553, %v1078, 0
    %v1841 = vsel %vm553, %v172, 0
    %v1844 = vsel %vm553, %v173, 0
    %1846 = vmatprep.subr.bf16.mxu0 0
    %1847 = vmatpush1.bf16.xpose.msra.mxu0 0
    %1848 = vmatprep.subr.bf16.mxu0 0
    %1849 = vmatpush1.bf16.xpose.msra.mxu0 0
    %1850 = vmatprep.subr.bf16.mxu0 0
    %1851 = vmatpush1.bf16.xpose.msra.mxu0 0
    %1852 = vmatprep.subr.bf16.mxu0 0
    %1853 = vmatpush1.bf16.xpose.msra.mxu0 0
    %1854 = vmatprep.subr.bf16.mxu0 0
    %1855 = vmatpush1.bf16.xpose.msra.mxu0 0
    %1856 = vmatprep.subr.bf16.mxu0 0
    %1857 = vmatpush1.bf16.xpose.msra.mxu0 0
    %1858 = vmatprep.subr.bf16.mxu0 0
    %1859 = vmatpush1.bf16.xpose.msra.mxu0 %v1844
    %1860 = vmatprep.subr.bf16.mxu0 0
    %1861 = vmatpush1.bf16.xpose.msra.mxu0 %v1841
    %1862 = vmatprep.subr.bf16.mxu0 0
    %1863 = vmatpush2.bf16.xpose.msra.mxu0 0
    %1864 = vmatprep.subr.bf16.mxu0 0
    %1865 = vmatpush2.bf16.xpose.msra.mxu0 0
    %1866 = vmatprep.subr.bf16.mxu0 0
    %1867 = vmatpush2.bf16.xpose.msra.mxu0 0
    %1868 = vmatprep.subr.bf16.mxu0 0
    %1869 = vmatpush2.bf16.xpose.msra.mxu0 0
    %1870 = vmatprep.subr.bf16.mxu0 0
    %1871 = vmatpush2.bf16.xpose.msra.mxu0 0
    %1872 = vmatprep.subr.bf16.mxu0 0
    %1873 = vmatpush2.bf16.xpose.msra.mxu0 0
    %1874 = vmatprep.subr.bf16.mxu0 0
    %1875 = vmatpush2.bf16.xpose.msra.mxu0 0
    %1876 = vmatprep.subr.bf16.mxu0 0
    %1877 = vmatpush2.bf16.xpose.msra.mxu0 0
    %1878 = vmatprep.mubr.bf16.mxu0 0
    %1879 = vmatmul.mubr.bf16.gmra.mxu0 %v1817
    %v1880 = vpop.f32.mrf.mxu0
    %v1881 = vadd.f32 %v1754, %v1880
    %v1882 = vpop.f32.mrf.mxu0
    %v1883 = vpop.f32.mrf.mxu0
    %v1884 = vadd.f32 %v1757, %v1883
    %v1885 = vpop.f32.mrf.mxu0
    %1886 = vmatprep.mubr.bf16.mxu0 0
    %1887 = vmatmul.mubr.bf16.gmra.mxu0 %v1820
    %v1888 = vpop.f32.mrf.mxu0
    %v1889 = vadd.f32 %v1762, %v1888
    %v1890 = vpop.f32.mrf.mxu0
    %v1891 = vpop.f32.mrf.mxu0
    %v1892 = vadd.f32 %v1765, %v1891
    %v1893 = vpop.f32.mrf.mxu0
    %1894 = vmatprep.mubr.bf16.mxu0 0
    %1895 = vmatmul.mubr.bf16.gmra.mxu0 %v1823
    %v1896 = vpop.f32.mrf.mxu0
    %v1897 = vadd.f32 %v1770, %v1896
    %v1898 = vpop.f32.mrf.mxu0
    %v1899 = vpop.f32.mrf.mxu0
    %v1900 = vadd.f32 %v1773, %v1899
    %v1901 = vpop.f32.mrf.mxu0
    %1902 = vmatprep.mubr.bf16.mxu0 0
    %1903 = vmatmul.mubr.bf16.gmra.mxu0 %v1826
    %v1904 = vpop.f32.mrf.mxu0
    %v1905 = vadd.f32 %v1778, %v1904
    %v1906 = vpop.f32.mrf.mxu0
    %v1907 = vpop.f32.mrf.mxu0
    %v1908 = vadd.f32 %v1781, %v1907
    %v1909 = vpop.f32.mrf.mxu0
    %1910 = vmatprep.mubr.bf16.mxu0 0
    %1911 = vmatmul.mubr.bf16.gmra.mxu0 %v1829
    %v1912 = vpop.f32.mrf.mxu0
    %v1913 = vadd.f32 %v1786, %v1912
    %v1914 = vpop.f32.mrf.mxu0
    %v1915 = vpop.f32.mrf.mxu0
    %v1916 = vadd.f32 %v1789, %v1915
    %v1917 = vpop.f32.mrf.mxu0
    %1918 = vmatprep.mubr.bf16.mxu0 0
    %1919 = vmatmul.mubr.bf16.gmra.mxu0 %v1832
    %v1920 = vpop.f32.mrf.mxu0
    %v1921 = vadd.f32 %v1794, %v1920
    %v1922 = vpop.f32.mrf.mxu0
    %v1923 = vpop.f32.mrf.mxu0
    %v1924 = vadd.f32 %v1797, %v1923
    %v1925 = vpop.f32.mrf.mxu0
    %1926 = vmatprep.mubr.bf16.mxu0 0
    %1927 = vmatmul.mubr.bf16.gmra.mxu0 %v1835
    %v1928 = vpop.f32.mrf.mxu0
    %v1929 = vadd.f32 %v1802, %v1928
    %v1930 = vpop.f32.mrf.mxu0
    %v1931 = vpop.f32.mrf.mxu0
    %v1932 = vadd.f32 %v1805, %v1931
    %v1933 = vpop.f32.mrf.mxu0
    %1934 = vmatprep.mubr.bf16.mxu0 0
    %1935 = vmatmul.mubr.bf16.gmra.mxu0 %v1838
    %v1936 = vpop.f32.mrf.mxu0
    %v1937 = vadd.f32 %v1810, %v1936
    %v1938 = vpop.f32.mrf.mxu0
    %v1939 = vpop.f32.mrf.mxu0
    %v1940 = vadd.f32 %v1813, %v1939
    %v1941 = vpop.f32.mrf.mxu0
    %1942 = vdwg.mxu0
    %1943 = vrot.lane.b32.xlu0 %v529, 112
    %v1944 = vpop.permute.xlu0 %1943
    %1945 = vrot.lane.b32.xlu0 %v530, 112
    %v1946 = vpop.permute.xlu0 %1945
    %1947 = vrot.lane.b32.xlu0 %v531, 112
    %v1948 = vpop.permute.xlu0 %1947
    %1949 = vrot.lane.b32.xlu0 %v532, 112
    %v1950 = vpop.permute.xlu0 %1949
    %1951 = vrot.lane.b32.xlu0 %v537, 112
    %v1952 = vpop.permute.xlu0 %1951
    %1953 = vrot.lane.b32.xlu0 %v538, 112
    %v1954 = vpop.permute.xlu0 %1953
    %1955 = vrot.lane.b32.xlu0 %v539, 112
    %v1956 = vpop.permute.xlu0 %1955
    %1957 = vrot.lane.b32.xlu0 %v540, 112
    %v1958 = vpop.permute.xlu0 %1957
    %v1960 = vsel %vm553, %v1944, 0
    %v1963 = vsel %vm553, %v1946, 0
    %v1966 = vsel %vm553, %v1948, 0
    %v1969 = vsel %vm553, %v1950, 0
    %v1972 = vsel %vm553, %v1952, 0
    %v1975 = vsel %vm553, %v1954, 0
    %v1978 = vsel %vm553, %v1956, 0
    %v1981 = vsel %vm553, %v1958, 0
    %1983 = vmatprep.subr.bf16.mxu0 0
    %1984 = vmatpush1.bf16.xpose.msra.mxu0 0
    %1985 = vmatprep.subr.bf16.mxu0 0
    %1986 = vmatpush1.bf16.xpose.msra.mxu0 0
    %1987 = vmatprep.subr.bf16.mxu0 0
    %1988 = vmatpush1.bf16.xpose.msra.mxu0 0
    %1989 = vmatprep.subr.bf16.mxu0 0
    %1990 = vmatpush1.bf16.xpose.msra.mxu0 0
    %1991 = vmatprep.subr.bf16.mxu0 0
    %1992 = vmatpush1.bf16.xpose.msra.mxu0 %v1981
    %1993 = vmatprep.subr.bf16.mxu0 0
    %1994 = vmatpush1.bf16.xpose.msra.mxu0 %v1978
    %1995 = vmatprep.subr.bf16.mxu0 0
    %1996 = vmatpush1.bf16.xpose.msra.mxu0 %v1975
    %1997 = vmatprep.subr.bf16.mxu0 0
    %1998 = vmatpush1.bf16.xpose.msra.mxu0 %v1972
    %1999 = vmatprep.subr.bf16.mxu0 0
    %2000 = vmatpush2.bf16.xpose.msra.mxu0 0
    %2001 = vmatprep.subr.bf16.mxu0 0
    %2002 = vmatpush2.bf16.xpose.msra.mxu0 0
    %2003 = vmatprep.subr.bf16.mxu0 0
    %2004 = vmatpush2.bf16.xpose.msra.mxu0 0
    %2005 = vmatprep.subr.bf16.mxu0 0
    %2006 = vmatpush2.bf16.xpose.msra.mxu0 0
    %2007 = vmatprep.subr.bf16.mxu0 0
    %2008 = vmatpush2.bf16.xpose.msra.mxu0 0
    %2009 = vmatprep.subr.bf16.mxu0 0
    %2010 = vmatpush2.bf16.xpose.msra.mxu0 0
    %2011 = vmatprep.subr.bf16.mxu0 0
    %2012 = vmatpush2.bf16.xpose.msra.mxu0 0
    %2013 = vmatprep.subr.bf16.mxu0 0
    %2014 = vmatpush2.bf16.xpose.msra.mxu0 0
    %2015 = vmatprep.mubr.bf16.mxu0 0
    %2016 = vmatmul.mubr.bf16.gmra.mxu0 %v1960
    %v2017 = vpop.f32.mrf.mxu0
    %v2018 = vadd.f32 0.0, %v2017
    %v2019 = vpop.f32.mrf.mxu0
    %v2020 = vpop.f32.mrf.mxu0
    %v2021 = vadd.f32 0.0, %v2020
    %v2022 = vpop.f32.mrf.mxu0
    %2023 = vmatprep.mubr.bf16.mxu0 0
    %2024 = vmatmul.mubr.bf16.gmra.mxu0 %v1963
    %v2025 = vpop.f32.mrf.mxu0
    %v2026 = vadd.f32 0.0, %v2025
    %v2027 = vpop.f32.mrf.mxu0
    %v2028 = vpop.f32.mrf.mxu0
    %v2029 = vadd.f32 0.0, %v2028
    %v2030 = vpop.f32.mrf.mxu0
    %2031 = vmatprep.mubr.bf16.mxu0 0
    %2032 = vmatmul.mubr.bf16.gmra.mxu0 %v1966
    %v2033 = vpop.f32.mrf.mxu0
    %v2034 = vadd.f32 0.0, %v2033
    %v2035 = vpop.f32.mrf.mxu0
    %v2036 = vpop.f32.mrf.mxu0
    %v2037 = vadd.f32 0.0, %v2036
    %v2038 = vpop.f32.mrf.mxu0
    %2039 = vmatprep.mubr.bf16.mxu0 0
    %2040 = vmatmul.mubr.bf16.gmra.mxu0 %v1969
    %v2041 = vpop.f32.mrf.mxu0
    %v2042 = vadd.f32 0.0, %v2041
    %v2043 = vpop.f32.mrf.mxu0
    %v2044 = vpop.f32.mrf.mxu0
    %v2045 = vadd.f32 0.0, %v2044
    %v2046 = vpop.f32.mrf.mxu0
    %2047 = vdwg.mxu0
    %2048 = vrot.lane.b32.xlu0 %v533, 112
    %v2049 = vpop.permute.xlu0 %2048
    %2050 = vrot.lane.b32.xlu0 %v534, 112
    %v2051 = vpop.permute.xlu0 %2050
    %2052 = vrot.lane.b32.xlu0 %v535, 112
    %v2053 = vpop.permute.xlu0 %2052
    %2054 = vrot.lane.b32.xlu0 %v536, 112
    %v2055 = vpop.permute.xlu0 %2054
    %2056 = vrot.lane.b32.xlu0 %v541, 112
    %v2057 = vpop.permute.xlu0 %2056
    %2058 = vrot.lane.b32.xlu0 %v542, 112
    %v2059 = vpop.permute.xlu0 %2058
    %2060 = vrot.lane.b32.xlu0 %v543, 112
    %v2061 = vpop.permute.xlu0 %2060
    %2062 = vrot.lane.b32.xlu0 %v544, 112
    %v2063 = vpop.permute.xlu0 %2062
    %v2065 = vsel %vm553, %v2049, 0
    %v2068 = vsel %vm553, %v2051, 0
    %v2071 = vsel %vm553, %v2053, 0
    %v2074 = vsel %vm553, %v2055, 0
    %v2077 = vsel %vm553, %v2057, 0
    %v2080 = vsel %vm553, %v2059, 0
    %v2083 = vsel %vm553, %v2061, 0
    %v2086 = vsel %vm553, %v2063, 0
    %2088 = vmatprep.subr.bf16.mxu0 0
    %2089 = vmatpush1.bf16.xpose.msra.mxu0 0
    %2090 = vmatprep.subr.bf16.mxu0 0
    %2091 = vmatpush1.bf16.xpose.msra.mxu0 0
    %2092 = vmatprep.subr.bf16.mxu0 0
    %2093 = vmatpush1.bf16.xpose.msra.mxu0 0
    %2094 = vmatprep.subr.bf16.mxu0 0
    %2095 = vmatpush1.bf16.xpose.msra.mxu0 0
    %2096 = vmatprep.subr.bf16.mxu0 0
    %2097 = vmatpush1.bf16.xpose.msra.mxu0 %v2086
    %2098 = vmatprep.subr.bf16.mxu0 0
    %2099 = vmatpush1.bf16.xpose.msra.mxu0 %v2083
    %2100 = vmatprep.subr.bf16.mxu0 0
    %2101 = vmatpush1.bf16.xpose.msra.mxu0 %v2080
    %2102 = vmatprep.subr.bf16.mxu0 0
    %2103 = vmatpush1.bf16.xpose.msra.mxu0 %v2077
    %2104 = vmatprep.subr.bf16.mxu0 0
    %2105 = vmatpush2.bf16.xpose.msra.mxu0 0
    %2106 = vmatprep.subr.bf16.mxu0 0
    %2107 = vmatpush2.bf16.xpose.msra.mxu0 0
    %2108 = vmatprep.subr.bf16.mxu0 0
    %2109 = vmatpush2.bf16.xpose.msra.mxu0 0
    %2110 = vmatprep.subr.bf16.mxu0 0
    %2111 = vmatpush2.bf16.xpose.msra.mxu0 0
    %2112 = vmatprep.subr.bf16.mxu0 0
    %2113 = vmatpush2.bf16.xpose.msra.mxu0 0
    %2114 = vmatprep.subr.bf16.mxu0 0
    %2115 = vmatpush2.bf16.xpose.msra.mxu0 0
    %2116 = vmatprep.subr.bf16.mxu0 0
    %2117 = vmatpush2.bf16.xpose.msra.mxu0 0
    %2118 = vmatprep.subr.bf16.mxu0 0
    %2119 = vmatpush2.bf16.xpose.msra.mxu0 0
    %2120 = vmatprep.mubr.bf16.mxu0 0
    %2121 = vmatmul.mubr.bf16.gmra.mxu0 %v2065
    %v2122 = vpop.f32.mrf.mxu0
    %v2123 = vadd.f32 0.0, %v2122
    %v2124 = vpop.f32.mrf.mxu0
    %v2125 = vpop.f32.mrf.mxu0
    %v2126 = vadd.f32 0.0, %v2125
    %v2127 = vpop.f32.mrf.mxu0
    %2128 = vmatprep.mubr.bf16.mxu0 0
    %2129 = vmatmul.mubr.bf16.gmra.mxu0 %v2068
    %v2130 = vpop.f32.mrf.mxu0
    %v2131 = vadd.f32 0.0, %v2130
    %v2132 = vpop.f32.mrf.mxu0
    %v2133 = vpop.f32.mrf.mxu0
    %v2134 = vadd.f32 0.0, %v2133
    %v2135 = vpop.f32.mrf.mxu0
    %2136 = vmatprep.mubr.bf16.mxu0 0
    %2137 = vmatmul.mubr.bf16.gmra.mxu0 %v2071
    %v2138 = vpop.f32.mrf.mxu0
    %v2139 = vadd.f32 0.0, %v2138
    %v2140 = vpop.f32.mrf.mxu0
    %v2141 = vpop.f32.mrf.mxu0
    %v2142 = vadd.f32 0.0, %v2141
    %v2143 = vpop.f32.mrf.mxu0
    %2144 = vmatprep.mubr.bf16.mxu0 0
    %2145 = vmatmul.mubr.bf16.gmra.mxu0 %v2074
    %v2146 = vpop.f32.mrf.mxu0
    %v2147 = vadd.f32 0.0, %v2146
    %v2148 = vpop.f32.mrf.mxu0
    %v2149 = vpop.f32.mrf.mxu0
    %v2150 = vadd.f32 0.0, %v2149
    %v2151 = vpop.f32.mrf.mxu0
    %2152 = vdwg.mxu0
    %v2153 = vsel %vm732, %v2018, -inf
    %2154 = vmax.xlane.f32.xlu0 %v2153
    %v2155 = vpop.xlane.xlu0 %2154
    %v2156 = vsel %vm732, %v2021, -inf
    %2157 = vmax.xlane.f32.xlu0 %v2156
    %v2158 = vpop.xlane.xlu0 %2157
    %v2159 = vsel %vm732, %v2026, -inf
    %2160 = vmax.xlane.f32.xlu0 %v2159
    %v2161 = vpop.xlane.xlu0 %2160
    %v2162 = vsel %vm732, %v2029, -inf
    %2163 = vmax.xlane.f32.xlu0 %v2162
    %v2164 = vpop.xlane.xlu0 %2163
    %v2165 = vsel %vm732, %v2034, -inf
    %2166 = vmax.xlane.f32.xlu0 %v2165
    %v2167 = vpop.xlane.xlu0 %2166
    %v2168 = vsel %vm732, %v2037, -inf
    %2169 = vmax.xlane.f32.xlu0 %v2168
    %v2170 = vpop.xlane.xlu0 %2169
    %v2171 = vsel %vm732, %v2042, -inf
    %2172 = vmax.xlane.f32.xlu0 %v2171
    %v2173 = vpop.xlane.xlu0 %2172
    %v2174 = vsel %vm732, %v2045, -inf
    %2175 = vmax.xlane.f32.xlu0 %v2174
    %v2176 = vpop.xlane.xlu0 %2175
    %v2177 = vsel %vm732, %v2123, -inf
    %2178 = vmax.xlane.f32.xlu0 %v2177
    %v2179 = vpop.xlane.xlu0 %2178
    %v2180 = vsel %vm732, %v2126, -inf
    %2181 = vmax.xlane.f32.xlu0 %v2180
    %v2182 = vpop.xlane.xlu0 %2181
    %v2183 = vsel %vm732, %v2131, -inf
    %2184 = vmax.xlane.f32.xlu0 %v2183
    %v2185 = vpop.xlane.xlu0 %2184
    %v2186 = vsel %vm732, %v2134, -inf
    %2187 = vmax.xlane.f32.xlu0 %v2186
    %v2188 = vpop.xlane.xlu0 %2187
    %v2189 = vsel %vm732, %v2139, -inf
    %2190 = vmax.xlane.f32.xlu0 %v2189
    %v2191 = vpop.xlane.xlu0 %2190
    %v2192 = vsel %vm732, %v2142, -inf
    %2193 = vmax.xlane.f32.xlu0 %v2192
    %v2194 = vpop.xlane.xlu0 %2193
    %v2195 = vsel %vm732, %v2147, -inf
    %2196 = vmax.xlane.f32.xlu0 %v2195
    %v2197 = vpop.xlane.xlu0 %2196
    %v2198 = vsel %vm732, %v2150, -inf
    %2199 = vmax.xlane.f32.xlu0 %v2198
    %v2200 = vpop.xlane.xlu0 %2199
    %v2201 = vsub.f32 %v2018, %v2155
    %v2202 = vsub.f32 %v2021, %v2158
    %v2203 = vsub.f32 %v2026, %v2161
    %v2204 = vsub.f32 %v2029, %v2164
    %v2205 = vsub.f32 %v2034, %v2167
    %v2206 = vsub.f32 %v2037, %v2170
    %v2207 = vsub.f32 %v2042, %v2173
    %v2208 = vsub.f32 %v2045, %v2176
    %v2209 = vsub.f32 %v2123, %v2179
    %v2210 = vsub.f32 %v2126, %v2182
    %v2211 = vsub.f32 %v2131, %v2185
    %v2212 = vsub.f32 %v2134, %v2188
    %v2213 = vsub.f32 %v2139, %v2191
    %v2214 = vsub.f32 %v2142, %v2194
    %v2215 = vsub.f32 %v2147, %v2197
    %v2216 = vsub.f32 %v2150, %v2200
    %v2217 = vmul.f32 %v2201, 1.442695
    %v2218 = vpow.pop %v2217
    %v2219 = vmul.f32 %v2202, 1.442695
    %v2220 = vpow.pop %v2219
    %v2221 = vmul.f32 %v2203, 1.442695
    %v2222 = vpow.pop %v2221
    %v2223 = vmul.f32 %v2204, 1.442695
    %v2224 = vpow.pop %v2223
    %v2225 = vmul.f32 %v2205, 1.442695
    %v2226 = vpow.pop %v2225
    %v2227 = vmul.f32 %v2206, 1.442695
    %v2228 = vpow.pop %v2227
    %v2229 = vmul.f32 %v2207, 1.442695
    %v2230 = vpow.pop %v2229
    %v2231 = vmul.f32 %v2208, 1.442695
    %v2232 = vpow.pop %v2231
    %v2233 = vmul.f32 %v2209, 1.442695
    %v2234 = vpow.pop %v2233
    %v2235 = vmul.f32 %v2210, 1.442695
    %v2236 = vpow.pop %v2235
    %v2237 = vmul.f32 %v2211, 1.442695
    %v2238 = vpow.pop %v2237
    %v2239 = vmul.f32 %v2212, 1.442695
    %v2240 = vpow.pop %v2239
    %v2241 = vmul.f32 %v2213, 1.442695
    %v2242 = vpow.pop %v2241
    %v2243 = vmul.f32 %v2214, 1.442695
    %v2244 = vpow.pop %v2243
    %v2245 = vmul.f32 %v2215, 1.442695
    %v2246 = vpow.pop %v2245
    %v2247 = vmul.f32 %v2216, 1.442695
    %v2248 = vpow.pop %v2247
    %v2249 = vsel %vm732, %v2218, 0.0
    %2250 = vadd.xlane.f32.xlu0 %v2249
    %v2251 = vpop.xlane.xlu0 %2250
    %v2252 = vsel %vm732, %v2220, 0.0
    %2253 = vadd.xlane.f32.xlu0 %v2252
    %v2254 = vpop.xlane.xlu0 %2253
    %v2255 = vsel %vm732, %v2222, 0.0
    %2256 = vadd.xlane.f32.xlu0 %v2255
    %v2257 = vpop.xlane.xlu0 %2256
    %v2258 = vsel %vm732, %v2224, 0.0
    %2259 = vadd.xlane.f32.xlu0 %v2258
    %v2260 = vpop.xlane.xlu0 %2259
    %v2261 = vsel %vm732, %v2226, 0.0
    %2262 = vadd.xlane.f32.xlu0 %v2261
    %v2263 = vpop.xlane.xlu0 %2262
    %v2264 = vsel %vm732, %v2228, 0.0
    %2265 = vadd.xlane.f32.xlu0 %v2264
    %v2266 = vpop.xlane.xlu0 %2265
    %v2267 = vsel %vm732, %v2230, 0.0
    %2268 = vadd.xlane.f32.xlu0 %v2267
    %v2269 = vpop.xlane.xlu0 %2268
    %v2270 = vsel %vm732, %v2232, 0.0
    %2271 = vadd.xlane.f32.xlu0 %v2270
    %v2272 = vpop.xlane.xlu0 %2271
    %v2273 = vsel %vm732, %v2234, 0.0
    %2274 = vadd.xlane.f32.xlu0 %v2273
    %v2275 = vpop.xlane.xlu0 %2274
    %v2276 = vsel %vm732, %v2236, 0.0
    %2277 = vadd.xlane.f32.xlu0 %v2276
    %v2278 = vpop.xlane.xlu0 %2277
    %v2279 = vsel %vm732, %v2238, 0.0
    %2280 = vadd.xlane.f32.xlu0 %v2279
    %v2281 = vpop.xlane.xlu0 %2280
    %v2282 = vsel %vm732, %v2240, 0.0
    %2283 = vadd.xlane.f32.xlu0 %v2282
    %v2284 = vpop.xlane.xlu0 %2283
    %v2285 = vsel %vm732, %v2242, 0.0
    %2286 = vadd.xlane.f32.xlu0 %v2285
    %v2287 = vpop.xlane.xlu0 %2286
    %v2288 = vsel %vm732, %v2244, 0.0
    %2289 = vadd.xlane.f32.xlu0 %v2288
    %v2290 = vpop.xlane.xlu0 %2289
    %v2291 = vsel %vm732, %v2246, 0.0
    %2292 = vadd.xlane.f32.xlu0 %v2291
    %v2293 = vpop.xlane.xlu0 %2292
    %v2294 = vsel %vm732, %v2248, 0.0
    %2295 = vadd.xlane.f32.xlu0 %v2294
    %v2296 = vpop.xlane.xlu0 %2295
    %v2297 = vpack.c.bf16 %v2220, %v2218
    %v2298 = vpack.c.bf16 %v2224, %v2222
    %v2299 = vpack.c.bf16 %v2228, %v2226
    %v2300 = vpack.c.bf16 %v2232, %v2230
    %v2301 = vpack.c.bf16 %v2236, %v2234
    %v2302 = vpack.c.bf16 %v2240, %v2238
    %v2303 = vpack.c.bf16 %v2244, %v2242
    %v2304 = vpack.c.bf16 %v2248, %v2246
    %2305 = vrot.lane.b32.xlu0 %v545, 112
    %v2306 = vpop.permute.xlu0 %2305
    %2307 = vrot.lane.b32.xlu0 %v546, 112
    %v2308 = vpop.permute.xlu0 %2307
    %2309 = vrot.lane.b32.xlu0 %v547, 112
    %v2310 = vpop.permute.xlu0 %2309
    %2311 = vrot.lane.b32.xlu0 %v548, 112
    %v2312 = vpop.permute.xlu0 %2311
    %v2318 = vsel %vm732, %v2297, 0
    %v2321 = vsel %vm732, %v2298, 0
    %v2324 = vsel %vm732, %v2299, 0
    %v2327 = vsel %vm732, %v2300, 0
    %2329 = vmatprep.subr.bf16.mxu0 0
    %2330 = vmatpush1.bf16.msra.mxu0 0
    %2331 = vmatprep.subr.bf16.mxu0 0
    %2332 = vmatpush1.bf16.msra.mxu0 0
    %2333 = vmatprep.subr.bf16.mxu0 0
    %2334 = vmatpush1.bf16.msra.mxu0 0
    %2335 = vmatprep.subr.bf16.mxu0 0
    %2336 = vmatpush1.bf16.msra.mxu0 0
    %2337 = vmatprep.subr.bf16.mxu0 0
    %2338 = vmatpush1.bf16.msra.mxu0 %v2312
    %2339 = vmatprep.subr.bf16.mxu0 0
    %2340 = vmatpush1.bf16.msra.mxu0 %v2310
    %2341 = vmatprep.subr.bf16.mxu0 0
    %2342 = vmatpush1.bf16.msra.mxu0 %v2308
    %2343 = vmatprep.subr.bf16.mxu0 0
    %2344 = vmatpush1.bf16.msra.mxu0 %v2306
    %2345 = vmatprep.subr.bf16.mxu0 0
    %2346 = vmatpush2.bf16.msra.mxu0 0
    %2347 = vmatprep.subr.bf16.mxu0 0
    %2348 = vmatpush2.bf16.msra.mxu0 0
    %2349 = vmatprep.subr.bf16.mxu0 0
    %2350 = vmatpush2.bf16.msra.mxu0 0
    %2351 = vmatprep.subr.bf16.mxu0 0
    %2352 = vmatpush2.bf16.msra.mxu0 0
    %2353 = vmatprep.subr.bf16.mxu0 0
    %2354 = vmatpush2.bf16.msra.mxu0 0
    %2355 = vmatprep.subr.bf16.mxu0 0
    %2356 = vmatpush2.bf16.msra.mxu0 0
    %2357 = vmatprep.subr.bf16.mxu0 0
    %2358 = vmatpush2.bf16.msra.mxu0 0
    %2359 = vmatprep.subr.bf16.mxu0 0
    %2360 = vmatpush2.bf16.msra.mxu0 0
    %2361 = vmatprep.mubr.bf16.mxu0 0
    %2362 = vmatmul.mubr.bf16.gmra.mxu0 %v2318
    %v2363 = vpop.f32.mrf.mxu0
    %v2364 = vadd.f32 0.0, %v2363
    %v2365 = vpop.f32.mrf.mxu0
    %v2366 = vpop.f32.mrf.mxu0
    %v2367 = vadd.f32 0.0, %v2366
    %v2368 = vpop.f32.mrf.mxu0
    %2369 = vmatprep.mubr.bf16.mxu0 0
    %2370 = vmatmul.mubr.bf16.gmra.mxu0 %v2321
    %v2371 = vpop.f32.mrf.mxu0
    %v2372 = vadd.f32 0.0, %v2371
    %v2373 = vpop.f32.mrf.mxu0
    %v2374 = vpop.f32.mrf.mxu0
    %v2375 = vadd.f32 0.0, %v2374
    %v2376 = vpop.f32.mrf.mxu0
    %2377 = vmatprep.mubr.bf16.mxu0 0
    %2378 = vmatmul.mubr.bf16.gmra.mxu0 %v2324
    %v2379 = vpop.f32.mrf.mxu0
    %v2380 = vadd.f32 0.0, %v2379
    %v2381 = vpop.f32.mrf.mxu0
    %v2382 = vpop.f32.mrf.mxu0
    %v2383 = vadd.f32 0.0, %v2382
    %v2384 = vpop.f32.mrf.mxu0
    %2385 = vmatprep.mubr.bf16.mxu0 0
    %2386 = vmatmul.mubr.bf16.gmra.mxu0 %v2327
    %v2387 = vpop.f32.mrf.mxu0
    %v2388 = vadd.f32 0.0, %v2387
    %v2389 = vpop.f32.mrf.mxu0
    %v2390 = vpop.f32.mrf.mxu0
    %v2391 = vadd.f32 0.0, %v2390
    %v2392 = vpop.f32.mrf.mxu0
    %2393 = vdwg.mxu0
    %2394 = vrot.lane.b32.xlu0 %v549, 112
    %v2395 = vpop.permute.xlu0 %2394
    %2396 = vrot.lane.b32.xlu0 %v550, 112
    %v2397 = vpop.permute.xlu0 %2396
    %2398 = vrot.lane.b32.xlu0 %v551, 112
    %v2399 = vpop.permute.xlu0 %2398
    %2400 = vrot.lane.b32.xlu0 %v552, 112
    %v2401 = vpop.permute.xlu0 %2400
    %v2407 = vsel %vm732, %v2301, 0
    %v2410 = vsel %vm732, %v2302, 0
    %v2413 = vsel %vm732, %v2303, 0
    %v2416 = vsel %vm732, %v2304, 0
    %2418 = vmatprep.subr.bf16.mxu0 0
    %2419 = vmatpush1.bf16.msra.mxu0 0
    %2420 = vmatprep.subr.bf16.mxu0 0
    %2421 = vmatpush1.bf16.msra.mxu0 0
    %2422 = vmatprep.subr.bf16.mxu0 0
    %2423 = vmatpush1.bf16.msra.mxu0 0
    %2424 = vmatprep.subr.bf16.mxu0 0
    %2425 = vmatpush1.bf16.msra.mxu0 0
    %2426 = vmatprep.subr.bf16.mxu0 0
    %2427 = vmatpush1.bf16.msra.mxu0 %v2401
    %2428 = vmatprep.subr.bf16.mxu0 0
    %2429 = vmatpush1.bf16.msra.mxu0 %v2399
    %2430 = vmatprep.subr.bf16.mxu0 0
    %2431 = vmatpush1.bf16.msra.mxu0 %v2397
    %2432 = vmatprep.subr.bf16.mxu0 0
    %2433 = vmatpush1.bf16.msra.mxu0 %v2395
    %2434 = vmatprep.subr.bf16.mxu0 0
    %2435 = vmatpush2.bf16.msra.mxu0 0
    %2436 = vmatprep.subr.bf16.mxu0 0
    %2437 = vmatpush2.bf16.msra.mxu0 0
    %2438 = vmatprep.subr.bf16.mxu0 0
    %2439 = vmatpush2.bf16.msra.mxu0 0
    %2440 = vmatprep.subr.bf16.mxu0 0
    %2441 = vmatpush2.bf16.msra.mxu0 0
    %2442 = vmatprep.subr.bf16.mxu0 0
    %2443 = vmatpush2.bf16.msra.mxu0 0
    %2444 = vmatprep.subr.bf16.mxu0 0
    %2445 = vmatpush2.bf16.msra.mxu0 0
    %2446 = vmatprep.subr.bf16.mxu0 0
    %2447 = vmatpush2.bf16.msra.mxu0 0
    %2448 = vmatprep.subr.bf16.mxu0 0
    %2449 = vmatpush2.bf16.msra.mxu0 0
    %2450 = vmatprep.mubr.bf16.mxu0 0
    %2451 = vmatmul.mubr.bf16.gmra.mxu0 %v2407
    %v2452 = vpop.f32.mrf.mxu0
    %v2453 = vadd.f32 0.0, %v2452
    %v2454 = vpop.f32.mrf.mxu0
    %v2455 = vpop.f32.mrf.mxu0
    %v2456 = vadd.f32 0.0, %v2455
    %v2457 = vpop.f32.mrf.mxu0
    %2458 = vmatprep.mubr.bf16.mxu0 0
    %2459 = vmatmul.mubr.bf16.gmra.mxu0 %v2410
    %v2460 = vpop.f32.mrf.mxu0
    %v2461 = vadd.f32 0.0, %v2460
    %v2462 = vpop.f32.mrf.mxu0
    %v2463 = vpop.f32.mrf.mxu0
    %v2464 = vadd.f32 0.0, %v2463
    %v2465 = vpop.f32.mrf.mxu0
    %2466 = vmatprep.mubr.bf16.mxu0 0
    %2467 = vmatmul.mubr.bf16.gmra.mxu0 %v2413
    %v2468 = vpop.f32.mrf.mxu0
    %v2469 = vadd.f32 0.0, %v2468
    %v2470 = vpop.f32.mrf.mxu0
    %v2471 = vpop.f32.mrf.mxu0
    %v2472 = vadd.f32 0.0, %v2471
    %v2473 = vpop.f32.mrf.mxu0
    %2474 = vmatprep.mubr.bf16.mxu0 0
    %2475 = vmatmul.mubr.bf16.gmra.mxu0 %v2416
    %v2476 = vpop.f32.mrf.mxu0
    %v2477 = vadd.f32 0.0, %v2476
    %v2478 = vpop.f32.mrf.mxu0
    %v2479 = vpop.f32.mrf.mxu0
    %v2480 = vadd.f32 0.0, %v2479
    %v2481 = vpop.f32.mrf.mxu0
    %2482 = vdwg.mxu0
    %v2483 = vrcp.pop %v2251
    %v2484 = vrcp.pop %v2254
    %v2485 = vrcp.pop %v2257
    %v2486 = vrcp.pop %v2260
    %v2487 = vrcp.pop %v2263
    %v2488 = vrcp.pop %v2266
    %v2489 = vrcp.pop %v2269
    %v2490 = vrcp.pop %v2272
    %v2491 = vrcp.pop %v2275
    %v2492 = vrcp.pop %v2278
    %v2493 = vrcp.pop %v2281
    %v2494 = vrcp.pop %v2284
    %v2495 = vrcp.pop %v2287
    %v2496 = vrcp.pop %v2290
    %v2497 = vrcp.pop %v2293
    %v2498 = vrcp.pop %v2296
    %v2499 = vmul.f32 %v2364, %v2483
    %v2500 = vmul.f32 %v2367, %v2484
    %v2501 = vmul.f32 %v2372, %v2485
    %v2502 = vmul.f32 %v2375, %v2486
    %v2503 = vmul.f32 %v2380, %v2487
    %v2504 = vmul.f32 %v2383, %v2488
    %v2505 = vmul.f32 %v2388, %v2489
    %v2506 = vmul.f32 %v2391, %v2490
    %v2507 = vmul.f32 %v2453, %v2491
    %v2508 = vmul.f32 %v2456, %v2492
    %v2509 = vmul.f32 %v2461, %v2493
    %v2510 = vmul.f32 %v2464, %v2494
    %v2511 = vmul.f32 %v2469, %v2495
    %v2512 = vmul.f32 %v2472, %v2496
    %v2513 = vmul.f32 %v2477, %v2497
    %v2514 = vmul.f32 %v2480, %v2498
    %v2515 = vpack.c.bf16 %v2500, %v2499
    %v2516 = vpack.c.bf16 %v2502, %v2501
    %v2517 = vpack.c.bf16 %v2504, %v2503
    %v2518 = vpack.c.bf16 %v2506, %v2505
    %v2519 = vpack.c.bf16 %v2508, %v2507
    %v2520 = vpack.c.bf16 %v2510, %v2509
    %v2521 = vpack.c.bf16 %v2512, %v2511
    %v2522 = vpack.c.bf16 %v2514, %v2513
    %2523 = vrot.lane.b32.xlu0 %v172, 112
    %v2524 = vpop.permute.xlu0 %2523
    %2525 = vrot.lane.b32.xlu0 %v173, 112
    %v2526 = vpop.permute.xlu0 %2525
    %v2528 = vsel %vm553, %v2515, 0
    %v2531 = vsel %vm553, %v2516, 0
    %v2534 = vsel %vm553, %v2517, 0
    %v2537 = vsel %vm553, %v2518, 0
    %v2540 = vsel %vm553, %v2519, 0
    %v2543 = vsel %vm553, %v2520, 0
    %v2546 = vsel %vm553, %v2521, 0
    %v2549 = vsel %vm553, %v2522, 0
    %v2552 = vsel %vm553, %v2524, 0
    %v2555 = vsel %vm553, %v2526, 0
    %2557 = vmatprep.subr.bf16.mxu0 0
    %2558 = vmatpush1.bf16.xpose.msra.mxu0 0
    %2559 = vmatprep.subr.bf16.mxu0 0
    %2560 = vmatpush1.bf16.xpose.msra.mxu0 0
    %2561 = vmatprep.subr.bf16.mxu0 0
    %2562 = vmatpush1.bf16.xpose.msra.mxu0 0
    %2563 = vmatprep.subr.bf16.mxu0 0
    %2564 = vmatpush1.bf16.xpose.msra.mxu0 0
    %2565 = vmatprep.subr.bf16.mxu0 0
    %2566 = vmatpush1.bf16.xpose.msra.mxu0 0
    %2567 = vmatprep.subr.bf16.mxu0 0
    %2568 = vmatpush1.bf16.xpose.msra.mxu0 0
    %2569 = vmatprep.subr.bf16.mxu0 0
    %2570 = vmatpush1.bf16.xpose.msra.mxu0 %v2555
    %2571 = vmatprep.subr.bf16.mxu0 0
    %2572 = vmatpush1.bf16.xpose.msra.mxu0 %v2552
    %2573 = vmatprep.subr.bf16.mxu0 0
    %2574 = vmatpush2.bf16.xpose.msra.mxu0 0
    %2575 = vmatprep.subr.bf16.mxu0 0
    %2576 = vmatpush2.bf16.xpose.msra.mxu0 0
    %2577 = vmatprep.subr.bf16.mxu0 0
    %2578 = vmatpush2.bf16.xpose.msra.mxu0 0
    %2579 = vmatprep.subr.bf16.mxu0 0
    %2580 = vmatpush2.bf16.xpose.msra.mxu0 0
    %2581 = vmatprep.subr.bf16.mxu0 0
    %2582 = vmatpush2.bf16.xpose.msra.mxu0 0
    %2583 = vmatprep.subr.bf16.mxu0 0
    %2584 = vmatpush2.bf16.xpose.msra.mxu0 0
    %2585 = vmatprep.subr.bf16.mxu0 0
    %2586 = vmatpush2.bf16.xpose.msra.mxu0 0
    %2587 = vmatprep.subr.bf16.mxu0 0
    %2588 = vmatpush2.bf16.xpose.msra.mxu0 0
    %2589 = vmatprep.mubr.bf16.mxu0 0
    %2590 = vmatmul.mubr.bf16.gmra.mxu0 %v2528
    %v2591 = vpop.f32.mrf.mxu0
    %v2592 = vadd.f32 0.0, %v2591
    %v2593 = vpop.f32.mrf.mxu0
    %v2594 = vpop.f32.mrf.mxu0
    %v2595 = vadd.f32 0.0, %v2594
    %v2596 = vpop.f32.mrf.mxu0
    %2597 = vmatprep.mubr.bf16.mxu0 0
    %2598 = vmatmul.mubr.bf16.gmra.mxu0 %v2531
    %v2599 = vpop.f32.mrf.mxu0
    %v2600 = vadd.f32 0.0, %v2599
    %v2601 = vpop.f32.mrf.mxu0
    %v2602 = vpop.f32.mrf.mxu0
    %v2603 = vadd.f32 0.0, %v2602
    %v2604 = vpop.f32.mrf.mxu0
    %2605 = vmatprep.mubr.bf16.mxu0 0
    %2606 = vmatmul.mubr.bf16.gmra.mxu0 %v2534
    %v2607 = vpop.f32.mrf.mxu0
    %v2608 = vadd.f32 0.0, %v2607
    %v2609 = vpop.f32.mrf.mxu0
    %v2610 = vpop.f32.mrf.mxu0
    %v2611 = vadd.f32 0.0, %v2610
    %v2612 = vpop.f32.mrf.mxu0
    %2613 = vmatprep.mubr.bf16.mxu0 0
    %2614 = vmatmul.mubr.bf16.gmra.mxu0 %v2537
    %v2615 = vpop.f32.mrf.mxu0
    %v2616 = vadd.f32 0.0, %v2615
    %v2617 = vpop.f32.mrf.mxu0
    %v2618 = vpop.f32.mrf.mxu0
    %v2619 = vadd.f32 0.0, %v2618
    %v2620 = vpop.f32.mrf.mxu0
    %2621 = vmatprep.mubr.bf16.mxu0 0
    %2622 = vmatmul.mubr.bf16.gmra.mxu0 %v2540
    %v2623 = vpop.f32.mrf.mxu0
    %v2624 = vadd.f32 0.0, %v2623
    %v2625 = vpop.f32.mrf.mxu0
    %v2626 = vpop.f32.mrf.mxu0
    %v2627 = vadd.f32 0.0, %v2626
    %v2628 = vpop.f32.mrf.mxu0
    %2629 = vmatprep.mubr.bf16.mxu0 0
    %2630 = vmatmul.mubr.bf16.gmra.mxu0 %v2543
    %v2631 = vpop.f32.mrf.mxu0
    %v2632 = vadd.f32 0.0, %v2631
    %v2633 = vpop.f32.mrf.mxu0
    %v2634 = vpop.f32.mrf.mxu0
    %v2635 = vadd.f32 0.0, %v2634
    %v2636 = vpop.f32.mrf.mxu0
    %2637 = vmatprep.mubr.bf16.mxu0 0
    %2638 = vmatmul.mubr.bf16.gmra.mxu0 %v2546
    %v2639 = vpop.f32.mrf.mxu0
    %v2640 = vadd.f32 0.0, %v2639
    %v2641 = vpop.f32.mrf.mxu0
    %v2642 = vpop.f32.mrf.mxu0
    %v2643 = vadd.f32 0.0, %v2642
    %v2644 = vpop.f32.mrf.mxu0
    %2645 = vmatprep.mubr.bf16.mxu0 0
    %2646 = vmatmul.mubr.bf16.gmra.mxu0 %v2549
    %v2647 = vpop.f32.mrf.mxu0
    %v2648 = vadd.f32 0.0, %v2647
    %v2649 = vpop.f32.mrf.mxu0
    %v2650 = vpop.f32.mrf.mxu0
    %v2651 = vadd.f32 0.0, %v2650
    %v2652 = vpop.f32.mrf.mxu0
    %2653 = vdwg.mxu0
    %v2654 = vadd.f32 %v1881, %v2592
    %v2655 = vadd.f32 %v1884, %v2595
    %v2656 = vadd.f32 %v1889, %v2600
    %v2657 = vadd.f32 %v1892, %v2603
    %v2658 = vadd.f32 %v1897, %v2608
    %v2659 = vadd.f32 %v1900, %v2611
    %v2660 = vadd.f32 %v1905, %v2616
    %v2661 = vadd.f32 %v1908, %v2619
    %v2662 = vadd.f32 %v1913, %v2624
    %v2663 = vadd.f32 %v1916, %v2627
    %v2664 = vadd.f32 %v1921, %v2632
    %v2665 = vadd.f32 %v1924, %v2635
    %v2666 = vadd.f32 %v1929, %v2640
    %v2667 = vadd.f32 %v1932, %v2643
    %v2668 = vadd.f32 %v1937, %v2648
    %v2669 = vadd.f32 %v1940, %v2651
    %2670 = vrot.lane.b32.xlu0 %v529, 104
    %v2671 = vpop.permute.xlu0 %2670
    %2672 = vrot.lane.b32.xlu0 %v530, 104
    %v2673 = vpop.permute.xlu0 %2672
    %2674 = vrot.lane.b32.xlu0 %v531, 104
    %v2675 = vpop.permute.xlu0 %2674
    %2676 = vrot.lane.b32.xlu0 %v532, 104
    %v2677 = vpop.permute.xlu0 %2676
    %2678 = vrot.lane.b32.xlu0 %v537, 104
    %v2679 = vpop.permute.xlu0 %2678
    %2680 = vrot.lane.b32.xlu0 %v538, 104
    %v2681 = vpop.permute.xlu0 %2680
    %2682 = vrot.lane.b32.xlu0 %v539, 104
    %v2683 = vpop.permute.xlu0 %2682
    %2684 = vrot.lane.b32.xlu0 %v540, 104
    %v2685 = vpop.permute.xlu0 %2684
    %v2687 = vsel %vm553, %v2671, 0
    %v2690 = vsel %vm553, %v2673, 0
    %v2693 = vsel %vm553, %v2675, 0
    %v2696 = vsel %vm553, %v2677, 0
    %v2699 = vsel %vm553, %v2679, 0
    %v2702 = vsel %vm553, %v2681, 0
    %v2705 = vsel %vm553, %v2683, 0
    %v2708 = vsel %vm553, %v2685, 0
    %2710 = vmatprep.subr.bf16.mxu0 0
    %2711 = vmatpush1.bf16.xpose.msra.mxu0 0
    %2712 = vmatprep.subr.bf16.mxu0 0
    %2713 = vmatpush1.bf16.xpose.msra.mxu0 0
    %2714 = vmatprep.subr.bf16.mxu0 0
    %2715 = vmatpush1.bf16.xpose.msra.mxu0 0
    %2716 = vmatprep.subr.bf16.mxu0 0
    %2717 = vmatpush1.bf16.xpose.msra.mxu0 0
    %2718 = vmatprep.subr.bf16.mxu0 0
    %2719 = vmatpush1.bf16.xpose.msra.mxu0 %v2708
    %2720 = vmatprep.subr.bf16.mxu0 0
    %2721 = vmatpush1.bf16.xpose.msra.mxu0 %v2705
    %2722 = vmatprep.subr.bf16.mxu0 0
    %2723 = vmatpush1.bf16.xpose.msra.mxu0 %v2702
    %2724 = vmatprep.subr.bf16.mxu0 0
    %2725 = vmatpush1.bf16.xpose.msra.mxu0 %v2699
    %2726 = vmatprep.subr.bf16.mxu0 0
    %2727 = vmatpush2.bf16.xpose.msra.mxu0 0
    %2728 = vmatprep.subr.bf16.mxu0 0
    %2729 = vmatpush2.bf16.xpose.msra.mxu0 0
    %2730 = vmatprep.subr.bf16.mxu0 0
    %2731 = vmatpush2.bf16.xpose.msra.mxu0 0
    %2732 = vmatprep.subr.bf16.mxu0 0
    %2733 = vmatpush2.bf16.xpose.msra.mxu0 0
    %2734 = vmatprep.subr.bf16.mxu0 0
    %2735 = vmatpush2.bf16.xpose.msra.mxu0 0
    %2736 = vmatprep.subr.bf16.mxu0 0
    %2737 = vmatpush2.bf16.xpose.msra.mxu0 0
    %2738 = vmatprep.subr.bf16.mxu0 0
    %2739 = vmatpush2.bf16.xpose.msra.mxu0 0
    %2740 = vmatprep.subr.bf16.mxu0 0
    %2741 = vmatpush2.bf16.xpose.msra.mxu0 0
    %2742 = vmatprep.mubr.bf16.mxu0 0
    %2743 = vmatmul.mubr.bf16.gmra.mxu0 %v2687
    %v2744 = vpop.f32.mrf.mxu0
    %v2745 = vadd.f32 0.0, %v2744
    %v2746 = vpop.f32.mrf.mxu0
    %v2747 = vpop.f32.mrf.mxu0
    %v2748 = vadd.f32 0.0, %v2747
    %v2749 = vpop.f32.mrf.mxu0
    %2750 = vmatprep.mubr.bf16.mxu0 0
    %2751 = vmatmul.mubr.bf16.gmra.mxu0 %v2690
    %v2752 = vpop.f32.mrf.mxu0
    %v2753 = vadd.f32 0.0, %v2752
    %v2754 = vpop.f32.mrf.mxu0
    %v2755 = vpop.f32.mrf.mxu0
    %v2756 = vadd.f32 0.0, %v2755
    %v2757 = vpop.f32.mrf.mxu0
    %2758 = vmatprep.mubr.bf16.mxu0 0
    %2759 = vmatmul.mubr.bf16.gmra.mxu0 %v2693
    %v2760 = vpop.f32.mrf.mxu0
    %v2761 = vadd.f32 0.0, %v2760
    %v2762 = vpop.f32.mrf.mxu0
    %v2763 = vpop.f32.mrf.mxu0
    %v2764 = vadd.f32 0.0, %v2763
    %v2765 = vpop.f32.mrf.mxu0
    %2766 = vmatprep.mubr.bf16.mxu0 0
    %2767 = vmatmul.mubr.bf16.gmra.mxu0 %v2696
    %v2768 = vpop.f32.mrf.mxu0
    %v2769 = vadd.f32 0.0, %v2768
    %v2770 = vpop.f32.mrf.mxu0
    %v2771 = vpop.f32.mrf.mxu0
    %v2772 = vadd.f32 0.0, %v2771
    %v2773 = vpop.f32.mrf.mxu0
    %2774 = vdwg.mxu0
    %2775 = vrot.lane.b32.xlu0 %v533, 104
    %v2776 = vpop.permute.xlu0 %2775
    %2777 = vrot.lane.b32.xlu0 %v534, 104
    %v2778 = vpop.permute.xlu0 %2777
    %2779 = vrot.lane.b32.xlu0 %v535, 104
    %v2780 = vpop.permute.xlu0 %2779
    %2781 = vrot.lane.b32.xlu0 %v536, 104
    %v2782 = vpop.permute.xlu0 %2781
    %2783 = vrot.lane.b32.xlu0 %v541, 104
    %v2784 = vpop.permute.xlu0 %2783
    %2785 = vrot.lane.b32.xlu0 %v542, 104
    %v2786 = vpop.permute.xlu0 %2785
    %2787 = vrot.lane.b32.xlu0 %v543, 104
    %v2788 = vpop.permute.xlu0 %2787
    %2789 = vrot.lane.b32.xlu0 %v544, 104
    %v2790 = vpop.permute.xlu0 %2789
    %v2792 = vsel %vm553, %v2776, 0
    %v2795 = vsel %vm553, %v2778, 0
    %v2798 = vsel %vm553, %v2780, 0
    %v2801 = vsel %vm553, %v2782, 0
    %v2804 = vsel %vm553, %v2784, 0
    %v2807 = vsel %vm553, %v2786, 0
    %v2810 = vsel %vm553, %v2788, 0
    %v2813 = vsel %vm553, %v2790, 0
    %2815 = vmatprep.subr.bf16.mxu0 0
    %2816 = vmatpush1.bf16.xpose.msra.mxu0 0
    %2817 = vmatprep.subr.bf16.mxu0 0
    %2818 = vmatpush1.bf16.xpose.msra.mxu0 0
    %2819 = vmatprep.subr.bf16.mxu0 0
    %2820 = vmatpush1.bf16.xpose.msra.mxu0 0
    %2821 = vmatprep.subr.bf16.mxu0 0
    %2822 = vmatpush1.bf16.xpose.msra.mxu0 0
    %2823 = vmatprep.subr.bf16.mxu0 0
    %2824 = vmatpush1.bf16.xpose.msra.mxu0 %v2813
    %2825 = vmatprep.subr.bf16.mxu0 0
    %2826 = vmatpush1.bf16.xpose.msra.mxu0 %v2810
    %2827 = vmatprep.subr.bf16.mxu0 0
    %2828 = vmatpush1.bf16.xpose.msra.mxu0 %v2807
    %2829 = vmatprep.subr.bf16.mxu0 0
    %2830 = vmatpush1.bf16.xpose.msra.mxu0 %v2804
    %2831 = vmatprep.subr.bf16.mxu0 0
    %2832 = vmatpush2.bf16.xpose.msra.mxu0 0
    %2833 = vmatprep.subr.bf16.mxu0 0
    %2834 = vmatpush2.bf16.xpose.msra.mxu0 0
    %2835 = vmatprep.subr.bf16.mxu0 0
    %2836 = vmatpush2.bf16.xpose.msra.mxu0 0
    %2837 = vmatprep.subr.bf16.mxu0 0
    %2838 = vmatpush2.bf16.xpose.msra.mxu0 0
    %2839 = vmatprep.subr.bf16.mxu0 0
    %2840 = vmatpush2.bf16.xpose.msra.mxu0 0
    %2841 = vmatprep.subr.bf16.mxu0 0
    %2842 = vmatpush2.bf16.xpose.msra.mxu0 0
    %2843 = vmatprep.subr.bf16.mxu0 0
    %2844 = vmatpush2.bf16.xpose.msra.mxu0 0
    %2845 = vmatprep.subr.bf16.mxu0 0
    %2846 = vmatpush2.bf16.xpose.msra.mxu0 0
    %2847 = vmatprep.mubr.bf16.mxu0 0
    %2848 = vmatmul.mubr.bf16.gmra.mxu0 %v2792
    %v2849 = vpop.f32.mrf.mxu0
    %v2850 = vadd.f32 0.0, %v2849
    %v2851 = vpop.f32.mrf.mxu0
    %v2852 = vpop.f32.mrf.mxu0
    %v2853 = vadd.f32 0.0, %v2852
    %v2854 = vpop.f32.mrf.mxu0
    %2855 = vmatprep.mubr.bf16.mxu0 0
    %2856 = vmatmul.mubr.bf16.gmra.mxu0 %v2795
    %v2857 = vpop.f32.mrf.mxu0
    %v2858 = vadd.f32 0.0, %v2857
    %v2859 = vpop.f32.mrf.mxu0
    %v2860 = vpop.f32.mrf.mxu0
    %v2861 = vadd.f32 0.0, %v2860
    %v2862 = vpop.f32.mrf.mxu0
    %2863 = vmatprep.mubr.bf16.mxu0 0
    %2864 = vmatmul.mubr.bf16.gmra.mxu0 %v2798
    %v2865 = vpop.f32.mrf.mxu0
    %v2866 = vadd.f32 0.0, %v2865
    %v2867 = vpop.f32.mrf.mxu0
    %v2868 = vpop.f32.mrf.mxu0
    %v2869 = vadd.f32 0.0, %v2868
    %v2870 = vpop.f32.mrf.mxu0
    %2871 = vmatprep.mubr.bf16.mxu0 0
    %2872 = vmatmul.mubr.bf16.gmra.mxu0 %v2801
    %v2873 = vpop.f32.mrf.mxu0
    %v2874 = vadd.f32 0.0, %v2873
    %v2875 = vpop.f32.mrf.mxu0
    %v2876 = vpop.f32.mrf.mxu0
    %v2877 = vadd.f32 0.0, %v2876
    %v2878 = vpop.f32.mrf.mxu0
    %2879 = vdwg.mxu0
    %v2880 = vsel %vm732, %v2745, -inf
    %2881 = vmax.xlane.f32.xlu0 %v2880
    %v2882 = vpop.xlane.xlu0 %2881
    %v2883 = vsel %vm732, %v2748, -inf
    %2884 = vmax.xlane.f32.xlu0 %v2883
    %v2885 = vpop.xlane.xlu0 %2884
    %v2886 = vsel %vm732, %v2753, -inf
    %2887 = vmax.xlane.f32.xlu0 %v2886
    %v2888 = vpop.xlane.xlu0 %2887
    %v2889 = vsel %vm732, %v2756, -inf
    %2890 = vmax.xlane.f32.xlu0 %v2889
    %v2891 = vpop.xlane.xlu0 %2890
    %v2892 = vsel %vm732, %v2761, -inf
    %2893 = vmax.xlane.f32.xlu0 %v2892
    %v2894 = vpop.xlane.xlu0 %2893
    %v2895 = vsel %vm732, %v2764, -inf
    %2896 = vmax.xlane.f32.xlu0 %v2895
    %v2897 = vpop.xlane.xlu0 %2896
    %v2898 = vsel %vm732, %v2769, -inf
    %2899 = vmax.xlane.f32.xlu0 %v2898
    %v2900 = vpop.xlane.xlu0 %2899
    %v2901 = vsel %vm732, %v2772, -inf
    %2902 = vmax.xlane.f32.xlu0 %v2901
    %v2903 = vpop.xlane.xlu0 %2902
    %v2904 = vsel %vm732, %v2850, -inf
    %2905 = vmax.xlane.f32.xlu0 %v2904
    %v2906 = vpop.xlane.xlu0 %2905
    %v2907 = vsel %vm732, %v2853, -inf
    %2908 = vmax.xlane.f32.xlu0 %v2907
    %v2909 = vpop.xlane.xlu0 %2908
    %v2910 = vsel %vm732, %v2858, -inf
    %2911 = vmax.xlane.f32.xlu0 %v2910
    %v2912 = vpop.xlane.xlu0 %2911
    %v2913 = vsel %vm732, %v2861, -inf
    %2914 = vmax.xlane.f32.xlu0 %v2913
    %v2915 = vpop.xlane.xlu0 %2914
    %v2916 = vsel %vm732, %v2866, -inf
    %2917 = vmax.xlane.f32.xlu0 %v2916
    %v2918 = vpop.xlane.xlu0 %2917
    %v2919 = vsel %vm732, %v2869, -inf
    %2920 = vmax.xlane.f32.xlu0 %v2919
    %v2921 = vpop.xlane.xlu0 %2920
    %v2922 = vsel %vm732, %v2874, -inf
    %2923 = vmax.xlane.f32.xlu0 %v2922
    %v2924 = vpop.xlane.xlu0 %2923
    %v2925 = vsel %vm732, %v2877, -inf
    %2926 = vmax.xlane.f32.xlu0 %v2925
    %v2927 = vpop.xlane.xlu0 %2926
    %v2928 = vsub.f32 %v2745, %v2882
    %v2929 = vsub.f32 %v2748, %v2885
    %v2930 = vsub.f32 %v2753, %v2888
    %v2931 = vsub.f32 %v2756, %v2891
    %v2932 = vsub.f32 %v2761, %v2894
    %v2933 = vsub.f32 %v2764, %v2897
    %v2934 = vsub.f32 %v2769, %v2900
    %v2935 = vsub.f32 %v2772, %v2903
    %v2936 = vsub.f32 %v2850, %v2906
    %v2937 = vsub.f32 %v2853, %v2909
    %v2938 = vsub.f32 %v2858, %v2912
    %v2939 = vsub.f32 %v2861, %v2915
    %v2940 = vsub.f32 %v2866, %v2918
    %v2941 = vsub.f32 %v2869, %v2921
    %v2942 = vsub.f32 %v2874, %v2924
    %v2943 = vsub.f32 %v2877, %v2927
    %v2944 = vmul.f32 %v2928, 1.442695
    %v2945 = vpow.pop %v2944
    %v2946 = vmul.f32 %v2929, 1.442695
    %v2947 = vpow.pop %v2946
    %v2948 = vmul.f32 %v2930, 1.442695
    %v2949 = vpow.pop %v2948
    %v2950 = vmul.f32 %v2931, 1.442695
    %v2951 = vpow.pop %v2950
    %v2952 = vmul.f32 %v2932, 1.442695
    %v2953 = vpow.pop %v2952
    %v2954 = vmul.f32 %v2933, 1.442695
    %v2955 = vpow.pop %v2954
    %v2956 = vmul.f32 %v2934, 1.442695
    %v2957 = vpow.pop %v2956
    %v2958 = vmul.f32 %v2935, 1.442695
    %v2959 = vpow.pop %v2958
    %v2960 = vmul.f32 %v2936, 1.442695
    %v2961 = vpow.pop %v2960
    %v2962 = vmul.f32 %v2937, 1.442695
    %v2963 = vpow.pop %v2962
    %v2964 = vmul.f32 %v2938, 1.442695
    %v2965 = vpow.pop %v2964
    %v2966 = vmul.f32 %v2939, 1.442695
    %v2967 = vpow.pop %v2966
    %v2968 = vmul.f32 %v2940, 1.442695
    %v2969 = vpow.pop %v2968
    %v2970 = vmul.f32 %v2941, 1.442695
    %v2971 = vpow.pop %v2970
    %v2972 = vmul.f32 %v2942, 1.442695
    %v2973 = vpow.pop %v2972
    %v2974 = vmul.f32 %v2943, 1.442695
    %v2975 = vpow.pop %v2974
    %v2976 = vsel %vm732, %v2945, 0.0
    %2977 = vadd.xlane.f32.xlu0 %v2976
    %v2978 = vpop.xlane.xlu0 %2977
    %v2979 = vsel %vm732, %v2947, 0.0
    %2980 = vadd.xlane.f32.xlu0 %v2979
    %v2981 = vpop.xlane.xlu0 %2980
    %v2982 = vsel %vm732, %v2949, 0.0
    %2983 = vadd.xlane.f32.xlu0 %v2982
    %v2984 = vpop.xlane.xlu0 %2983
    %v2985 = vsel %vm732, %v2951, 0.0
    %2986 = vadd.xlane.f32.xlu0 %v2985
    %v2987 = vpop.xlane.xlu0 %2986
    %v2988 = vsel %vm732, %v2953, 0.0
    %2989 = vadd.xlane.f32.xlu0 %v2988
    %v2990 = vpop.xlane.xlu0 %2989
    %v2991 = vsel %vm732, %v2955, 0.0
    %2992 = vadd.xlane.f32.xlu0 %v2991
    %v2993 = vpop.xlane.xlu0 %2992
    %v2994 = vsel %vm732, %v2957, 0.0
    %2995 = vadd.xlane.f32.xlu0 %v2994
    %v2996 = vpop.xlane.xlu0 %2995
    %v2997 = vsel %vm732, %v2959, 0.0
    %2998 = vadd.xlane.f32.xlu0 %v2997
    %v2999 = vpop.xlane.xlu0 %2998
    %v3000 = vsel %vm732, %v2961, 0.0
    %3001 = vadd.xlane.f32.xlu0 %v3000
    %v3002 = vpop.xlane.xlu0 %3001
    %v3003 = vsel %vm732, %v2963, 0.0
    %3004 = vadd.xlane.f32.xlu0 %v3003
    %v3005 = vpop.xlane.xlu0 %3004
    %v3006 = vsel %vm732, %v2965, 0.0
    %3007 = vadd.xlane.f32.xlu0 %v3006
    %v3008 = vpop.xlane.xlu0 %3007
    %v3009 = vsel %vm732, %v2967, 0.0
    %3010 = vadd.xlane.f32.xlu0 %v3009
    %v3011 = vpop.xlane.xlu0 %3010
    %v3012 = vsel %vm732, %v2969, 0.0
    %3013 = vadd.xlane.f32.xlu0 %v3012
    %v3014 = vpop.xlane.xlu0 %3013
    %v3015 = vsel %vm732, %v2971, 0.0
    %3016 = vadd.xlane.f32.xlu0 %v3015
    %v3017 = vpop.xlane.xlu0 %3016
    %v3018 = vsel %vm732, %v2973, 0.0
    %3019 = vadd.xlane.f32.xlu0 %v3018
    %v3020 = vpop.xlane.xlu0 %3019
    %v3021 = vsel %vm732, %v2975, 0.0
    %3022 = vadd.xlane.f32.xlu0 %v3021
    %v3023 = vpop.xlane.xlu0 %3022
    %v3024 = vpack.c.bf16 %v2947, %v2945
    %v3025 = vpack.c.bf16 %v2951, %v2949
    %v3026 = vpack.c.bf16 %v2955, %v2953
    %v3027 = vpack.c.bf16 %v2959, %v2957
    %v3028 = vpack.c.bf16 %v2963, %v2961
    %v3029 = vpack.c.bf16 %v2967, %v2965
    %v3030 = vpack.c.bf16 %v2971, %v2969
    %v3031 = vpack.c.bf16 %v2975, %v2973
    %3032 = vrot.lane.b32.xlu0 %v545, 104
    %v3033 = vpop.permute.xlu0 %3032
    %3034 = vrot.lane.b32.xlu0 %v546, 104
    %v3035 = vpop.permute.xlu0 %3034
    %3036 = vrot.lane.b32.xlu0 %v547, 104
    %v3037 = vpop.permute.xlu0 %3036
    %3038 = vrot.lane.b32.xlu0 %v548, 104
    %v3039 = vpop.permute.xlu0 %3038
    %v3045 = vsel %vm732, %v3024, 0
    %v3048 = vsel %vm732, %v3025, 0
    %v3051 = vsel %vm732, %v3026, 0
    %v3054 = vsel %vm732, %v3027, 0
    %3056 = vmatprep.subr.bf16.mxu0 0
    %3057 = vmatpush1.bf16.msra.mxu0 0
    %3058 = vmatprep.subr.bf16.mxu0 0
    %3059 = vmatpush1.bf16.msra.mxu0 0
    %3060 = vmatprep.subr.bf16.mxu0 0
    %3061 = vmatpush1.bf16.msra.mxu0 0
    %3062 = vmatprep.subr.bf16.mxu0 0
    %3063 = vmatpush1.bf16.msra.mxu0 0
    %3064 = vmatprep.subr.bf16.mxu0 0
    %3065 = vmatpush1.bf16.msra.mxu0 %v3039
    %3066 = vmatprep.subr.bf16.mxu0 0
    %3067 = vmatpush1.bf16.msra.mxu0 %v3037
    %3068 = vmatprep.subr.bf16.mxu0 0
    %3069 = vmatpush1.bf16.msra.mxu0 %v3035
    %3070 = vmatprep.subr.bf16.mxu0 0
    %3071 = vmatpush1.bf16.msra.mxu0 %v3033
    %3072 = vmatprep.subr.bf16.mxu0 0
    %3073 = vmatpush2.bf16.msra.mxu0 0
    %3074 = vmatprep.subr.bf16.mxu0 0
    %3075 = vmatpush2.bf16.msra.mxu0 0
    %3076 = vmatprep.subr.bf16.mxu0 0
    %3077 = vmatpush2.bf16.msra.mxu0 0
    %3078 = vmatprep.subr.bf16.mxu0 0
    %3079 = vmatpush2.bf16.msra.mxu0 0
    %3080 = vmatprep.subr.bf16.mxu0 0
    %3081 = vmatpush2.bf16.msra.mxu0 0
    %3082 = vmatprep.subr.bf16.mxu0 0
    %3083 = vmatpush2.bf16.msra.mxu0 0
    %3084 = vmatprep.subr.bf16.mxu0 0
    %3085 = vmatpush2.bf16.msra.mxu0 0
    %3086 = vmatprep.subr.bf16.mxu0 0
    %3087 = vmatpush2.bf16.msra.mxu0 0
    %3088 = vmatprep.mubr.bf16.mxu0 0
    %3089 = vmatmul.mubr.bf16.gmra.mxu0 %v3045
    %v3090 = vpop.f32.mrf.mxu0
    %v3091 = vadd.f32 0.0, %v3090
    %v3092 = vpop.f32.mrf.mxu0
    %v3093 = vpop.f32.mrf.mxu0
    %v3094 = vadd.f32 0.0, %v3093
    %v3095 = vpop.f32.mrf.mxu0
    %3096 = vmatprep.mubr.bf16.mxu0 0
    %3097 = vmatmul.mubr.bf16.gmra.mxu0 %v3048
    %v3098 = vpop.f32.mrf.mxu0
    %v3099 = vadd.f32 0.0, %v3098
    %v3100 = vpop.f32.mrf.mxu0
    %v3101 = vpop.f32.mrf.mxu0
    %v3102 = vadd.f32 0.0, %v3101
    %v3103 = vpop.f32.mrf.mxu0
    %3104 = vmatprep.mubr.bf16.mxu0 0
    %3105 = vmatmul.mubr.bf16.gmra.mxu0 %v3051
    %v3106 = vpop.f32.mrf.mxu0
    %v3107 = vadd.f32 0.0, %v3106
    %v3108 = vpop.f32.mrf.mxu0
    %v3109 = vpop.f32.mrf.mxu0
    %v3110 = vadd.f32 0.0, %v3109
    %v3111 = vpop.f32.mrf.mxu0
    %3112 = vmatprep.mubr.bf16.mxu0 0
    %3113 = vmatmul.mubr.bf16.gmra.mxu0 %v3054
    %v3114 = vpop.f32.mrf.mxu0
    %v3115 = vadd.f32 0.0, %v3114
    %v3116 = vpop.f32.mrf.mxu0
    %v3117 = vpop.f32.mrf.mxu0
    %v3118 = vadd.f32 0.0, %v3117
    %v3119 = vpop.f32.mrf.mxu0
    %3120 = vdwg.mxu0
    %3121 = vrot.lane.b32.xlu0 %v549, 104
    %v3122 = vpop.permute.xlu0 %3121
    %3123 = vrot.lane.b32.xlu0 %v550, 104
    %v3124 = vpop.permute.xlu0 %3123
    %3125 = vrot.lane.b32.xlu0 %v551, 104
    %v3126 = vpop.permute.xlu0 %3125
    %3127 = vrot.lane.b32.xlu0 %v552, 104
    %v3128 = vpop.permute.xlu0 %3127
    %v3134 = vsel %vm732, %v3028, 0
    %v3137 = vsel %vm732, %v3029, 0
    %v3140 = vsel %vm732, %v3030, 0
    %v3143 = vsel %vm732, %v3031, 0
    %3145 = vmatprep.subr.bf16.mxu0 0
    %3146 = vmatpush1.bf16.msra.mxu0 0
    %3147 = vmatprep.subr.bf16.mxu0 0
    %3148 = vmatpush1.bf16.msra.mxu0 0
    %3149 = vmatprep.subr.bf16.mxu0 0
    %3150 = vmatpush1.bf16.msra.mxu0 0
    %3151 = vmatprep.subr.bf16.mxu0 0
    %3152 = vmatpush1.bf16.msra.mxu0 0
    %3153 = vmatprep.subr.bf16.mxu0 0
    %3154 = vmatpush1.bf16.msra.mxu0 %v3128
    %3155 = vmatprep.subr.bf16.mxu0 0
    %3156 = vmatpush1.bf16.msra.mxu0 %v3126
    %3157 = vmatprep.subr.bf16.mxu0 0
    %3158 = vmatpush1.bf16.msra.mxu0 %v3124
    %3159 = vmatprep.subr.bf16.mxu0 0
    %3160 = vmatpush1.bf16.msra.mxu0 %v3122
    %3161 = vmatprep.subr.bf16.mxu0 0
    %3162 = vmatpush2.bf16.msra.mxu0 0
    %3163 = vmatprep.subr.bf16.mxu0 0
    %3164 = vmatpush2.bf16.msra.mxu0 0
    %3165 = vmatprep.subr.bf16.mxu0 0
    %3166 = vmatpush2.bf16.msra.mxu0 0
    %3167 = vmatprep.subr.bf16.mxu0 0
    %3168 = vmatpush2.bf16.msra.mxu0 0
    %3169 = vmatprep.subr.bf16.mxu0 0
    %3170 = vmatpush2.bf16.msra.mxu0 0
    %3171 = vmatprep.subr.bf16.mxu0 0
    %3172 = vmatpush2.bf16.msra.mxu0 0
    %3173 = vmatprep.subr.bf16.mxu0 0
    %3174 = vmatpush2.bf16.msra.mxu0 0
    %3175 = vmatprep.subr.bf16.mxu0 0
    %3176 = vmatpush2.bf16.msra.mxu0 0
    %3177 = vmatprep.mubr.bf16.mxu0 0
    %3178 = vmatmul.mubr.bf16.gmra.mxu0 %v3134
    %v3179 = vpop.f32.mrf.mxu0
    %v3180 = vadd.f32 0.0, %v3179
    %v3181 = vpop.f32.mrf.mxu0
    %v3182 = vpop.f32.mrf.mxu0
    %v3183 = vadd.f32 0.0, %v3182
    %v3184 = vpop.f32.mrf.mxu0
    %3185 = vmatprep.mubr.bf16.mxu0 0
    %3186 = vmatmul.mubr.bf16.gmra.mxu0 %v3137
    %v3187 = vpop.f32.mrf.mxu0
    %v3188 = vadd.f32 0.0, %v3187
    %v3189 = vpop.f32.mrf.mxu0
    %v3190 = vpop.f32.mrf.mxu0
    %v3191 = vadd.f32 0.0, %v3190
    %v3192 = vpop.f32.mrf.mxu0
    %3193 = vmatprep.mubr.bf16.mxu0 0
    %3194 = vmatmul.mubr.bf16.gmra.mxu0 %v3140
    %v3195 = vpop.f32.mrf.mxu0
    %v3196 = vadd.f32 0.0, %v3195
    %v3197 = vpop.f32.mrf.mxu0
    %v3198 = vpop.f32.mrf.mxu0
    %v3199 = vadd.f32 0.0, %v3198
    %v3200 = vpop.f32.mrf.mxu0
    %3201 = vmatprep.mubr.bf16.mxu0 0
    %3202 = vmatmul.mubr.bf16.gmra.mxu0 %v3143
    %v3203 = vpop.f32.mrf.mxu0
    %v3204 = vadd.f32 0.0, %v3203
    %v3205 = vpop.f32.mrf.mxu0
    %v3206 = vpop.f32.mrf.mxu0
    %v3207 = vadd.f32 0.0, %v3206
    %v3208 = vpop.f32.mrf.mxu0
    %3209 = vdwg.mxu0
    %v3210 = vrcp.pop %v2978
    %v3211 = vrcp.pop %v2981
    %v3212 = vrcp.pop %v2984
    %v3213 = vrcp.pop %v2987
    %v3214 = vrcp.pop %v2990
    %v3215 = vrcp.pop %v2993
    %v3216 = vrcp.pop %v2996
    %v3217 = vrcp.pop %v2999
    %v3218 = vrcp.pop %v3002
    %v3219 = vrcp.pop %v3005
    %v3220 = vrcp.pop %v3008
    %v3221 = vrcp.pop %v3011
    %v3222 = vrcp.pop %v3014
    %v3223 = vrcp.pop %v3017
    %v3224 = vrcp.pop %v3020
    %v3225 = vrcp.pop %v3023
    %v3226 = vmul.f32 %v3091, %v3210
    %v3227 = vmul.f32 %v3094, %v3211
    %v3228 = vmul.f32 %v3099, %v3212
    %v3229 = vmul.f32 %v3102, %v3213
    %v3230 = vmul.f32 %v3107, %v3214
    %v3231 = vmul.f32 %v3110, %v3215
    %v3232 = vmul.f32 %v3115, %v3216
    %v3233 = vmul.f32 %v3118, %v3217
    %v3234 = vmul.f32 %v3180, %v3218
    %v3235 = vmul.f32 %v3183, %v3219
    %v3236 = vmul.f32 %v3188, %v3220
    %v3237 = vmul.f32 %v3191, %v3221
    %v3238 = vmul.f32 %v3196, %v3222
    %v3239 = vmul.f32 %v3199, %v3223
    %v3240 = vmul.f32 %v3204, %v3224
    %v3241 = vmul.f32 %v3207, %v3225
    %v3242 = vpack.c.bf16 %v3227, %v3226
    %v3243 = vpack.c.bf16 %v3229, %v3228
    %v3244 = vpack.c.bf16 %v3231, %v3230
    %v3245 = vpack.c.bf16 %v3233, %v3232
    %v3246 = vpack.c.bf16 %v3235, %v3234
    %v3247 = vpack.c.bf16 %v3237, %v3236
    %v3248 = vpack.c.bf16 %v3239, %v3238
    %v3249 = vpack.c.bf16 %v3241, %v3240
    %3250 = vrot.lane.b32.xlu0 %v172, 104
    %v3251 = vpop.permute.xlu0 %3250
    %3252 = vrot.lane.b32.xlu0 %v173, 104
    %v3253 = vpop.permute.xlu0 %3252
    %v3255 = vsel %vm553, %v3242, 0
    %v3258 = vsel %vm553, %v3243, 0
    %v3261 = vsel %vm553, %v3244, 0
    %v3264 = vsel %vm553, %v3245, 0
    %v3267 = vsel %vm553, %v3246, 0
    %v3270 = vsel %vm553, %v3247, 0
    %v3273 = vsel %vm553, %v3248, 0
    %v3276 = vsel %vm553, %v3249, 0
    %v3279 = vsel %vm553, %v3251, 0
    %v3282 = vsel %vm553, %v3253, 0
    %3284 = vmatprep.subr.bf16.mxu0 0
    %3285 = vmatpush1.bf16.xpose.msra.mxu0 0
    %3286 = vmatprep.subr.bf16.mxu0 0
    %3287 = vmatpush1.bf16.xpose.msra.mxu0 0
    %3288 = vmatprep.subr.bf16.mxu0 0
    %3289 = vmatpush1.bf16.xpose.msra.mxu0 0
    %3290 = vmatprep.subr.bf16.mxu0 0
    %3291 = vmatpush1.bf16.xpose.msra.mxu0 0
    %3292 = vmatprep.subr.bf16.mxu0 0
    %3293 = vmatpush1.bf16.xpose.msra.mxu0 0
    %3294 = vmatprep.subr.bf16.mxu0 0
    %3295 = vmatpush1.bf16.xpose.msra.mxu0 0
    %3296 = vmatprep.subr.bf16.mxu0 0
    %3297 = vmatpush1.bf16.xpose.msra.mxu0 %v3282
    %3298 = vmatprep.subr.bf16.mxu0 0
    %3299 = vmatpush1.bf16.xpose.msra.mxu0 %v3279
    %3300 = vmatprep.subr.bf16.mxu0 0
    %3301 = vmatpush2.bf16.xpose.msra.mxu0 0
    %3302 = vmatprep.subr.bf16.mxu0 0
    %3303 = vmatpush2.bf16.xpose.msra.mxu0 0
    %3304 = vmatprep.subr.bf16.mxu0 0
    %3305 = vmatpush2.bf16.xpose.msra.mxu0 0
    %3306 = vmatprep.subr.bf16.mxu0 0
    %3307 = vmatpush2.bf16.xpose.msra.mxu0 0
    %3308 = vmatprep.subr.bf16.mxu0 0
    %3309 = vmatpush2.bf16.xpose.msra.mxu0 0
    %3310 = vmatprep.subr.bf16.mxu0 0
    %3311 = vmatpush2.bf16.xpose.msra.mxu0 0
    %3312 = vmatprep.subr.bf16.mxu0 0
    %3313 = vmatpush2.bf16.xpose.msra.mxu0 0
    %3314 = vmatprep.subr.bf16.mxu0 0
    %3315 = vmatpush2.bf16.xpose.msra.mxu0 0
    %3316 = vmatprep.mubr.bf16.mxu0 0
    %3317 = vmatmul.mubr.bf16.gmra.mxu0 %v3255
    %v3318 = vpop.f32.mrf.mxu0
    %v3319 = vadd.f32 0.0, %v3318
    %v3320 = vpop.f32.mrf.mxu0
    %v3321 = vpop.f32.mrf.mxu0
    %v3322 = vadd.f32 0.0, %v3321
    %v3323 = vpop.f32.mrf.mxu0
    %3324 = vmatprep.mubr.bf16.mxu0 0
    %3325 = vmatmul.mubr.bf16.gmra.mxu0 %v3258
    %v3326 = vpop.f32.mrf.mxu0
    %v3327 = vadd.f32 0.0, %v3326
    %v3328 = vpop.f32.mrf.mxu0
    %v3329 = vpop.f32.mrf.mxu0
    %v3330 = vadd.f32 0.0, %v3329
    %v3331 = vpop.f32.mrf.mxu0
    %3332 = vmatprep.mubr.bf16.mxu0 0
    %3333 = vmatmul.mubr.bf16.gmra.mxu0 %v3261
    %v3334 = vpop.f32.mrf.mxu0
    %v3335 = vadd.f32 0.0, %v3334
    %v3336 = vpop.f32.mrf.mxu0
    %v3337 = vpop.f32.mrf.mxu0
    %v3338 = vadd.f32 0.0, %v3337
    %v3339 = vpop.f32.mrf.mxu0
    %3340 = vmatprep.mubr.bf16.mxu0 0
    %3341 = vmatmul.mubr.bf16.gmra.mxu0 %v3264
    %v3342 = vpop.f32.mrf.mxu0
    %v3343 = vadd.f32 0.0, %v3342
    %v3344 = vpop.f32.mrf.mxu0
    %v3345 = vpop.f32.mrf.mxu0
    %v3346 = vadd.f32 0.0, %v3345
    %v3347 = vpop.f32.mrf.mxu0
    %3348 = vmatprep.mubr.bf16.mxu0 0
    %3349 = vmatmul.mubr.bf16.gmra.mxu0 %v3267
    %v3350 = vpop.f32.mrf.mxu0
    %v3351 = vadd.f32 0.0, %v3350
    %v3352 = vpop.f32.mrf.mxu0
    %v3353 = vpop.f32.mrf.mxu0
    %v3354 = vadd.f32 0.0, %v3353
    %v3355 = vpop.f32.mrf.mxu0
    %3356 = vmatprep.mubr.bf16.mxu0 0
    %3357 = vmatmul.mubr.bf16.gmra.mxu0 %v3270
    %v3358 = vpop.f32.mrf.mxu0
    %v3359 = vadd.f32 0.0, %v3358
    %v3360 = vpop.f32.mrf.mxu0
    %v3361 = vpop.f32.mrf.mxu0
    %v3362 = vadd.f32 0.0, %v3361
    %v3363 = vpop.f32.mrf.mxu0
    %3364 = vmatprep.mubr.bf16.mxu0 0
    %3365 = vmatmul.mubr.bf16.gmra.mxu0 %v3273
    %v3366 = vpop.f32.mrf.mxu0
    %v3367 = vadd.f32 0.0, %v3366
    %v3368 = vpop.f32.mrf.mxu0
    %v3369 = vpop.f32.mrf.mxu0
    %v3370 = vadd.f32 0.0, %v3369
    %v3371 = vpop.f32.mrf.mxu0
    %3372 = vmatprep.mubr.bf16.mxu0 0
    %3373 = vmatmul.mubr.bf16.gmra.mxu0 %v3276
    %v3374 = vpop.f32.mrf.mxu0
    %v3375 = vadd.f32 0.0, %v3374
    %v3376 = vpop.f32.mrf.mxu0
    %v3377 = vpop.f32.mrf.mxu0
    %v3378 = vadd.f32 0.0, %v3377
    %v3379 = vpop.f32.mrf.mxu0
    %3380 = vdwg.mxu0
    %v3381 = vadd.f32 %v2654, %v3319
    %v3382 = vadd.f32 %v2655, %v3322
    %v3383 = vadd.f32 %v2656, %v3327
    %v3384 = vadd.f32 %v2657, %v3330
    %v3385 = vadd.f32 %v2658, %v3335
    %v3386 = vadd.f32 %v2659, %v3338
    %v3387 = vadd.f32 %v2660, %v3343
    %v3388 = vadd.f32 %v2661, %v3346
    %v3389 = vadd.f32 %v2662, %v3351
    %v3390 = vadd.f32 %v2663, %v3354
    %v3391 = vadd.f32 %v2664, %v3359
    %v3392 = vadd.f32 %v2665, %v3362
    %v3393 = vadd.f32 %v2666, %v3367
    %v3394 = vadd.f32 %v2667, %v3370
    %v3395 = vadd.f32 %v2668, %v3375
    %v3396 = vadd.f32 %v2669, %v3378
    %v3397 = vld [vmem:[%s9] sm:$0x1]
    %v3399 = vlaneseq
    %v3400 = vshrl.u32 %v3399, 7
    %v3401 = vsub.s32 0, %v3400
    %v3402 = vrot.slane %v3397, %v3401
    %v3404 = vadd.f32 %v3381, %v3402
    %v3405 = vadd.f32 %v3382, %v3402
    %v3406 = vadd.f32 %v3383, %v3402
    %v3407 = vadd.f32 %v3384, %v3402
    %v3408 = vadd.f32 %v3385, %v3402
    %v3409 = vadd.f32 %v3386, %v3402
    %v3410 = vadd.f32 %v3387, %v3402
    %v3411 = vadd.f32 %v3388, %v3402
    %v3412 = vadd.f32 %v3389, %v3402
    %v3413 = vadd.f32 %v3390, %v3402
    %v3414 = vadd.f32 %v3391, %v3402
    %v3415 = vadd.f32 %v3392, %v3402
    %v3416 = vadd.f32 %v3393, %v3402
    %v3417 = vadd.f32 %v3394, %v3402
    %v3418 = vadd.f32 %v3395, %v3402
    %v3419 = vadd.f32 %v3396, %v3402
    %3420 = vxpose.xlu0.b32.start [1/16] %v3404, 128
    %3421 = vxpose.xlu0.b32.cont [2/16] %v3405, 128
    %3422 = vxpose.xlu0.b32.cont [3/16] %v3406, 128
    %3423 = vxpose.xlu0.b32.cont [4/16] %v3407, 128
    %3424 = vxpose.xlu0.b32.cont [5/16] %v3408, 128
    %3425 = vxpose.xlu0.b32.cont [6/16] %v3409, 128
    %3426 = vxpose.xlu0.b32.cont [7/16] %v3410, 128
    %3427 = vxpose.xlu0.b32.cont [8/16] %v3411, 128
    %3428 = vxpose.xlu0.b32.cont [9/16] 0.0, 128
    %3429 = vxpose.xlu0.b32.cont [10/16] 0.0, 128
    %3430 = vxpose.xlu0.b32.cont [11/16] 0.0, 128
    %3431 = vxpose.xlu0.b32.cont [12/16] 0.0, 128
    %3432 = vxpose.xlu0.b32.cont [13/16] 0.0, 128
    %3433 = vxpose.xlu0.b32.cont [14/16] 0.0, 128
    %3434 = vxpose.xlu0.b32.cont [15/16] 0.0, 128
    %3435 = vxpose.xlu0.b32.end [16/16] 0.0, 128
    %v3436 = vpop.trf.xlu0
    %v3437 = vpop.trf.xlu0
    %v3438 = vpop.trf.xlu0
    %v3439 = vpop.trf.xlu0
    %v3440 = vpop.trf.xlu0
    %v3441 = vpop.trf.xlu0
    %v3442 = vpop.trf.xlu0
    %v3443 = vpop.trf.xlu0
    %v3444 = vpop.trf.xlu0
    %v3445 = vpop.trf.xlu0
    %v3446 = vpop.trf.xlu0
    %v3447 = vpop.trf.xlu0
    %v3448 = vpop.trf.xlu0
    %v3449 = vpop.trf.xlu0
    %v3450 = vpop.trf.xlu0
    %v3451 = vpop.trf.xlu0
    %3452 = vxpose.xlu0.b32.start [1/16] %v3412, 128
    %3453 = vxpose.xlu0.b32.cont [2/16] %v3413, 128
    %3454 = vxpose.xlu0.b32.cont [3/16] %v3414, 128
    %3455 = vxpose.xlu0.b32.cont [4/16] %v3415, 128
    %3456 = vxpose.xlu0.b32.cont [5/16] %v3416, 128
    %3457 = vxpose.xlu0.b32.cont [6/16] %v3417, 128
    %3458 = vxpose.xlu0.b32.cont [7/16] %v3418, 128
    %3459 = vxpose.xlu0.b32.cont [8/16] %v3419, 128
    %3460 = vxpose.xlu0.b32.cont [9/16] 0.0, 128
    %3461 = vxpose.xlu0.b32.cont [10/16] 0.0, 128
    %3462 = vxpose.xlu0.b32.cont [11/16] 0.0, 128
    %3463 = vxpose.xlu0.b32.cont [12/16] 0.0, 128
    %3464 = vxpose.xlu0.b32.cont [13/16] 0.0, 128
    %3465 = vxpose.xlu0.b32.cont [14/16] 0.0, 128
    %3466 = vxpose.xlu0.b32.cont [15/16] 0.0, 128
    %3467 = vxpose.xlu0.b32.end [16/16] 0.0, 128
    %v3468 = vpop.trf.xlu0
    %v3469 = vpop.trf.xlu0
    %v3470 = vpop.trf.xlu0
    %v3471 = vpop.trf.xlu0
    %v3472 = vpop.trf.xlu0
    %v3473 = vpop.trf.xlu0
    %v3474 = vpop.trf.xlu0
    %v3475 = vpop.trf.xlu0
    %v3476 = vpop.trf.xlu0
    %v3477 = vpop.trf.xlu0
    %v3478 = vpop.trf.xlu0
    %v3479 = vpop.trf.xlu0
    %v3480 = vpop.trf.xlu0
    %v3481 = vpop.trf.xlu0
    %v3482 = vpop.trf.xlu0
    %v3483 = vpop.trf.xlu0
    %s3484 = sld [smem:[#allocation2]]
    %v3485 = vstv %s3484
    %v3486 = vmul.f32 %v3485, %v3436
    %v3487 = vmul.f32 %v3485, %v3437
    %v3488 = vmul.f32 %v3485, %v3438
    %v3489 = vmul.f32 %v3485, %v3439
    %v3490 = vmul.f32 %v3485, %v3468
    %v3491 = vmul.f32 %v3485, %v3469
    %v3492 = vmul.f32 %v3485, %v3470
    %v3493 = vmul.f32 %v3485, %v3471
    %v3494 = vadd.f32 %v106, %v3486
    %v3495 = vadd.f32 %v107, %v3487
    %v3496 = vadd.f32 %v108, %v3488
    %v3497 = vadd.f32 %v109, %v3489
    %v3498 = vadd.f32 %v110, %v3490
    %v3499 = vadd.f32 %v111, %v3491
    %v3500 = vadd.f32 %v112, %v3492
    %v3501 = vadd.f32 %v113, %v3493
    %3502 = vst.msk [vmem:[#allocation12] sm:$0xff] %vm732, %v3494
    %3503 = vst.msk [vmem:[#allocation12 + $0x8] sm:$0xff] %vm732, %v3495
    %3504 = vst.msk [vmem:[#allocation12 + $0x10] sm:$0xff] %vm732, %v3496
    %3505 = vst.msk [vmem:[#allocation12 + $0x18] sm:$0xff] %vm732, %v3497
    %3506 = vst.msk [vmem:[#allocation12 + $0x20] sm:$0xff] %vm732, %v3498
    %3507 = vst.msk [vmem:[#allocation12 + $0x28] sm:$0xff] %vm732, %v3499
    %3508 = vst.msk [vmem:[#allocation12 + $0x30] sm:$0xff] %vm732, %v3500
    %3509 = vst.msk [vmem:[#allocation12 + $0x38] sm:$0xff] %vm732, %v3501
    // Predicated region
    $region62: #{tpu_custom_call.1} parent=1 // pred_check
      _
    $region63: #{tpu_custom_call.1} parent=1 // pred_check_branch
      %3511 = sbr.rel (0) target = $region65
    $region64: #{tpu_custom_call.1} parent=1 // pred_region
      %s3513 = ssub.s32 1024, 1024
      %3514 = vsyncadd [#allocation5], %s3513
      %s3515 = sshll.u32 [#allocation12], 4
      %s3516 = int_to_ptr.vmem [resolvable:$true] %s3515
      %3521 = dma.vmem_to_hbm [thread:$0]  %s3516, 1024, %s10, [#allocation5], 128, 128, 8
    $region65: #{tpu_custom_call.1} parent=1 // pred_fallthru
      _
    // Predicated region
    $region66: #{tpu_custom_call.1} parent=1 // pred_check
      _
    $region67: #{tpu_custom_call.1} parent=1 // pred_check_branch
      %3523 = sbr.rel (0) target = $region69
    $region68: #{tpu_custom_call.1} parent=1 // pred_region
      %3524 = dma.done [#allocation5], 1024
    $region69: #{tpu_custom_call.1} parent=1 // pred_fallthru
      _
    %3525 = vsyncpa [#allocation4], 1
    %3526 = vsyncpa [#allocation7], 1
    %3527 = vsyncpa [#allocation10], 1
    %3528 = vsyncpa [#allocation5], 1

</llo_original>
